<compile_context>
chip_gen: v5e
topology: v5e:2x2
jax: 0.10.0
libtpu: 0.0.40
codegen_flags: <defaults>
</compile_context>

<pallas_src>
import math
import jax
import jax.numpy as jnp
from jax.experimental import pallas as pl
from jax.experimental.pallas import tpu as pltpu


# ----------------------------- config ---------------------------------------
B, C, H, W = 2, 32, 8, 8           # small shapes consistent with the module
S = H * W                          # tokens per image (64)
BS = B * S                         # folded token count (128)
NUM_HEADS = 4                      # C must be divisible by num_heads
DH = C // NUM_HEADS                # per-head dim (8)
CM = 64                            # FFN hidden dim (cm arg of the module)
LN_EPS = 1e-5
WPW = max(2 * C, CM)               # packed array lane width (64)
EXACT_RECIP = False                # True -> exact 1/x in softmax (parity tests)


# ----------------------------- pos embedding (glue) -------------------------
def build_2d_sincos_position_embedding(w, h, embed_dim, temperature=10000.0):
    """Exact port of AIFI.build_2d_sincos_position_embedding -> [w*h, embed_dim]."""
    grid_w = jnp.arange(w, dtype=jnp.float32)
    grid_h = jnp.arange(h, dtype=jnp.float32)
    gw, gh = jnp.meshgrid(grid_w, grid_h, indexing="ij")   # shapes [w, h]
    assert embed_dim % 4 == 0
    pos_dim = embed_dim // 4
    omega = jnp.arange(pos_dim, dtype=jnp.float32) / pos_dim
    omega = 1.0 / (temperature ** omega)
    out_w = gw.reshape(-1)[:, None] * omega[None, :]       # [w*h, pos_dim]
    out_h = gh.reshape(-1)[:, None] * omega[None, :]
    return jnp.concatenate(
        [jnp.sin(out_w), jnp.cos(out_w), jnp.sin(out_h), jnp.cos(out_h)], axis=1
    )                                                      # [w*h, embed_dim]


# ----------------------------- the Pallas kernel -----------------------------
def aifi_kernel(
    src_ref,     # [BS, C]        all tokens of the whole batch
    pos_ref,     # [S, C]         positional embedding (single copy)
    wp_ref,      # [4C+CM, WPW]   sublane-packed [wqk ; wv ; wo ; w1 ; w2]
    vec_ref,     # [9, WPW]       packed biases / LayerNorm params
    out_ref,     # [BS, C]
):
    f32 = jnp.float32
    src = src_ref[...].astype(f32)                      # [BS, C]
    pos = pos_ref[...].astype(f32)                      # [S, C]
    wp = wp_ref[...].astype(f32)
    vec = vec_ref[...].astype(f32)

    # --- sublane-aligned weight views (row offsets are multiples of 8) ---
    wqk = wp[0 * C:1 * C, :]             # [C, 2C]  (1/sqrt(DH) folded into wq cols)
    wv = wp[1 * C:2 * C, :C]             # [C, C]
    wo = wp[2 * C:3 * C, :C]             # [C, C]
    w1 = wp[3 * C:4 * C, :CM]            # [C, CM]
    w2 = wp[4 * C:4 * C + CM, :C]        # [CM, C]

    bqk = vec[0:1, :2 * C]
    bv = vec[1:2, :C]
    bo = vec[2:3, :C]
    b1 = vec[3:4, :CM]
    b2 = vec[4:5, :C]
    g1 = vec[5:6, :C]
    be1 = vec[6:7, :C]
    g2 = vec[7:8, :C]
    be2 = vec[8:9, :C]

    # ---- multi-head self-attention (q = k = src + pos, value = src) ----
    # pos tiled over the folded batch: cheap sublane copy, no wrapper broadcast.
    qk_in = src + jnp.concatenate([pos] * B, axis=0)                 # [BS, C]
    qk = jnp.dot(qk_in, wqk, preferred_element_type=f32) + bqk       # [BS, 2C]
    v = jnp.dot(src, wv, preferred_element_type=f32) + bv            # [BS, C]

    # Per-batch attention on 64-token tiles: no block-diagonal mask, half the
    # softmax work vs. a folded [128,128] score block.
    attn_rows = []
    for b in range(B):                                   # static unroll (B=2)
        r0 = b * S                                       # multiple of 8 (64)
        q_b = qk[r0:r0 + S, :C]                          # [S, C]
        k_b = qk[r0:r0 + S, C:2 * C]                     # [S, C]
        v_b = v[r0:r0 + S, :]                            # [S, C]
        acc_b = jnp.zeros((S, C), f32)
        for hd in range(NUM_HEADS):                      # static unroll over heads
            sl = slice(hd * DH, (hd + 1) * DH)
            s_h = jax.lax.dot_general(                   # q @ k^T -> [S, S]
                q_b[:, sl], k_b[:, sl],
                (((1,), (1,)), ((), ())), preferred_element_type=f32)
            s_h = s_h - jnp.max(s_h, axis=-1, keepdims=True)
            p = jnp.exp(s_h)
            denom = jnp.sum(p, axis=-1, keepdims=True)
            if EXACT_RECIP:
                p = p / denom
            else:
                p = p * pl.reciprocal(denom, approx=True)
            pv = jnp.dot(p, v_b[:, sl], preferred_element_type=f32)     # [S, DH]
            # accumulate head output straight through the output projection
            acc_b = acc_b + jnp.dot(pv, wo[sl, :], preferred_element_type=f32)
        attn_rows.append(acc_b)
    attn = jnp.concatenate(attn_rows, axis=0) + bo                   # [BS, C]

    # ---- residual + LayerNorm1 ----
    x = src + attn
    mu = jnp.mean(x, axis=-1, keepdims=True)
    var = jnp.mean((x - mu) ** 2, axis=-1, keepdims=True)
    x = (x - mu) * jax.lax.rsqrt(var + LN_EPS) * g1 + be1

    # ---- FFN: fc2(GELU(fc1(x))) ----
    h1 = jnp.dot(x, w1, preferred_element_type=f32) + b1
    # exact (erf) GELU — matches nn.GELU() default
    h1 = 0.5 * h1 * (1.0 + jax.lax.erf(h1 * jnp.float32(1.0 / math.sqrt(2.0))))
    h2 = jnp.dot(h1, w2, preferred_element_type=f32) + b2

    # ---- residual + LayerNorm2 ----
    x = x + h2
    mu = jnp.mean(x, axis=-1, keepdims=True)
    var = jnp.mean((x - mu) ** 2, axis=-1, keepdims=True)
    x = (x - mu) * jax.lax.rsqrt(var + LN_EPS) * g2 + be2

    out_ref[...] = x.astype(out_ref.dtype)


# ----------------------------- param packing ---------------------------------
def pack_params(params):
    (wq, wk, wv, bq, bk, bv, wo, bo, w1, b1, w2, b2, g1, be1, g2, be2) = params

    # Fold the 1/sqrt(DH) attention scale into the Q projection (exact).
    scale = 1.0 / math.sqrt(DH)
    wq = wq * scale
    bq = bq * scale

    def pad_lanes(m):
        return jnp.pad(m, ((0, 0), (0, WPW - m.shape[1])))

    # Sublane-axis packing: every matrix starts at lane 0 and at a row offset
    # that is a multiple of 8 -> free sublane slices inside the kernel.
    w_pack = jnp.concatenate(
        [
            jnp.concatenate([wq, wk], axis=1),   # [C, 2C]   rows 0   .. C-1
            pad_lanes(wv),                       # [C, WPW]  rows C   .. 2C-1
            pad_lanes(wo),                       # [C, WPW]  rows 2C  .. 3C-1
            pad_lanes(w1),                       # [C, WPW]  rows 3C  .. 4C-1
            pad_lanes(w2),                       # [CM, WPW] rows 4C  .. 4C+CM-1
        ],
        axis=0,
    )                                            # [4C+CM, WPW] = [192, 64]

    def row(v):
        v = v.reshape(1, -1)
        return jnp.pad(v, ((0, 0), (0, WPW - v.shape[1])))

    vec_pack = jnp.concatenate(
        [
            row(jnp.concatenate([bq.reshape(1, -1), bk.reshape(1, -1)], axis=1)),
            row(bv), row(bo), row(b1), row(b2),
            row(g1), row(be1), row(g2), row(be2),
        ],
        axis=0,
    )                                            # [9, WPW]
    return w_pack, vec_pack


# ----------------------------- wrapper ---------------------------------------
def aifi_forward(x, packed):
    """x: [B, C, H, W] -> [B, C, H, W]."""
    b, c, h, w = x.shape
    assert (b, c, h, w) == (B, C, H, W)
    s = h * w
    # NCHW -> [B*S, C]  (matches x.flatten(2).permute(0, 2, 1), batch folded)
    src = jnp.transpose(x.reshape(b, c, s), (0, 2, 1)).reshape(b * s, c)
    pos = build_2d_sincos_position_embedding(w, h, c).astype(x.dtype)   # [S, C]

    w_pack, vec_pack = packed
    vspec = pl.BlockSpec(memory_space=pltpu.MemorySpace.VMEM)

    out = pl.pallas_call(
        aifi_kernel,
        out_shape=jax.ShapeDtypeStruct((b * s, c), x.dtype),
        in_specs=[vspec, vspec, vspec, vspec],
        out_specs=vspec,
    )(src, pos, w_pack, vec_pack)

    # [B*S, C] -> [B, S, C] -> NCHW
    return jnp.transpose(out.reshape(b, s, c), (0, 2, 1)).reshape(b, c, h, w)


# ----------------------------- deterministic params --------------------------
def init_params(key):
    ks = jax.random.split(key, 12)
    scale = 0.05
    f32 = jnp.float32
    wq = scale * jax.random.normal(ks[0], (C, C), f32)
    wk = scale * jax.random.normal(ks[1], (C, C), f32)
    wv = scale * jax.random.normal(ks[2], (C, C), f32)
    bq = scale * jax.random.normal(ks[3], (1, C), f32)
    bk = scale * jax.random.normal(ks[4], (1, C), f32)
    bv = scale * jax.random.normal(ks[5], (1, C), f32)
    wo = scale * jax.random.normal(ks[6], (C, C), f32)
    bo = scale * jax.random.normal(ks[7], (1, C), f32)
    w1 = scale * jax.random.normal(ks[8], (C, CM), f32)
    b1 = scale * jax.random.normal(ks[9], (1, CM), f32)
    w2 = scale * jax.random.normal(ks[10], (CM, C), f32)
    b2 = scale * jax.random.normal(ks[11], (1, C), f32)
    g1 = jnp.ones((1, C), f32)
    be1 = jnp.zeros((1, C), f32)
    g2 = jnp.ones((1, C), f32)
    be2 = jnp.zeros((1, C), f32)
    return (wq, wk, wv, bq, bk, bv, wo, bo, w1, b1, w2, b2, g1, be1, g2, be2)


if __name__ == "__main__":
    key = jax.random.PRNGKey(0)
    x = jax.random.normal(key, (B, C, H, W), jnp.float32)
    params = init_params(jax.random.PRNGKey(42))
    packed = pack_params(params)

    y = aifi_forward(x, packed)
    jax.block_until_ready(y)
    assert y.shape == (B, C, H, W), y.shape
    assert bool(jnp.all(jnp.isfinite(y)))
    print("KERNEL_OK")
</pallas_src>

<mosaic_0001>
module attributes {stable_mosaic.version = 11 : i64} {
  func.func @aifi_kernel(%arg0: memref<128x32xf32, #tpu.memory_space<vmem>>, %arg1: memref<64x32xf32, #tpu.memory_space<vmem>>, %arg2: memref<192x64xf32, #tpu.memory_space<vmem>>, %arg3: memref<9x64xf32, #tpu.memory_space<vmem>>, %arg4: memref<128x32xf32, #tpu.memory_space<vmem>>) attributes {dimension_semantics = [], scalar_prefetch = 0 : i64, scratch_operands = 0 : i64, tpu.core_type = #tpu.core_type<tc>} {
    %c0 = arith.constant 0 : index
    %c0_0 = arith.constant 0 : index
    %0 = vector.load %arg0[%c0, %c0_0] : memref<128x32xf32, #tpu.memory_space<vmem>>, vector<128x32xf32>
    %c0_1 = arith.constant 0 : index
    %c0_2 = arith.constant 0 : index
    %1 = vector.load %arg1[%c0_1, %c0_2] : memref<64x32xf32, #tpu.memory_space<vmem>>, vector<64x32xf32>
    %c0_3 = arith.constant 0 : index
    %c0_4 = arith.constant 0 : index
    %2 = vector.load %arg2[%c0_3, %c0_4] : memref<192x64xf32, #tpu.memory_space<vmem>>, vector<192x64xf32>
    %c0_5 = arith.constant 0 : index
    %c0_6 = arith.constant 0 : index
    %3 = vector.load %arg3[%c0_5, %c0_6] : memref<9x64xf32, #tpu.memory_space<vmem>>, vector<9x64xf32>
    %4 = vector.extract_strided_slice %2 {offsets = [0, 0], sizes = [32, 64], strides = [1, 1]} : vector<192x64xf32> to vector<32x64xf32>
    %5 = vector.extract_strided_slice %2 {offsets = [32, 0], sizes = [32, 32], strides = [1, 1]} : vector<192x64xf32> to vector<32x32xf32>
    %6 = vector.extract_strided_slice %2 {offsets = [64, 0], sizes = [32, 32], strides = [1, 1]} : vector<192x64xf32> to vector<32x32xf32>
    %7 = vector.extract_strided_slice %2 {offsets = [96, 0], sizes = [32, 64], strides = [1, 1]} : vector<192x64xf32> to vector<32x64xf32>
    %8 = vector.extract_strided_slice %2 {offsets = [128, 0], sizes = [64, 32], strides = [1, 1]} : vector<192x64xf32> to vector<64x32xf32>
    %9 = vector.extract_strided_slice %3 {offsets = [0, 0], sizes = [1, 64], strides = [1, 1]} : vector<9x64xf32> to vector<1x64xf32>
    %10 = vector.extract_strided_slice %3 {offsets = [1, 0], sizes = [1, 32], strides = [1, 1]} : vector<9x64xf32> to vector<1x32xf32>
    %11 = vector.extract_strided_slice %3 {offsets = [2, 0], sizes = [1, 32], strides = [1, 1]} : vector<9x64xf32> to vector<1x32xf32>
    %12 = vector.extract_strided_slice %3 {offsets = [3, 0], sizes = [1, 64], strides = [1, 1]} : vector<9x64xf32> to vector<1x64xf32>
    %13 = vector.extract_strided_slice %3 {offsets = [4, 0], sizes = [1, 32], strides = [1, 1]} : vector<9x64xf32> to vector<1x32xf32>
    %14 = vector.extract_strided_slice %3 {offsets = [5, 0], sizes = [1, 32], strides = [1, 1]} : vector<9x64xf32> to vector<1x32xf32>
    %15 = vector.extract_strided_slice %3 {offsets = [6, 0], sizes = [1, 32], strides = [1, 1]} : vector<9x64xf32> to vector<1x32xf32>
    %16 = vector.extract_strided_slice %3 {offsets = [7, 0], sizes = [1, 32], strides = [1, 1]} : vector<9x64xf32> to vector<1x32xf32>
    %17 = vector.extract_strided_slice %3 {offsets = [8, 0], sizes = [1, 32], strides = [1, 1]} : vector<9x64xf32> to vector<1x32xf32>
    %18 = tpu.concatenate %1, %1 in 0 : vector<64x32xf32>, vector<64x32xf32> -> vector<128x32xf32>
    %19 = arith.addf %0, %18 : vector<128x32xf32>
    %cst = arith.constant dense<0.000000e+00> : vector<128x64xf32>
    %20 = tpu.matmul %19, %4, %cst {dimension_numbers = #tpu.dot_dimension_numbers<[1], [0], [0], [1], [0, 0, 1, 1], [], []>} : vector<128x32xf32>, vector<32x64xf32>, vector<128x64xf32> -> vector<128x64xf32>
    %21 = vector.broadcast %9 : vector<1x64xf32> to vector<128x64xf32>
    %22 = arith.addf %20, %21 : vector<128x64xf32>
    %cst_7 = arith.constant dense<0.000000e+00> : vector<128x32xf32>
    %23 = tpu.matmul %0, %5, %cst_7 {dimension_numbers = #tpu.dot_dimension_numbers<[1], [0], [0], [1], [0, 0, 1, 1], [], []>} : vector<128x32xf32>, vector<32x32xf32>, vector<128x32xf32> -> vector<128x32xf32>
    %24 = vector.broadcast %10 : vector<1x32xf32> to vector<128x32xf32>
    %25 = arith.addf %23, %24 : vector<128x32xf32>
    %26 = vector.extract_strided_slice %22 {offsets = [0, 0], sizes = [64, 32], strides = [1, 1]} : vector<128x64xf32> to vector<64x32xf32>
    %27 = vector.extract_strided_slice %22 {offsets = [0, 32], sizes = [64, 32], strides = [1, 1]} : vector<128x64xf32> to vector<64x32xf32>
    %28 = vector.extract_strided_slice %25 {offsets = [0, 0], sizes = [64, 32], strides = [1, 1]} : vector<128x32xf32> to vector<64x32xf32>
    %cst_8 = arith.constant 0.000000e+00 : f32
    %29 = vector.broadcast %cst_8 : f32 to vector<64x32xf32>
    %30 = vector.extract_strided_slice %26 {offsets = [0, 0], sizes = [64, 8], strides = [1, 1]} : vector<64x32xf32> to vector<64x8xf32>
    %31 = vector.extract_strided_slice %27 {offsets = [0, 0], sizes = [64, 8], strides = [1, 1]} : vector<64x32xf32> to vector<64x8xf32>
    %cst_9 = arith.constant dense<0.000000e+00> : vector<64x64xf32>
    %32 = tpu.matmul %30, %31, %cst_9 {dimension_numbers = #tpu.dot_dimension_numbers<[1], [1], [0], [0], [0, 0, 1, 0], [], []>} : vector<64x8xf32>, vector<64x8xf32>, vector<64x64xf32> -> vector<64x64xf32>
    %cst_10 = arith.constant dense<0xFF800000> : vector<64xf32>
    %33 = vector.multi_reduction <maximumf>, %32, %cst_10 [1] : vector<64x64xf32> to vector<64xf32>
    %34 = vector.shape_cast %33 : vector<64xf32> to vector<64x1xf32>
    %35 = vector.broadcast %34 : vector<64x1xf32> to vector<64x64xf32>
    %36 = arith.subf %32, %35 : vector<64x64xf32>
    %37 = math.exp %36 : vector<64x64xf32>
    %cst_11 = arith.constant dense<0.000000e+00> : vector<64xf32>
    %38 = vector.multi_reduction <add>, %37, %cst_11 [1] : vector<64x64xf32> to vector<64xf32>
    %39 = vector.shape_cast %38 : vector<64xf32> to vector<64x1xf32>
    %40 = tpu.reciprocal %39 {approx = true} : vector<64x1xf32> -> vector<64x1xf32>
    %41 = vector.broadcast %40 : vector<64x1xf32> to vector<64x64xf32>
    %42 = arith.mulf %37, %41 : vector<64x64xf32>
    %43 = vector.extract_strided_slice %28 {offsets = [0, 0], sizes = [64, 8], strides = [1, 1]} : vector<64x32xf32> to vector<64x8xf32>
    %cst_12 = arith.constant dense<0.000000e+00> : vector<64x8xf32>
    %44 = tpu.matmul %42, %43, %cst_12 {dimension_numbers = #tpu.dot_dimension_numbers<[1], [0], [0], [1], [0, 0, 1, 1], [], []>} : vector<64x64xf32>, vector<64x8xf32>, vector<64x8xf32> -> vector<64x8xf32>
    %45 = vector.extract_strided_slice %6 {offsets = [0, 0], sizes = [8, 32], strides = [1, 1]} : vector<32x32xf32> to vector<8x32xf32>
    %cst_13 = arith.constant dense<0.000000e+00> : vector<64x32xf32>
    %46 = tpu.matmul %44, %45, %cst_13 {dimension_numbers = #tpu.dot_dimension_numbers<[1], [0], [0], [1], [0, 0, 1, 1], [], []>} : vector<64x8xf32>, vector<8x32xf32>, vector<64x32xf32> -> vector<64x32xf32>
    %47 = arith.addf %29, %46 : vector<64x32xf32>
    %48 = vector.extract_strided_slice %26 {offsets = [0, 8], sizes = [64, 8], strides = [1, 1]} : vector<64x32xf32> to vector<64x8xf32>
    %49 = vector.extract_strided_slice %27 {offsets = [0, 8], sizes = [64, 8], strides = [1, 1]} : vector<64x32xf32> to vector<64x8xf32>
    %cst_14 = arith.constant dense<0.000000e+00> : vector<64x64xf32>
    %50 = tpu.matmul %48, %49, %cst_14 {dimension_numbers = #tpu.dot_dimension_numbers<[1], [1], [0], [0], [0, 0, 1, 0], [], []>} : vector<64x8xf32>, vector<64x8xf32>, vector<64x64xf32> -> vector<64x64xf32>
    %cst_15 = arith.constant dense<0xFF800000> : vector<64xf32>
    %51 = vector.multi_reduction <maximumf>, %50, %cst_15 [1] : vector<64x64xf32> to vector<64xf32>
    %52 = vector.shape_cast %51 : vector<64xf32> to vector<64x1xf32>
    %53 = vector.broadcast %52 : vector<64x1xf32> to vector<64x64xf32>
    %54 = arith.subf %50, %53 : vector<64x64xf32>
    %55 = math.exp %54 : vector<64x64xf32>
    %cst_16 = arith.constant dense<0.000000e+00> : vector<64xf32>
    %56 = vector.multi_reduction <add>, %55, %cst_16 [1] : vector<64x64xf32> to vector<64xf32>
    %57 = vector.shape_cast %56 : vector<64xf32> to vector<64x1xf32>
    %58 = tpu.reciprocal %57 {approx = true} : vector<64x1xf32> -> vector<64x1xf32>
    %59 = vector.broadcast %58 : vector<64x1xf32> to vector<64x64xf32>
    %60 = arith.mulf %55, %59 : vector<64x64xf32>
    %61 = vector.extract_strided_slice %28 {offsets = [0, 8], sizes = [64, 8], strides = [1, 1]} : vector<64x32xf32> to vector<64x8xf32>
    %cst_17 = arith.constant dense<0.000000e+00> : vector<64x8xf32>
    %62 = tpu.matmul %60, %61, %cst_17 {dimension_numbers = #tpu.dot_dimension_numbers<[1], [0], [0], [1], [0, 0, 1, 1], [], []>} : vector<64x64xf32>, vector<64x8xf32>, vector<64x8xf32> -> vector<64x8xf32>
    %63 = vector.extract_strided_slice %6 {offsets = [8, 0], sizes = [8, 32], strides = [1, 1]} : vector<32x32xf32> to vector<8x32xf32>
    %cst_18 = arith.constant dense<0.000000e+00> : vector<64x32xf32>
    %64 = tpu.matmul %62, %63, %cst_18 {dimension_numbers = #tpu.dot_dimension_numbers<[1], [0], [0], [1], [0, 0, 1, 1], [], []>} : vector<64x8xf32>, vector<8x32xf32>, vector<64x32xf32> -> vector<64x32xf32>
    %65 = arith.addf %47, %64 : vector<64x32xf32>
    %66 = vector.extract_strided_slice %26 {offsets = [0, 16], sizes = [64, 8], strides = [1, 1]} : vector<64x32xf32> to vector<64x8xf32>
    %67 = vector.extract_strided_slice %27 {offsets = [0, 16], sizes = [64, 8], strides = [1, 1]} : vector<64x32xf32> to vector<64x8xf32>
    %cst_19 = arith.constant dense<0.000000e+00> : vector<64x64xf32>
    %68 = tpu.matmul %66, %67, %cst_19 {dimension_numbers = #tpu.dot_dimension_numbers<[1], [1], [0], [0], [0, 0, 1, 0], [], []>} : vector<64x8xf32>, vector<64x8xf32>, vector<64x64xf32> -> vector<64x64xf32>
    %cst_20 = arith.constant dense<0xFF800000> : vector<64xf32>
    %69 = vector.multi_reduction <maximumf>, %68, %cst_20 [1] : vector<64x64xf32> to vector<64xf32>
    %70 = vector.shape_cast %69 : vector<64xf32> to vector<64x1xf32>
    %71 = vector.broadcast %70 : vector<64x1xf32> to vector<64x64xf32>
    %72 = arith.subf %68, %71 : vector<64x64xf32>
    %73 = math.exp %72 : vector<64x64xf32>
    %cst_21 = arith.constant dense<0.000000e+00> : vector<64xf32>
    %74 = vector.multi_reduction <add>, %73, %cst_21 [1] : vector<64x64xf32> to vector<64xf32>
    %75 = vector.shape_cast %74 : vector<64xf32> to vector<64x1xf32>
    %76 = tpu.reciprocal %75 {approx = true} : vector<64x1xf32> -> vector<64x1xf32>
    %77 = vector.broadcast %76 : vector<64x1xf32> to vector<64x64xf32>
    %78 = arith.mulf %73, %77 : vector<64x64xf32>
    %79 = vector.extract_strided_slice %28 {offsets = [0, 16], sizes = [64, 8], strides = [1, 1]} : vector<64x32xf32> to vector<64x8xf32>
    %cst_22 = arith.constant dense<0.000000e+00> : vector<64x8xf32>
    %80 = tpu.matmul %78, %79, %cst_22 {dimension_numbers = #tpu.dot_dimension_numbers<[1], [0], [0], [1], [0, 0, 1, 1], [], []>} : vector<64x64xf32>, vector<64x8xf32>, vector<64x8xf32> -> vector<64x8xf32>
    %81 = vector.extract_strided_slice %6 {offsets = [16, 0], sizes = [8, 32], strides = [1, 1]} : vector<32x32xf32> to vector<8x32xf32>
    %cst_23 = arith.constant dense<0.000000e+00> : vector<64x32xf32>
    %82 = tpu.matmul %80, %81, %cst_23 {dimension_numbers = #tpu.dot_dimension_numbers<[1], [0], [0], [1], [0, 0, 1, 1], [], []>} : vector<64x8xf32>, vector<8x32xf32>, vector<64x32xf32> -> vector<64x32xf32>
    %83 = arith.addf %65, %82 : vector<64x32xf32>
    %84 = vector.extract_strided_slice %26 {offsets = [0, 24], sizes = [64, 8], strides = [1, 1]} : vector<64x32xf32> to vector<64x8xf32>
    %85 = vector.extract_strided_slice %27 {offsets = [0, 24], sizes = [64, 8], strides = [1, 1]} : vector<64x32xf32> to vector<64x8xf32>
    %cst_24 = arith.constant dense<0.000000e+00> : vector<64x64xf32>
    %86 = tpu.matmul %84, %85, %cst_24 {dimension_numbers = #tpu.dot_dimension_numbers<[1], [1], [0], [0], [0, 0, 1, 0], [], []>} : vector<64x8xf32>, vector<64x8xf32>, vector<64x64xf32> -> vector<64x64xf32>
    %cst_25 = arith.constant dense<0xFF800000> : vector<64xf32>
    %87 = vector.multi_reduction <maximumf>, %86, %cst_25 [1] : vector<64x64xf32> to vector<64xf32>
    %88 = vector.shape_cast %87 : vector<64xf32> to vector<64x1xf32>
    %89 = vector.broadcast %88 : vector<64x1xf32> to vector<64x64xf32>
    %90 = arith.subf %86, %89 : vector<64x64xf32>
    %91 = math.exp %90 : vector<64x64xf32>
    %cst_26 = arith.constant dense<0.000000e+00> : vector<64xf32>
    %92 = vector.multi_reduction <add>, %91, %cst_26 [1] : vector<64x64xf32> to vector<64xf32>
    %93 = vector.shape_cast %92 : vector<64xf32> to vector<64x1xf32>
    %94 = tpu.reciprocal %93 {approx = true} : vector<64x1xf32> -> vector<64x1xf32>
    %95 = vector.broadcast %94 : vector<64x1xf32> to vector<64x64xf32>
    %96 = arith.mulf %91, %95 : vector<64x64xf32>
    %97 = vector.extract_strided_slice %28 {offsets = [0, 24], sizes = [64, 8], strides = [1, 1]} : vector<64x32xf32> to vector<64x8xf32>
    %cst_27 = arith.constant dense<0.000000e+00> : vector<64x8xf32>
    %98 = tpu.matmul %96, %97, %cst_27 {dimension_numbers = #tpu.dot_dimension_numbers<[1], [0], [0], [1], [0, 0, 1, 1], [], []>} : vector<64x64xf32>, vector<64x8xf32>, vector<64x8xf32> -> vector<64x8xf32>
    %99 = vector.extract_strided_slice %6 {offsets = [24, 0], sizes = [8, 32], strides = [1, 1]} : vector<32x32xf32> to vector<8x32xf32>
    %cst_28 = arith.constant dense<0.000000e+00> : vector<64x32xf32>
    %100 = tpu.matmul %98, %99, %cst_28 {dimension_numbers = #tpu.dot_dimension_numbers<[1], [0], [0], [1], [0, 0, 1, 1], [], []>} : vector<64x8xf32>, vector<8x32xf32>, vector<64x32xf32> -> vector<64x32xf32>
    %101 = arith.addf %83, %100 : vector<64x32xf32>
    %102 = vector.extract_strided_slice %22 {offsets = [64, 0], sizes = [64, 32], strides = [1, 1]} : vector<128x64xf32> to vector<64x32xf32>
    %103 = vector.extract_strided_slice %22 {offsets = [64, 32], sizes = [64, 32], strides = [1, 1]} : vector<128x64xf32> to vector<64x32xf32>
    %104 = vector.extract_strided_slice %25 {offsets = [64, 0], sizes = [64, 32], strides = [1, 1]} : vector<128x32xf32> to vector<64x32xf32>
    %cst_29 = arith.constant 0.000000e+00 : f32
    %105 = vector.broadcast %cst_29 : f32 to vector<64x32xf32>
    %106 = vector.extract_strided_slice %102 {offsets = [0, 0], sizes = [64, 8], strides = [1, 1]} : vector<64x32xf32> to vector<64x8xf32>
    %107 = vector.extract_strided_slice %103 {offsets = [0, 0], sizes = [64, 8], strides = [1, 1]} : vector<64x32xf32> to vector<64x8xf32>
    %cst_30 = arith.constant dense<0.000000e+00> : vector<64x64xf32>
    %108 = tpu.matmul %106, %107, %cst_30 {dimension_numbers = #tpu.dot_dimension_numbers<[1], [1], [0], [0], [0, 0, 1, 0], [], []>} : vector<64x8xf32>, vector<64x8xf32>, vector<64x64xf32> -> vector<64x64xf32>
    %cst_31 = arith.constant dense<0xFF800000> : vector<64xf32>
    %109 = vector.multi_reduction <maximumf>, %108, %cst_31 [1] : vector<64x64xf32> to vector<64xf32>
    %110 = vector.shape_cast %109 : vector<64xf32> to vector<64x1xf32>
    %111 = vector.broadcast %110 : vector<64x1xf32> to vector<64x64xf32>
    %112 = arith.subf %108, %111 : vector<64x64xf32>
    %113 = math.exp %112 : vector<64x64xf32>
    %cst_32 = arith.constant dense<0.000000e+00> : vector<64xf32>
    %114 = vector.multi_reduction <add>, %113, %cst_32 [1] : vector<64x64xf32> to vector<64xf32>
    %115 = vector.shape_cast %114 : vector<64xf32> to vector<64x1xf32>
    %116 = tpu.reciprocal %115 {approx = true} : vector<64x1xf32> -> vector<64x1xf32>
    %117 = vector.broadcast %116 : vector<64x1xf32> to vector<64x64xf32>
    %118 = arith.mulf %113, %117 : vector<64x64xf32>
    %119 = vector.extract_strided_slice %104 {offsets = [0, 0], sizes = [64, 8], strides = [1, 1]} : vector<64x32xf32> to vector<64x8xf32>
    %cst_33 = arith.constant dense<0.000000e+00> : vector<64x8xf32>
    %120 = tpu.matmul %118, %119, %cst_33 {dimension_numbers = #tpu.dot_dimension_numbers<[1], [0], [0], [1], [0, 0, 1, 1], [], []>} : vector<64x64xf32>, vector<64x8xf32>, vector<64x8xf32> -> vector<64x8xf32>
    %121 = vector.extract_strided_slice %6 {offsets = [0, 0], sizes = [8, 32], strides = [1, 1]} : vector<32x32xf32> to vector<8x32xf32>
    %cst_34 = arith.constant dense<0.000000e+00> : vector<64x32xf32>
    %122 = tpu.matmul %120, %121, %cst_34 {dimension_numbers = #tpu.dot_dimension_numbers<[1], [0], [0], [1], [0, 0, 1, 1], [], []>} : vector<64x8xf32>, vector<8x32xf32>, vector<64x32xf32> -> vector<64x32xf32>
    %123 = arith.addf %105, %122 : vector<64x32xf32>
    %124 = vector.extract_strided_slice %102 {offsets = [0, 8], sizes = [64, 8], strides = [1, 1]} : vector<64x32xf32> to vector<64x8xf32>
    %125 = vector.extract_strided_slice %103 {offsets = [0, 8], sizes = [64, 8], strides = [1, 1]} : vector<64x32xf32> to vector<64x8xf32>
    %cst_35 = arith.constant dense<0.000000e+00> : vector<64x64xf32>
    %126 = tpu.matmul %124, %125, %cst_35 {dimension_numbers = #tpu.dot_dimension_numbers<[1], [1], [0], [0], [0, 0, 1, 0], [], []>} : vector<64x8xf32>, vector<64x8xf32>, vector<64x64xf32> -> vector<64x64xf32>
    %cst_36 = arith.constant dense<0xFF800000> : vector<64xf32>
    %127 = vector.multi_reduction <maximumf>, %126, %cst_36 [1] : vector<64x64xf32> to vector<64xf32>
    %128 = vector.shape_cast %127 : vector<64xf32> to vector<64x1xf32>
    %129 = vector.broadcast %128 : vector<64x1xf32> to vector<64x64xf32>
    %130 = arith.subf %126, %129 : vector<64x64xf32>
    %131 = math.exp %130 : vector<64x64xf32>
    %cst_37 = arith.constant dense<0.000000e+00> : vector<64xf32>
    %132 = vector.multi_reduction <add>, %131, %cst_37 [1] : vector<64x64xf32> to vector<64xf32>
    %133 = vector.shape_cast %132 : vector<64xf32> to vector<64x1xf32>
    %134 = tpu.reciprocal %133 {approx = true} : vector<64x1xf32> -> vector<64x1xf32>
    %135 = vector.broadcast %134 : vector<64x1xf32> to vector<64x64xf32>
    %136 = arith.mulf %131, %135 : vector<64x64xf32>
    %137 = vector.extract_strided_slice %104 {offsets = [0, 8], sizes = [64, 8], strides = [1, 1]} : vector<64x32xf32> to vector<64x8xf32>
    %cst_38 = arith.constant dense<0.000000e+00> : vector<64x8xf32>
    %138 = tpu.matmul %136, %137, %cst_38 {dimension_numbers = #tpu.dot_dimension_numbers<[1], [0], [0], [1], [0, 0, 1, 1], [], []>} : vector<64x64xf32>, vector<64x8xf32>, vector<64x8xf32> -> vector<64x8xf32>
    %139 = vector.extract_strided_slice %6 {offsets = [8, 0], sizes = [8, 32], strides = [1, 1]} : vector<32x32xf32> to vector<8x32xf32>
    %cst_39 = arith.constant dense<0.000000e+00> : vector<64x32xf32>
    %140 = tpu.matmul %138, %139, %cst_39 {dimension_numbers = #tpu.dot_dimension_numbers<[1], [0], [0], [1], [0, 0, 1, 1], [], []>} : vector<64x8xf32>, vector<8x32xf32>, vector<64x32xf32> -> vector<64x32xf32>
    %141 = arith.addf %123, %140 : vector<64x32xf32>
    %142 = vector.extract_strided_slice %102 {offsets = [0, 16], sizes = [64, 8], strides = [1, 1]} : vector<64x32xf32> to vector<64x8xf32>
    %143 = vector.extract_strided_slice %103 {offsets = [0, 16], sizes = [64, 8], strides = [1, 1]} : vector<64x32xf32> to vector<64x8xf32>
    %cst_40 = arith.constant dense<0.000000e+00> : vector<64x64xf32>
    %144 = tpu.matmul %142, %143, %cst_40 {dimension_numbers = #tpu.dot_dimension_numbers<[1], [1], [0], [0], [0, 0, 1, 0], [], []>} : vector<64x8xf32>, vector<64x8xf32>, vector<64x64xf32> -> vector<64x64xf32>
    %cst_41 = arith.constant dense<0xFF800000> : vector<64xf32>
    %145 = vector.multi_reduction <maximumf>, %144, %cst_41 [1] : vector<64x64xf32> to vector<64xf32>
    %146 = vector.shape_cast %145 : vector<64xf32> to vector<64x1xf32>
    %147 = vector.broadcast %146 : vector<64x1xf32> to vector<64x64xf32>
    %148 = arith.subf %144, %147 : vector<64x64xf32>
    %149 = math.exp %148 : vector<64x64xf32>
    %cst_42 = arith.constant dense<0.000000e+00> : vector<64xf32>
    %150 = vector.multi_reduction <add>, %149, %cst_42 [1] : vector<64x64xf32> to vector<64xf32>
    %151 = vector.shape_cast %150 : vector<64xf32> to vector<64x1xf32>
    %152 = tpu.reciprocal %151 {approx = true} : vector<64x1xf32> -> vector<64x1xf32>
    %153 = vector.broadcast %152 : vector<64x1xf32> to vector<64x64xf32>
    %154 = arith.mulf %149, %153 : vector<64x64xf32>
    %155 = vector.extract_strided_slice %104 {offsets = [0, 16], sizes = [64, 8], strides = [1, 1]} : vector<64x32xf32> to vector<64x8xf32>
    %cst_43 = arith.constant dense<0.000000e+00> : vector<64x8xf32>
    %156 = tpu.matmul %154, %155, %cst_43 {dimension_numbers = #tpu.dot_dimension_numbers<[1], [0], [0], [1], [0, 0, 1, 1], [], []>} : vector<64x64xf32>, vector<64x8xf32>, vector<64x8xf32> -> vector<64x8xf32>
    %157 = vector.extract_strided_slice %6 {offsets = [16, 0], sizes = [8, 32], strides = [1, 1]} : vector<32x32xf32> to vector<8x32xf32>
    %cst_44 = arith.constant dense<0.000000e+00> : vector<64x32xf32>
    %158 = tpu.matmul %156, %157, %cst_44 {dimension_numbers = #tpu.dot_dimension_numbers<[1], [0], [0], [1], [0, 0, 1, 1], [], []>} : vector<64x8xf32>, vector<8x32xf32>, vector<64x32xf32> -> vector<64x32xf32>
    %159 = arith.addf %141, %158 : vector<64x32xf32>
    %160 = vector.extract_strided_slice %102 {offsets = [0, 24], sizes = [64, 8], strides = [1, 1]} : vector<64x32xf32> to vector<64x8xf32>
    %161 = vector.extract_strided_slice %103 {offsets = [0, 24], sizes = [64, 8], strides = [1, 1]} : vector<64x32xf32> to vector<64x8xf32>
    %cst_45 = arith.constant dense<0.000000e+00> : vector<64x64xf32>
    %162 = tpu.matmul %160, %161, %cst_45 {dimension_numbers = #tpu.dot_dimension_numbers<[1], [1], [0], [0], [0, 0, 1, 0], [], []>} : vector<64x8xf32>, vector<64x8xf32>, vector<64x64xf32> -> vector<64x64xf32>
    %cst_46 = arith.constant dense<0xFF800000> : vector<64xf32>
    %163 = vector.multi_reduction <maximumf>, %162, %cst_46 [1] : vector<64x64xf32> to vector<64xf32>
    %164 = vector.shape_cast %163 : vector<64xf32> to vector<64x1xf32>
    %165 = vector.broadcast %164 : vector<64x1xf32> to vector<64x64xf32>
    %166 = arith.subf %162, %165 : vector<64x64xf32>
    %167 = math.exp %166 : vector<64x64xf32>
    %cst_47 = arith.constant dense<0.000000e+00> : vector<64xf32>
    %168 = vector.multi_reduction <add>, %167, %cst_47 [1] : vector<64x64xf32> to vector<64xf32>
    %169 = vector.shape_cast %168 : vector<64xf32> to vector<64x1xf32>
    %170 = tpu.reciprocal %169 {approx = true} : vector<64x1xf32> -> vector<64x1xf32>
    %171 = vector.broadcast %170 : vector<64x1xf32> to vector<64x64xf32>
    %172 = arith.mulf %167, %171 : vector<64x64xf32>
    %173 = vector.extract_strided_slice %104 {offsets = [0, 24], sizes = [64, 8], strides = [1, 1]} : vector<64x32xf32> to vector<64x8xf32>
    %cst_48 = arith.constant dense<0.000000e+00> : vector<64x8xf32>
    %174 = tpu.matmul %172, %173, %cst_48 {dimension_numbers = #tpu.dot_dimension_numbers<[1], [0], [0], [1], [0, 0, 1, 1], [], []>} : vector<64x64xf32>, vector<64x8xf32>, vector<64x8xf32> -> vector<64x8xf32>
    %175 = vector.extract_strided_slice %6 {offsets = [24, 0], sizes = [8, 32], strides = [1, 1]} : vector<32x32xf32> to vector<8x32xf32>
    %cst_49 = arith.constant dense<0.000000e+00> : vector<64x32xf32>
    %176 = tpu.matmul %174, %175, %cst_49 {dimension_numbers = #tpu.dot_dimension_numbers<[1], [0], [0], [1], [0, 0, 1, 1], [], []>} : vector<64x8xf32>, vector<8x32xf32>, vector<64x32xf32> -> vector<64x32xf32>
    %177 = arith.addf %159, %176 : vector<64x32xf32>
    %178 = tpu.concatenate %101, %177 in 0 : vector<64x32xf32>, vector<64x32xf32> -> vector<128x32xf32>
    %179 = vector.broadcast %11 : vector<1x32xf32> to vector<128x32xf32>
    %180 = arith.addf %178, %179 : vector<128x32xf32>
    %181 = arith.addf %0, %180 : vector<128x32xf32>
    %cst_50 = arith.constant dense<0.000000e+00> : vector<128xf32>
    %182 = vector.multi_reduction <add>, %181, %cst_50 [1] : vector<128x32xf32> to vector<128xf32>
    %183 = vector.shape_cast %182 : vector<128xf32> to vector<128x1xf32>
    %cst_51 = arith.constant 3.200000e+01 : f32
    %184 = vector.broadcast %cst_51 : f32 to vector<128x1xf32>
    %185 = arith.divf %183, %184 : vector<128x1xf32>
    %186 = vector.broadcast %185 : vector<128x1xf32> to vector<128x32xf32>
    %187 = arith.subf %181, %186 : vector<128x32xf32>
    %188 = arith.mulf %187, %187 : vector<128x32xf32>
    %cst_52 = arith.constant dense<0.000000e+00> : vector<128xf32>
    %189 = vector.multi_reduction <add>, %188, %cst_52 [1] : vector<128x32xf32> to vector<128xf32>
    %190 = vector.shape_cast %189 : vector<128xf32> to vector<128x1xf32>
    %cst_53 = arith.constant 3.200000e+01 : f32
    %191 = vector.broadcast %cst_53 : f32 to vector<128x1xf32>
    %192 = arith.divf %190, %191 : vector<128x1xf32>
    %193 = vector.broadcast %185 : vector<128x1xf32> to vector<128x32xf32>
    %194 = arith.subf %181, %193 : vector<128x32xf32>
    %cst_54 = arith.constant 9.99999974E-6 : f32
    %195 = vector.broadcast %cst_54 : f32 to vector<128x1xf32>
    %196 = arith.addf %192, %195 : vector<128x1xf32>
    %197 = math.rsqrt %196 : vector<128x1xf32>
    %198 = vector.broadcast %197 : vector<128x1xf32> to vector<128x32xf32>
    %199 = arith.mulf %194, %198 : vector<128x32xf32>
    %200 = vector.broadcast %14 : vector<1x32xf32> to vector<128x32xf32>
    %201 = arith.mulf %199, %200 : vector<128x32xf32>
    %202 = vector.broadcast %15 : vector<1x32xf32> to vector<128x32xf32>
    %203 = arith.addf %201, %202 : vector<128x32xf32>
    %cst_55 = arith.constant dense<0.000000e+00> : vector<128x64xf32>
    %204 = tpu.matmul %203, %7, %cst_55 {dimension_numbers = #tpu.dot_dimension_numbers<[1], [0], [0], [1], [0, 0, 1, 1], [], []>} : vector<128x32xf32>, vector<32x64xf32>, vector<128x64xf32> -> vector<128x64xf32>
    %205 = vector.broadcast %12 : vector<1x64xf32> to vector<128x64xf32>
    %206 = arith.addf %204, %205 : vector<128x64xf32>
    %cst_56 = arith.constant 5.000000e-01 : f32
    %207 = vector.broadcast %cst_56 : f32 to vector<128x64xf32>
    %208 = arith.mulf %207, %206 : vector<128x64xf32>
    %cst_57 = arith.constant 0.707106769 : f32
    %209 = vector.broadcast %cst_57 : f32 to vector<128x64xf32>
    %210 = arith.mulf %206, %209 : vector<128x64xf32>
    %211 = math.erf %210 : vector<128x64xf32>
    %cst_58 = arith.constant 1.000000e+00 : f32
    %212 = vector.broadcast %cst_58 : f32 to vector<128x64xf32>
    %213 = arith.addf %212, %211 : vector<128x64xf32>
    %214 = arith.mulf %208, %213 : vector<128x64xf32>
    %cst_59 = arith.constant dense<0.000000e+00> : vector<128x32xf32>
    %215 = tpu.matmul %214, %8, %cst_59 {dimension_numbers = #tpu.dot_dimension_numbers<[1], [0], [0], [1], [0, 0, 1, 1], [], []>} : vector<128x64xf32>, vector<64x32xf32>, vector<128x32xf32> -> vector<128x32xf32>
    %216 = vector.broadcast %13 : vector<1x32xf32> to vector<128x32xf32>
    %217 = arith.addf %215, %216 : vector<128x32xf32>
    %218 = arith.addf %203, %217 : vector<128x32xf32>
    %cst_60 = arith.constant dense<0.000000e+00> : vector<128xf32>
    %219 = vector.multi_reduction <add>, %218, %cst_60 [1] : vector<128x32xf32> to vector<128xf32>
    %220 = vector.shape_cast %219 : vector<128xf32> to vector<128x1xf32>
    %cst_61 = arith.constant 3.200000e+01 : f32
    %221 = vector.broadcast %cst_61 : f32 to vector<128x1xf32>
    %222 = arith.divf %220, %221 : vector<128x1xf32>
    %223 = vector.broadcast %222 : vector<128x1xf32> to vector<128x32xf32>
    %224 = arith.subf %218, %223 : vector<128x32xf32>
    %225 = arith.mulf %224, %224 : vector<128x32xf32>
    %cst_62 = arith.constant dense<0.000000e+00> : vector<128xf32>
    %226 = vector.multi_reduction <add>, %225, %cst_62 [1] : vector<128x32xf32> to vector<128xf32>
    %227 = vector.shape_cast %226 : vector<128xf32> to vector<128x1xf32>
    %cst_63 = arith.constant 3.200000e+01 : f32
    %228 = vector.broadcast %cst_63 : f32 to vector<128x1xf32>
    %229 = arith.divf %227, %228 : vector<128x1xf32>
    %230 = vector.broadcast %222 : vector<128x1xf32> to vector<128x32xf32>
    %231 = arith.subf %218, %230 : vector<128x32xf32>
    %cst_64 = arith.constant 9.99999974E-6 : f32
    %232 = vector.broadcast %cst_64 : f32 to vector<128x1xf32>
    %233 = arith.addf %229, %232 : vector<128x1xf32>
    %234 = math.rsqrt %233 : vector<128x1xf32>
    %235 = vector.broadcast %234 : vector<128x1xf32> to vector<128x32xf32>
    %236 = arith.mulf %231, %235 : vector<128x32xf32>
    %237 = vector.broadcast %16 : vector<1x32xf32> to vector<128x32xf32>
    %238 = arith.mulf %236, %237 : vector<128x32xf32>
    %239 = vector.broadcast %17 : vector<1x32xf32> to vector<128x32xf32>
    %240 = arith.addf %238, %239 : vector<128x32xf32>
    %c0_65 = arith.constant 0 : index
    %c0_66 = arith.constant 0 : index
    %241 = vector.load %arg4[%c0_65, %c0_66] : memref<128x32xf32, #tpu.memory_space<vmem>>, vector<128x32xf32>
    tpu.vector_store %arg4[%c0_65, %c0_66], %240 {strides = array<i32>} : memref<128x32xf32, #tpu.memory_space<vmem>>, vector<128x32xf32>,
    return
  }
}

</mosaic_0001>

<llo_original>
// kernel: tpu_custom_call.1
$region0: #{tpu_custom_call.1}
  #allocation0 [shape = 'u32[]', space=smem, size = 0x4, offset = 0x4, fixed_abs, tag = 'smem constant byte address 0x4 - core index']
  #allocation1 [shape = 'u32[72,128]{1,0:T(1,128)}', space=vmem, size = 0x9000, scoped, tag = 'internal scratch']
  %s0 = inlined_call_operand.vmem [shape: f32[128,32], index: 0, kind: input, shape index: {}]
  %s1 = inlined_call_operand.vmem [shape: f32[64,32], index: 1, kind: input, shape index: {}]
  %s2 = inlined_call_operand.vmem [shape: f32[192,64], index: 2, kind: input, shape index: {}]
  %s3 = inlined_call_operand.vmem [shape: f32[9,64], index: 3, kind: input, shape index: {}]
  %s4 = inlined_call_operand.vmem [shape: f32[128,32], index: 4, kind: output, shape index: {}]
  %s5 = sld [smem:[#allocation0]]
  $region26: #{tpu_custom_call.1} parent=0
    _
  %s7 = ssub.s32 1, %s5
  %s8 = scalar_select 0, %s7, %s5
  // Predicated region
  $region2: #{tpu_custom_call.1} parent=0 // pred_check
    _
  $region3: #{tpu_custom_call.1} parent=0 // pred_check_branch
    %10 = sbr.rel (0) target = $region5
  $region4: #{tpu_custom_call.1} parent=0 // pred_region
    _
  $region5: #{tpu_custom_call.1} parent=0 // pred_fallthru
    _
  // Predicated region
  $region6: #{tpu_custom_call.1} parent=0 // pred_check
    _
  $region7: #{tpu_custom_call.1} parent=0 // pred_check_branch
    %12 = sbr.rel (0) target = $region9
  $region8: #{tpu_custom_call.1} parent=0 // pred_region
    _
  $region9: #{tpu_custom_call.1} parent=0 // pred_fallthru
    _
  // Predicated region
  $region10: #{tpu_custom_call.1} parent=0 // pred_check
    _
  $region11: #{tpu_custom_call.1} parent=0 // pred_check_branch
    %14 = sbr.rel (0) target = $region13
  $region12: #{tpu_custom_call.1} parent=0 // pred_region
    _
  $region13: #{tpu_custom_call.1} parent=0 // pred_fallthru
    _
  // Predicated region
  $region14: #{tpu_custom_call.1} parent=0 // pred_check
    _
  $region15: #{tpu_custom_call.1} parent=0 // pred_check_branch
    %16 = sbr.rel (0) target = $region17
  $region16: #{tpu_custom_call.1} parent=0 // pred_region
    _
  $region17: #{tpu_custom_call.1} parent=0 // pred_fallthru
    _
  %v17 = vld [vmem:[%s0] sm:$0xff]
  %v18 = vld [vmem:[%s0 + $0x8] sm:$0xff]
  %v19 = vld [vmem:[%s0 + $0x10] sm:$0xff]
  %v20 = vld [vmem:[%s0 + $0x18] sm:$0xff]
  %v21 = vld [vmem:[%s0 + $0x20] sm:$0xff]
  %v22 = vld [vmem:[%s0 + $0x28] sm:$0xff]
  %v23 = vld [vmem:[%s0 + $0x30] sm:$0xff]
  %v24 = vld [vmem:[%s0 + $0x38] sm:$0xff]
  %v25 = vld [vmem:[%s0 + $0x40] sm:$0xff]
  %v26 = vld [vmem:[%s0 + $0x48] sm:$0xff]
  %v27 = vld [vmem:[%s0 + $0x50] sm:$0xff]
  %v28 = vld [vmem:[%s0 + $0x58] sm:$0xff]
  %v29 = vld [vmem:[%s0 + $0x60] sm:$0xff]
  %v30 = vld [vmem:[%s0 + $0x68] sm:$0xff]
  %v31 = vld [vmem:[%s0 + $0x70] sm:$0xff]
  %v32 = vld [vmem:[%s0 + $0x78] sm:$0xff]
  %v33 = vld [vmem:[%s1] sm:$0xff]
  %v34 = vld [vmem:[%s1 + $0x8] sm:$0xff]
  %v35 = vld [vmem:[%s1 + $0x10] sm:$0xff]
  %v36 = vld [vmem:[%s1 + $0x18] sm:$0xff]
  %v37 = vld [vmem:[%s1 + $0x20] sm:$0xff]
  %v38 = vld [vmem:[%s1 + $0x28] sm:$0xff]
  %v39 = vld [vmem:[%s1 + $0x30] sm:$0xff]
  %v40 = vld [vmem:[%s1 + $0x38] sm:$0xff]
  %v41 = vld [vmem:[%s2] sm:$0xff]
  %v42 = vld [vmem:[%s2 + $0x8] sm:$0xff]
  %v43 = vld [vmem:[%s2 + $0x10] sm:$0xff]
  %v44 = vld [vmem:[%s2 + $0x18] sm:$0xff]
  %v45 = vld [vmem:[%s2 + $0x20] sm:$0xff]
  %v46 = vld [vmem:[%s2 + $0x28] sm:$0xff]
  %v47 = vld [vmem:[%s2 + $0x30] sm:$0xff]
  %v48 = vld [vmem:[%s2 + $0x38] sm:$0xff]
  %v49 = vld [vmem:[%s2 + $0x40] sm:$0xff]
  %v50 = vld [vmem:[%s2 + $0x48] sm:$0xff]
  %v51 = vld [vmem:[%s2 + $0x50] sm:$0xff]
  %v52 = vld [vmem:[%s2 + $0x58] sm:$0xff]
  %v53 = vld [vmem:[%s2 + $0x60] sm:$0xff]
  %v54 = vld [vmem:[%s2 + $0x68] sm:$0xff]
  %v55 = vld [vmem:[%s2 + $0x70] sm:$0xff]
  %v56 = vld [vmem:[%s2 + $0x78] sm:$0xff]
  %v57 = vld [vmem:[%s2 + $0x80] sm:$0xff]
  %v58 = vld [vmem:[%s2 + $0x88] sm:$0xff]
  %v59 = vld [vmem:[%s2 + $0x90] sm:$0xff]
  %v60 = vld [vmem:[%s2 + $0x98] sm:$0xff]
  %v61 = vld [vmem:[%s2 + $0xa0] sm:$0xff]
  %v62 = vld [vmem:[%s2 + $0xa8] sm:$0xff]
  %v63 = vld [vmem:[%s2 + $0xb0] sm:$0xff]
  %v64 = vld [vmem:[%s2 + $0xb8] sm:$0xff]
  %v65 = vld [vmem:[%s3] sm:$0xff]
  %v66 = vld [vmem:[%s3 + $0x8] sm:$0x1]
  %v67 = vadd.f32 %v17, %v33
  %v68 = vadd.f32 %v18, %v34
  %v69 = vadd.f32 %v19, %v35
  %v70 = vadd.f32 %v20, %v36
  %v71 = vadd.f32 %v21, %v37
  %v72 = vadd.f32 %v22, %v38
  %v73 = vadd.f32 %v23, %v39
  %v74 = vadd.f32 %v24, %v40
  %v75 = vadd.f32 %v25, %v33
  %v76 = vadd.f32 %v26, %v34
  %v77 = vadd.f32 %v27, %v35
  %v78 = vadd.f32 %v28, %v36
  %v79 = vadd.f32 %v29, %v37
  %v80 = vadd.f32 %v30, %v38
  %v81 = vadd.f32 %v31, %v39
  %v82 = vadd.f32 %v32, %v40
  %v83 = vperm.slane %v65, 0
  %vm84 = vcmask 261120
  %v86 = vsel %vm84, %v67, 0
  %v89 = vsel %vm84, %v68, 0
  %v92 = vsel %vm84, %v69, 0
  %v95 = vsel %vm84, %v70, 0
  %v98 = vsel %vm84, %v71, 0
  %v101 = vsel %vm84, %v72, 0
  %v104 = vsel %vm84, %v73, 0
  %v107 = vsel %vm84, %v74, 0
  %v110 = vsel %vm84, %v75, 0
  %v113 = vsel %vm84, %v76, 0
  %v116 = vsel %vm84, %v77, 0
  %v119 = vsel %vm84, %v78, 0
  %v122 = vsel %vm84, %v79, 0
  %v125 = vsel %vm84, %v80, 0
  %v128 = vsel %vm84, %v81, 0
  %v131 = vsel %vm84, %v82, 0
  %133 = vmatpush.msra.mxu0 0.0
  %134 = vmatpush.msra.mxu0 0.0
  %135 = vmatpush.msra.mxu0 0.0
  %136 = vmatpush.msra.mxu0 0.0
  %137 = vmatpush.msra.mxu0 0.0
  %138 = vmatpush.msra.mxu0 0.0
  %139 = vmatpush.msra.mxu0 0.0
  %140 = vmatpush.msra.mxu0 0.0
  %141 = vmatpush.msra.mxu0 0.0
  %142 = vmatpush.msra.mxu0 0.0
  %143 = vmatpush.msra.mxu0 0.0
  %144 = vmatpush.msra.mxu0 0.0
  %145 = vmatpush.msra.mxu0 %v44
  %146 = vmatpush.msra.mxu0 %v43
  %147 = vmatpush.msra.mxu0 %v42
  %148 = vmatpush.msra.mxu0 %v41
  %149 = vmatmul.f32.gmra.mxu0 %v86
  %v150 = vpop.f32.mrf.mxu0
  %v151 = vadd.f32 %v83, %v150
  %152 = vmatmul.f32.gmra.mxu0 %v89
  %v153 = vpop.f32.mrf.mxu0
  %v154 = vadd.f32 %v83, %v153
  %155 = vmatmul.f32.gmra.mxu0 %v92
  %v156 = vpop.f32.mrf.mxu0
  %v157 = vadd.f32 %v83, %v156
  %158 = vmatmul.f32.gmra.mxu0 %v95
  %v159 = vpop.f32.mrf.mxu0
  %v160 = vadd.f32 %v83, %v159
  %161 = vmatmul.f32.gmra.mxu0 %v98
  %v162 = vpop.f32.mrf.mxu0
  %v163 = vadd.f32 %v83, %v162
  %164 = vmatmul.f32.gmra.mxu0 %v101
  %v165 = vpop.f32.mrf.mxu0
  %v166 = vadd.f32 %v83, %v165
  %167 = vmatmul.f32.gmra.mxu0 %v104
  %v168 = vpop.f32.mrf.mxu0
  %v169 = vadd.f32 %v83, %v168
  %170 = vmatmul.f32.gmra.mxu0 %v107
  %v171 = vpop.f32.mrf.mxu0
  %v172 = vadd.f32 %v83, %v171
  %173 = vmatmul.f32.gmra.mxu0 %v110
  %v174 = vpop.f32.mrf.mxu0
  %v175 = vadd.f32 %v83, %v174
  %176 = vmatmul.f32.gmra.mxu0 %v113
  %v177 = vpop.f32.mrf.mxu0
  %v178 = vadd.f32 %v83, %v177
  %179 = vmatmul.f32.gmra.mxu0 %v116
  %v180 = vpop.f32.mrf.mxu0
  %v181 = vadd.f32 %v83, %v180
  %182 = vmatmul.f32.gmra.mxu0 %v119
  %v183 = vpop.f32.mrf.mxu0
  %v184 = vadd.f32 %v83, %v183
  %185 = vmatmul.f32.gmra.mxu0 %v122
  %v186 = vpop.f32.mrf.mxu0
  %v187 = vadd.f32 %v83, %v186
  %188 = vmatmul.f32.gmra.mxu0 %v125
  %v189 = vpop.f32.mrf.mxu0
  %v190 = vadd.f32 %v83, %v189
  %191 = vmatmul.f32.gmra.mxu0 %v128
  %v192 = vpop.f32.mrf.mxu0
  %v193 = vadd.f32 %v83, %v192
  %194 = vmatmul.f32.gmra.mxu0 %v131
  %v195 = vpop.f32.mrf.mxu0
  %v196 = vadd.f32 %v83, %v195
  %197 = vdwg.mxu0
  %v198 = vperm.slane %v65, 1
  %v200 = vsel %vm84, %v17, 0
  %v203 = vsel %vm84, %v18, 0
  %v206 = vsel %vm84, %v19, 0
  %v209 = vsel %vm84, %v20, 0
  %v212 = vsel %vm84, %v21, 0
  %v215 = vsel %vm84, %v22, 0
  %v218 = vsel %vm84, %v23, 0
  %v221 = vsel %vm84, %v24, 0
  %v224 = vsel %vm84, %v25, 0
  %v227 = vsel %vm84, %v26, 0
  %v230 = vsel %vm84, %v27, 0
  %v233 = vsel %vm84, %v28, 0
  %v236 = vsel %vm84, %v29, 0
  %v239 = vsel %vm84, %v30, 0
  %v242 = vsel %vm84, %v31, 0
  %v245 = vsel %vm84, %v32, 0
  %247 = vmatpush.msra.mxu0 0.0
  %248 = vmatpush.msra.mxu0 0.0
  %249 = vmatpush.msra.mxu0 0.0
  %250 = vmatpush.msra.mxu0 0.0
  %251 = vmatpush.msra.mxu0 0.0
  %252 = vmatpush.msra.mxu0 0.0
  %253 = vmatpush.msra.mxu0 0.0
  %254 = vmatpush.msra.mxu0 0.0
  %255 = vmatpush.msra.mxu0 0.0
  %256 = vmatpush.msra.mxu0 0.0
  %257 = vmatpush.msra.mxu0 0.0
  %258 = vmatpush.msra.mxu0 0.0
  %259 = vmatpush.msra.mxu0 %v48
  %260 = vmatpush.msra.mxu0 %v47
  %261 = vmatpush.msra.mxu0 %v46
  %262 = vmatpush.msra.mxu0 %v45
  %263 = vmatmul.f32.gmra.mxu0 %v200
  %v264 = vpop.f32.mrf.mxu0
  %v265 = vadd.f32 %v198, %v264
  %266 = vmatmul.f32.gmra.mxu0 %v203
  %v267 = vpop.f32.mrf.mxu0
  %v268 = vadd.f32 %v198, %v267
  %269 = vmatmul.f32.gmra.mxu0 %v206
  %v270 = vpop.f32.mrf.mxu0
  %v271 = vadd.f32 %v198, %v270
  %272 = vmatmul.f32.gmra.mxu0 %v209
  %v273 = vpop.f32.mrf.mxu0
  %v274 = vadd.f32 %v198, %v273
  %275 = vmatmul.f32.gmra.mxu0 %v212
  %v276 = vpop.f32.mrf.mxu0
  %v277 = vadd.f32 %v198, %v276
  %278 = vmatmul.f32.gmra.mxu0 %v215
  %v279 = vpop.f32.mrf.mxu0
  %v280 = vadd.f32 %v198, %v279
  %281 = vmatmul.f32.gmra.mxu0 %v218
  %v282 = vpop.f32.mrf.mxu0
  %v283 = vadd.f32 %v198, %v282
  %284 = vmatmul.f32.gmra.mxu0 %v221
  %v285 = vpop.f32.mrf.mxu0
  %v286 = vadd.f32 %v198, %v285
  %287 = vmatmul.f32.gmra.mxu0 %v224
  %v288 = vpop.f32.mrf.mxu0
  %v289 = vadd.f32 %v198, %v288
  %290 = vmatmul.f32.gmra.mxu0 %v227
  %v291 = vpop.f32.mrf.mxu0
  %v292 = vadd.f32 %v198, %v291
  %293 = vmatmul.f32.gmra.mxu0 %v230
  %v294 = vpop.f32.mrf.mxu0
  %v295 = vadd.f32 %v198, %v294
  %296 = vmatmul.f32.gmra.mxu0 %v233
  %v297 = vpop.f32.mrf.mxu0
  %v298 = vadd.f32 %v198, %v297
  %299 = vmatmul.f32.gmra.mxu0 %v236
  %v300 = vpop.f32.mrf.mxu0
  %v301 = vadd.f32 %v198, %v300
  %302 = vmatmul.f32.gmra.mxu0 %v239
  %v303 = vpop.f32.mrf.mxu0
  %v304 = vadd.f32 %v198, %v303
  %305 = vmatmul.f32.gmra.mxu0 %v242
  %v306 = vpop.f32.mrf.mxu0
  %v307 = vadd.f32 %v198, %v306
  %308 = vmatmul.f32.gmra.mxu0 %v245
  %v309 = vpop.f32.mrf.mxu0
  %v310 = vadd.f32 %v198, %v309
  %311 = vdwg.mxu0
  %320 = vrot.lane.b32.xlu0 %v151, 96
  %v321 = vpop.permute.xlu0 %320
  %322 = vrot.lane.b32.xlu0 %v154, 96
  %v323 = vpop.permute.xlu0 %322
  %324 = vrot.lane.b32.xlu0 %v157, 96
  %v325 = vpop.permute.xlu0 %324
  %326 = vrot.lane.b32.xlu0 %v160, 96
  %v327 = vpop.permute.xlu0 %326
  %328 = vrot.lane.b32.xlu0 %v163, 96
  %v329 = vpop.permute.xlu0 %328
  %330 = vrot.lane.b32.xlu0 %v166, 96
  %v331 = vpop.permute.xlu0 %330
  %332 = vrot.lane.b32.xlu0 %v169, 96
  %v333 = vpop.permute.xlu0 %332
  %334 = vrot.lane.b32.xlu0 %v172, 96
  %v335 = vpop.permute.xlu0 %334
  %vm336 = vcmask 64512
  %v337 = vsel %vm336, %v151, 0
  %v339 = vsel %vm336, %v154, 0
  %v341 = vsel %vm336, %v157, 0
  %v343 = vsel %vm336, %v160, 0
  %v345 = vsel %vm336, %v163, 0
  %v347 = vsel %vm336, %v166, 0
  %v349 = vsel %vm336, %v169, 0
  %v351 = vsel %vm336, %v172, 0
  %v353 = vsel %vm336, %v321, 0
  %v355 = vsel %vm336, %v323, 0
  %v357 = vsel %vm336, %v325, 0
  %v359 = vsel %vm336, %v327, 0
  %v361 = vsel %vm336, %v329, 0
  %v363 = vsel %vm336, %v331, 0
  %v365 = vsel %vm336, %v333, 0
  %v367 = vsel %vm336, %v335, 0
  %369 = vmatpush.xpose.msra.mxu0 0.0
  %370 = vmatpush.xpose.msra.mxu0 0.0
  %371 = vmatpush.xpose.msra.mxu0 0.0
  %372 = vmatpush.xpose.msra.mxu0 0.0
  %373 = vmatpush.xpose.msra.mxu0 0.0
  %374 = vmatpush.xpose.msra.mxu0 0.0
  %375 = vmatpush.xpose.msra.mxu0 0.0
  %376 = vmatpush.xpose.msra.mxu0 0.0
  %377 = vmatpush.xpose.msra.mxu0 %v367
  %378 = vmatpush.xpose.msra.mxu0 %v365
  %379 = vmatpush.xpose.msra.mxu0 %v363
  %380 = vmatpush.xpose.msra.mxu0 %v361
  %381 = vmatpush.xpose.msra.mxu0 %v359
  %382 = vmatpush.xpose.msra.mxu0 %v357
  %383 = vmatpush.xpose.msra.mxu0 %v355
  %384 = vmatpush.xpose.msra.mxu0 %v353
  %385 = vmatmul.f32.gmra.mxu0 %v337
  %v386 = vpop.f32.mrf.mxu0
  %v387 = vadd.f32 0.0, %v386
  %388 = vmatmul.f32.gmra.mxu0 %v339
  %v389 = vpop.f32.mrf.mxu0
  %v390 = vadd.f32 0.0, %v389
  %391 = vmatmul.f32.gmra.mxu0 %v341
  %v392 = vpop.f32.mrf.mxu0
  %v393 = vadd.f32 0.0, %v392
  %394 = vmatmul.f32.gmra.mxu0 %v343
  %v395 = vpop.f32.mrf.mxu0
  %v396 = vadd.f32 0.0, %v395
  %397 = vmatmul.f32.gmra.mxu0 %v345
  %v398 = vpop.f32.mrf.mxu0
  %v399 = vadd.f32 0.0, %v398
  %400 = vmatmul.f32.gmra.mxu0 %v347
  %v401 = vpop.f32.mrf.mxu0
  %v402 = vadd.f32 0.0, %v401
  %403 = vmatmul.f32.gmra.mxu0 %v349
  %v404 = vpop.f32.mrf.mxu0
  %v405 = vadd.f32 0.0, %v404
  %406 = vmatmul.f32.gmra.mxu0 %v351
  %v407 = vpop.f32.mrf.mxu0
  %v408 = vadd.f32 0.0, %v407
  %409 = vdwg.mxu0
  %vm410 = vcmask 523264
  %v411 = vsel %vm410, %v387, -inf
  %412 = vmax.xlane.f32.xlu0 %v411
  %v413 = vpop.xlane.xlu0 %412
  %v414 = vsel %vm410, %v390, -inf
  %415 = vmax.xlane.f32.xlu0 %v414
  %v416 = vpop.xlane.xlu0 %415
  %v417 = vsel %vm410, %v393, -inf
  %418 = vmax.xlane.f32.xlu0 %v417
  %v419 = vpop.xlane.xlu0 %418
  %v420 = vsel %vm410, %v396, -inf
  %421 = vmax.xlane.f32.xlu0 %v420
  %v422 = vpop.xlane.xlu0 %421
  %v423 = vsel %vm410, %v399, -inf
  %424 = vmax.xlane.f32.xlu0 %v423
  %v425 = vpop.xlane.xlu0 %424
  %v426 = vsel %vm410, %v402, -inf
  %427 = vmax.xlane.f32.xlu0 %v426
  %v428 = vpop.xlane.xlu0 %427
  %v429 = vsel %vm410, %v405, -inf
  %430 = vmax.xlane.f32.xlu0 %v429
  %v431 = vpop.xlane.xlu0 %430
  %v432 = vsel %vm410, %v408, -inf
  %433 = vmax.xlane.f32.xlu0 %v432
  %v434 = vpop.xlane.xlu0 %433
  %v435 = vsub.f32 %v387, %v413
  %v436 = vsub.f32 %v390, %v416
  %v437 = vsub.f32 %v393, %v419
  %v438 = vsub.f32 %v396, %v422
  %v439 = vsub.f32 %v399, %v425
  %v440 = vsub.f32 %v402, %v428
  %v441 = vsub.f32 %v405, %v431
  %v442 = vsub.f32 %v408, %v434
  %v443 = vmul.f32 %v435, 1.442695
  %v444 = vpow.pop %v443
  %v445 = vmul.f32 %v436, 1.442695
  %v446 = vpow.pop %v445
  %v447 = vmul.f32 %v437, 1.442695
  %v448 = vpow.pop %v447
  %v449 = vmul.f32 %v438, 1.442695
  %v450 = vpow.pop %v449
  %v451 = vmul.f32 %v439, 1.442695
  %v452 = vpow.pop %v451
  %v453 = vmul.f32 %v440, 1.442695
  %v454 = vpow.pop %v453
  %v455 = vmul.f32 %v441, 1.442695
  %v456 = vpow.pop %v455
  %v457 = vmul.f32 %v442, 1.442695
  %v458 = vpow.pop %v457
  %v459 = vsel %vm410, %v444, 0.0
  %460 = vadd.xlane.f32.xlu0 %v459
  %v461 = vpop.xlane.xlu0 %460
  %v462 = vsel %vm410, %v446, 0.0
  %463 = vadd.xlane.f32.xlu0 %v462
  %v464 = vpop.xlane.xlu0 %463
  %v465 = vsel %vm410, %v448, 0.0
  %466 = vadd.xlane.f32.xlu0 %v465
  %v467 = vpop.xlane.xlu0 %466
  %v468 = vsel %vm410, %v450, 0.0
  %469 = vadd.xlane.f32.xlu0 %v468
  %v470 = vpop.xlane.xlu0 %469
  %v471 = vsel %vm410, %v452, 0.0
  %472 = vadd.xlane.f32.xlu0 %v471
  %v473 = vpop.xlane.xlu0 %472
  %v474 = vsel %vm410, %v454, 0.0
  %475 = vadd.xlane.f32.xlu0 %v474
  %v476 = vpop.xlane.xlu0 %475
  %v477 = vsel %vm410, %v456, 0.0
  %478 = vadd.xlane.f32.xlu0 %v477
  %v479 = vpop.xlane.xlu0 %478
  %v480 = vsel %vm410, %v458, 0.0
  %481 = vadd.xlane.f32.xlu0 %v480
  %v482 = vpop.xlane.xlu0 %481
  %v483 = vrcp.pop %v461
  %v484 = vrcp.pop %v464
  %v485 = vrcp.pop %v467
  %v486 = vrcp.pop %v470
  %v487 = vrcp.pop %v473
  %v488 = vrcp.pop %v476
  %v489 = vrcp.pop %v479
  %v490 = vrcp.pop %v482
  %v491 = vmul.f32 %v444, %v483
  %v492 = vmul.f32 %v446, %v484
  %v493 = vmul.f32 %v448, %v485
  %v494 = vmul.f32 %v450, %v486
  %v495 = vmul.f32 %v452, %v487
  %v496 = vmul.f32 %v454, %v488
  %v497 = vmul.f32 %v456, %v489
  %v498 = vmul.f32 %v458, %v490
  %v500 = vsel %vm410, %v491, 0
  %v503 = vsel %vm410, %v492, 0
  %v506 = vsel %vm410, %v493, 0
  %v509 = vsel %vm410, %v494, 0
  %v512 = vsel %vm410, %v495, 0
  %v515 = vsel %vm410, %v496, 0
  %v518 = vsel %vm410, %v497, 0
  %v521 = vsel %vm410, %v498, 0
  %523 = vmatpush.msra.mxu0 0.0
  %524 = vmatpush.msra.mxu0 0.0
  %525 = vmatpush.msra.mxu0 0.0
  %526 = vmatpush.msra.mxu0 0.0
  %527 = vmatpush.msra.mxu0 0.0
  %528 = vmatpush.msra.mxu0 0.0
  %529 = vmatpush.msra.mxu0 0.0
  %530 = vmatpush.msra.mxu0 0.0
  %531 = vmatpush.msra.mxu0 %v286
  %532 = vmatpush.msra.mxu0 %v283
  %533 = vmatpush.msra.mxu0 %v280
  %534 = vmatpush.msra.mxu0 %v277
  %535 = vmatpush.msra.mxu0 %v274
  %536 = vmatpush.msra.mxu0 %v271
  %537 = vmatpush.msra.mxu0 %v268
  %538 = vmatpush.msra.mxu0 %v265
  %539 = vmatmul.f32.gmra.mxu0 %v500
  %v540 = vpop.f32.mrf.mxu0
  %v541 = vadd.f32 0.0, %v540
  %542 = vmatmul.f32.gmra.mxu0 %v503
  %v543 = vpop.f32.mrf.mxu0
  %v544 = vadd.f32 0.0, %v543
  %545 = vmatmul.f32.gmra.mxu0 %v506
  %v546 = vpop.f32.mrf.mxu0
  %v547 = vadd.f32 0.0, %v546
  %548 = vmatmul.f32.gmra.mxu0 %v509
  %v549 = vpop.f32.mrf.mxu0
  %v550 = vadd.f32 0.0, %v549
  %551 = vmatmul.f32.gmra.mxu0 %v512
  %v552 = vpop.f32.mrf.mxu0
  %v553 = vadd.f32 0.0, %v552
  %554 = vmatmul.f32.gmra.mxu0 %v515
  %v555 = vpop.f32.mrf.mxu0
  %v556 = vadd.f32 0.0, %v555
  %557 = vmatmul.f32.gmra.mxu0 %v518
  %v558 = vpop.f32.mrf.mxu0
  %v559 = vadd.f32 0.0, %v558
  %560 = vmatmul.f32.gmra.mxu0 %v521
  %v561 = vpop.f32.mrf.mxu0
  %v562 = vadd.f32 0.0, %v561
  %563 = vdwg.mxu0
  %564 = vrot.lane.b32.xlu0 %v151, 120
  %v565 = vpop.permute.xlu0 %564
  %566 = vrot.lane.b32.xlu0 %v154, 120
  %v567 = vpop.permute.xlu0 %566
  %568 = vrot.lane.b32.xlu0 %v157, 120
  %v569 = vpop.permute.xlu0 %568
  %570 = vrot.lane.b32.xlu0 %v160, 120
  %v571 = vpop.permute.xlu0 %570
  %572 = vrot.lane.b32.xlu0 %v163, 120
  %v573 = vpop.permute.xlu0 %572
  %574 = vrot.lane.b32.xlu0 %v166, 120
  %v575 = vpop.permute.xlu0 %574
  %576 = vrot.lane.b32.xlu0 %v169, 120
  %v577 = vpop.permute.xlu0 %576
  %578 = vrot.lane.b32.xlu0 %v172, 120
  %v579 = vpop.permute.xlu0 %578
  %580 = vrot.lane.b32.xlu0 %v151, 88
  %v581 = vpop.permute.xlu0 %580
  %582 = vrot.lane.b32.xlu0 %v154, 88
  %v583 = vpop.permute.xlu0 %582
  %584 = vrot.lane.b32.xlu0 %v157, 88
  %v585 = vpop.permute.xlu0 %584
  %586 = vrot.lane.b32.xlu0 %v160, 88
  %v587 = vpop.permute.xlu0 %586
  %588 = vrot.lane.b32.xlu0 %v163, 88
  %v589 = vpop.permute.xlu0 %588
  %590 = vrot.lane.b32.xlu0 %v166, 88
  %v591 = vpop.permute.xlu0 %590
  %592 = vrot.lane.b32.xlu0 %v169, 88
  %v593 = vpop.permute.xlu0 %592
  %594 = vrot.lane.b32.xlu0 %v172, 88
  %v595 = vpop.permute.xlu0 %594
  %v596 = vsel %vm336, %v565, 0
  %v598 = vsel %vm336, %v567, 0
  %v600 = vsel %vm336, %v569, 0
  %v602 = vsel %vm336, %v571, 0
  %v604 = vsel %vm336, %v573, 0
  %v606 = vsel %vm336, %v575, 0
  %v608 = vsel %vm336, %v577, 0
  %v610 = vsel %vm336, %v579, 0
  %v612 = vsel %vm336, %v581, 0
  %v614 = vsel %vm336, %v583, 0
  %v616 = vsel %vm336, %v585, 0
  %v618 = vsel %vm336, %v587, 0
  %v620 = vsel %vm336, %v589, 0
  %v622 = vsel %vm336, %v591, 0
  %v624 = vsel %vm336, %v593, 0
  %v626 = vsel %vm336, %v595, 0
  %628 = vmatpush.xpose.msra.mxu0 0.0
  %629 = vmatpush.xpose.msra.mxu0 0.0
  %630 = vmatpush.xpose.msra.mxu0 0.0
  %631 = vmatpush.xpose.msra.mxu0 0.0
  %632 = vmatpush.xpose.msra.mxu0 0.0
  %633 = vmatpush.xpose.msra.mxu0 0.0
  %634 = vmatpush.xpose.msra.mxu0 0.0
  %635 = vmatpush.xpose.msra.mxu0 0.0
  %636 = vmatpush.xpose.msra.mxu0 %v626
  %637 = vmatpush.xpose.msra.mxu0 %v624
  %638 = vmatpush.xpose.msra.mxu0 %v622
  %639 = vmatpush.xpose.msra.mxu0 %v620
  %640 = vmatpush.xpose.msra.mxu0 %v618
  %641 = vmatpush.xpose.msra.mxu0 %v616
  %642 = vmatpush.xpose.msra.mxu0 %v614
  %643 = vmatpush.xpose.msra.mxu0 %v612
  %644 = vmatmul.f32.gmra.mxu0 %v596
  %v645 = vpop.f32.mrf.mxu0
  %v646 = vadd.f32 0.0, %v645
  %647 = vmatmul.f32.gmra.mxu0 %v598
  %v648 = vpop.f32.mrf.mxu0
  %v649 = vadd.f32 0.0, %v648
  %650 = vmatmul.f32.gmra.mxu0 %v600
  %v651 = vpop.f32.mrf.mxu0
  %v652 = vadd.f32 0.0, %v651
  %653 = vmatmul.f32.gmra.mxu0 %v602
  %v654 = vpop.f32.mrf.mxu0
  %v655 = vadd.f32 0.0, %v654
  %656 = vmatmul.f32.gmra.mxu0 %v604
  %v657 = vpop.f32.mrf.mxu0
  %v658 = vadd.f32 0.0, %v657
  %659 = vmatmul.f32.gmra.mxu0 %v606
  %v660 = vpop.f32.mrf.mxu0
  %v661 = vadd.f32 0.0, %v660
  %662 = vmatmul.f32.gmra.mxu0 %v608
  %v663 = vpop.f32.mrf.mxu0
  %v664 = vadd.f32 0.0, %v663
  %665 = vmatmul.f32.gmra.mxu0 %v610
  %v666 = vpop.f32.mrf.mxu0
  %v667 = vadd.f32 0.0, %v666
  %668 = vdwg.mxu0
  %v669 = vsel %vm410, %v646, -inf
  %670 = vmax.xlane.f32.xlu0 %v669
  %v671 = vpop.xlane.xlu0 %670
  %v672 = vsel %vm410, %v649, -inf
  %673 = vmax.xlane.f32.xlu0 %v672
  %v674 = vpop.xlane.xlu0 %673
  %v675 = vsel %vm410, %v652, -inf
  %676 = vmax.xlane.f32.xlu0 %v675
  %v677 = vpop.xlane.xlu0 %676
  %v678 = vsel %vm410, %v655, -inf
  %679 = vmax.xlane.f32.xlu0 %v678
  %v680 = vpop.xlane.xlu0 %679
  %v681 = vsel %vm410, %v658, -inf
  %682 = vmax.xlane.f32.xlu0 %v681
  %v683 = vpop.xlane.xlu0 %682
  %v684 = vsel %vm410, %v661, -inf
  %685 = vmax.xlane.f32.xlu0 %v684
  %v686 = vpop.xlane.xlu0 %685
  %v687 = vsel %vm410, %v664, -inf
  %688 = vmax.xlane.f32.xlu0 %v687
  %v689 = vpop.xlane.xlu0 %688
  %v690 = vsel %vm410, %v667, -inf
  %691 = vmax.xlane.f32.xlu0 %v690
  %v692 = vpop.xlane.xlu0 %691
  %v693 = vsub.f32 %v646, %v671
  %v694 = vsub.f32 %v649, %v674
  %v695 = vsub.f32 %v652, %v677
  %v696 = vsub.f32 %v655, %v680
  %v697 = vsub.f32 %v658, %v683
  %v698 = vsub.f32 %v661, %v686
  %v699 = vsub.f32 %v664, %v689
  %v700 = vsub.f32 %v667, %v692
  %v701 = vmul.f32 %v693, 1.442695
  %v702 = vpow.pop %v701
  %v703 = vmul.f32 %v694, 1.442695
  %v704 = vpow.pop %v703
  %v705 = vmul.f32 %v695, 1.442695
  %v706 = vpow.pop %v705
  %v707 = vmul.f32 %v696, 1.442695
  %v708 = vpow.pop %v707
  %v709 = vmul.f32 %v697, 1.442695
  %v710 = vpow.pop %v709
  %v711 = vmul.f32 %v698, 1.442695
  %v712 = vpow.pop %v711
  %v713 = vmul.f32 %v699, 1.442695
  %v714 = vpow.pop %v713
  %v715 = vmul.f32 %v700, 1.442695
  %v716 = vpow.pop %v715
  %v717 = vsel %vm410, %v702, 0.0
  %718 = vadd.xlane.f32.xlu0 %v717
  %v719 = vpop.xlane.xlu0 %718
  %v720 = vsel %vm410, %v704, 0.0
  %721 = vadd.xlane.f32.xlu0 %v720
  %v722 = vpop.xlane.xlu0 %721
  %v723 = vsel %vm410, %v706, 0.0
  %724 = vadd.xlane.f32.xlu0 %v723
  %v725 = vpop.xlane.xlu0 %724
  %v726 = vsel %vm410, %v708, 0.0
  %727 = vadd.xlane.f32.xlu0 %v726
  %v728 = vpop.xlane.xlu0 %727
  %v729 = vsel %vm410, %v710, 0.0
  %730 = vadd.xlane.f32.xlu0 %v729
  %v731 = vpop.xlane.xlu0 %730
  %v732 = vsel %vm410, %v712, 0.0
  %733 = vadd.xlane.f32.xlu0 %v732
  %v734 = vpop.xlane.xlu0 %733
  %v735 = vsel %vm410, %v714, 0.0
  %736 = vadd.xlane.f32.xlu0 %v735
  %v737 = vpop.xlane.xlu0 %736
  %v738 = vsel %vm410, %v716, 0.0
  %739 = vadd.xlane.f32.xlu0 %v738
  %v740 = vpop.xlane.xlu0 %739
  %v741 = vrcp.pop %v719
  %v742 = vrcp.pop %v722
  %v743 = vrcp.pop %v725
  %v744 = vrcp.pop %v728
  %v745 = vrcp.pop %v731
  %v746 = vrcp.pop %v734
  %v747 = vrcp.pop %v737
  %v748 = vrcp.pop %v740
  %v749 = vmul.f32 %v702, %v741
  %v750 = vmul.f32 %v704, %v742
  %v751 = vmul.f32 %v706, %v743
  %v752 = vmul.f32 %v708, %v744
  %v753 = vmul.f32 %v710, %v745
  %v754 = vmul.f32 %v712, %v746
  %v755 = vmul.f32 %v714, %v747
  %v756 = vmul.f32 %v716, %v748
  %765 = vrot.lane.b32.xlu0 %v265, 120
  %v766 = vpop.permute.xlu0 %765
  %767 = vrot.lane.b32.xlu0 %v268, 120
  %v768 = vpop.permute.xlu0 %767
  %769 = vrot.lane.b32.xlu0 %v271, 120
  %v770 = vpop.permute.xlu0 %769
  %771 = vrot.lane.b32.xlu0 %v274, 120
  %v772 = vpop.permute.xlu0 %771
  %773 = vrot.lane.b32.xlu0 %v277, 120
  %v774 = vpop.permute.xlu0 %773
  %775 = vrot.lane.b32.xlu0 %v280, 120
  %v776 = vpop.permute.xlu0 %775
  %777 = vrot.lane.b32.xlu0 %v283, 120
  %v778 = vpop.permute.xlu0 %777
  %779 = vrot.lane.b32.xlu0 %v286, 120
  %v780 = vpop.permute.xlu0 %779
  %v790 = vsel %vm410, %v749, 0
  %v793 = vsel %vm410, %v750, 0
  %v796 = vsel %vm410, %v751, 0
  %v799 = vsel %vm410, %v752, 0
  %v802 = vsel %vm410, %v753, 0
  %v805 = vsel %vm410, %v754, 0
  %v808 = vsel %vm410, %v755, 0
  %v811 = vsel %vm410, %v756, 0
  %813 = vmatpush.msra.mxu0 0.0
  %814 = vmatpush.msra.mxu0 0.0
  %815 = vmatpush.msra.mxu0 0.0
  %816 = vmatpush.msra.mxu0 0.0
  %817 = vmatpush.msra.mxu0 0.0
  %818 = vmatpush.msra.mxu0 0.0
  %819 = vmatpush.msra.mxu0 0.0
  %820 = vmatpush.msra.mxu0 0.0
  %821 = vmatpush.msra.mxu0 %v780
  %822 = vmatpush.msra.mxu0 %v778
  %823 = vmatpush.msra.mxu0 %v776
  %824 = vmatpush.msra.mxu0 %v774
  %825 = vmatpush.msra.mxu0 %v772
  %826 = vmatpush.msra.mxu0 %v770
  %827 = vmatpush.msra.mxu0 %v768
  %828 = vmatpush.msra.mxu0 %v766
  %829 = vmatmul.f32.gmra.mxu0 %v790
  %v830 = vpop.f32.mrf.mxu0
  %v831 = vadd.f32 0.0, %v830
  %832 = vmatmul.f32.gmra.mxu0 %v793
  %v833 = vpop.f32.mrf.mxu0
  %v834 = vadd.f32 0.0, %v833
  %835 = vmatmul.f32.gmra.mxu0 %v796
  %v836 = vpop.f32.mrf.mxu0
  %v837 = vadd.f32 0.0, %v836
  %838 = vmatmul.f32.gmra.mxu0 %v799
  %v839 = vpop.f32.mrf.mxu0
  %v840 = vadd.f32 0.0, %v839
  %841 = vmatmul.f32.gmra.mxu0 %v802
  %v842 = vpop.f32.mrf.mxu0
  %v843 = vadd.f32 0.0, %v842
  %844 = vmatmul.f32.gmra.mxu0 %v805
  %v845 = vpop.f32.mrf.mxu0
  %v846 = vadd.f32 0.0, %v845
  %847 = vmatmul.f32.gmra.mxu0 %v808
  %v848 = vpop.f32.mrf.mxu0
  %v849 = vadd.f32 0.0, %v848
  %850 = vmatmul.f32.gmra.mxu0 %v811
  %v851 = vpop.f32.mrf.mxu0
  %v852 = vadd.f32 0.0, %v851
  %853 = vdwg.mxu0
  %v855 = vsel %vm336, %v831, 0
  %v858 = vsel %vm336, %v834, 0
  %v861 = vsel %vm336, %v837, 0
  %v864 = vsel %vm336, %v840, 0
  %v867 = vsel %vm336, %v843, 0
  %v870 = vsel %vm336, %v846, 0
  %v873 = vsel %vm336, %v849, 0
  %v876 = vsel %vm336, %v852, 0
  %878 = vmatpush.msra.mxu0 0.0
  %879 = vmatpush.msra.mxu0 0.0
  %880 = vmatpush.msra.mxu0 0.0
  %881 = vmatpush.msra.mxu0 0.0
  %882 = vmatpush.msra.mxu0 0.0
  %883 = vmatpush.msra.mxu0 0.0
  %884 = vmatpush.msra.mxu0 0.0
  %885 = vmatpush.msra.mxu0 0.0
  %886 = vmatpush.msra.mxu0 0.0
  %887 = vmatpush.msra.mxu0 0.0
  %888 = vmatpush.msra.mxu0 0.0
  %889 = vmatpush.msra.mxu0 0.0
  %890 = vmatpush.msra.mxu0 0.0
  %891 = vmatpush.msra.mxu0 0.0
  %892 = vmatpush.msra.mxu0 0.0
  %893 = vmatpush.msra.mxu0 %v50
  %894 = vmatmul.f32.gmra.mxu0 %v855
  %v895 = vpop.f32.mrf.mxu0
  %v896 = vadd.f32 0.0, %v895
  %897 = vmatmul.f32.gmra.mxu0 %v858
  %v898 = vpop.f32.mrf.mxu0
  %v899 = vadd.f32 0.0, %v898
  %900 = vmatmul.f32.gmra.mxu0 %v861
  %v901 = vpop.f32.mrf.mxu0
  %v902 = vadd.f32 0.0, %v901
  %903 = vmatmul.f32.gmra.mxu0 %v864
  %v904 = vpop.f32.mrf.mxu0
  %v905 = vadd.f32 0.0, %v904
  %906 = vmatmul.f32.gmra.mxu0 %v867
  %v907 = vpop.f32.mrf.mxu0
  %v908 = vadd.f32 0.0, %v907
  %909 = vmatmul.f32.gmra.mxu0 %v870
  %v910 = vpop.f32.mrf.mxu0
  %v911 = vadd.f32 0.0, %v910
  %912 = vmatmul.f32.gmra.mxu0 %v873
  %v913 = vpop.f32.mrf.mxu0
  %v914 = vadd.f32 0.0, %v913
  %915 = vmatmul.f32.gmra.mxu0 %v876
  %v916 = vpop.f32.mrf.mxu0
  %v917 = vadd.f32 0.0, %v916
  %918 = vdwg.mxu0
  %v920 = vsel %vm336, %v541, 0
  %v923 = vsel %vm336, %v544, 0
  %v926 = vsel %vm336, %v547, 0
  %v929 = vsel %vm336, %v550, 0
  %v932 = vsel %vm336, %v553, 0
  %v935 = vsel %vm336, %v556, 0
  %v938 = vsel %vm336, %v559, 0
  %v941 = vsel %vm336, %v562, 0
  %943 = vmatpush.msra.mxu0 0.0
  %944 = vmatpush.msra.mxu0 0.0
  %945 = vmatpush.msra.mxu0 0.0
  %946 = vmatpush.msra.mxu0 0.0
  %947 = vmatpush.msra.mxu0 0.0
  %948 = vmatpush.msra.mxu0 0.0
  %949 = vmatpush.msra.mxu0 0.0
  %950 = vmatpush.msra.mxu0 0.0
  %951 = vmatpush.msra.mxu0 0.0
  %952 = vmatpush.msra.mxu0 0.0
  %953 = vmatpush.msra.mxu0 0.0
  %954 = vmatpush.msra.mxu0 0.0
  %955 = vmatpush.msra.mxu0 0.0
  %956 = vmatpush.msra.mxu0 0.0
  %957 = vmatpush.msra.mxu0 0.0
  %958 = vmatpush.msra.mxu0 %v49
  %959 = vmatmul.f32.gmra.mxu0 %v920
  %v960 = vpop.f32.mrf.mxu0
  %v961 = vadd.f32 %v896, %v960
  %962 = vmatmul.f32.gmra.mxu0 %v923
  %v963 = vpop.f32.mrf.mxu0
  %v964 = vadd.f32 %v899, %v963
  %965 = vmatmul.f32.gmra.mxu0 %v926
  %v966 = vpop.f32.mrf.mxu0
  %v967 = vadd.f32 %v902, %v966
  %968 = vmatmul.f32.gmra.mxu0 %v929
  %v969 = vpop.f32.mrf.mxu0
  %v970 = vadd.f32 %v905, %v969
  %971 = vmatmul.f32.gmra.mxu0 %v932
  %v972 = vpop.f32.mrf.mxu0
  %v973 = vadd.f32 %v908, %v972
  %974 = vmatmul.f32.gmra.mxu0 %v935
  %v975 = vpop.f32.mrf.mxu0
  %v976 = vadd.f32 %v911, %v975
  %977 = vmatmul.f32.gmra.mxu0 %v938
  %v978 = vpop.f32.mrf.mxu0
  %v979 = vadd.f32 %v914, %v978
  %980 = vmatmul.f32.gmra.mxu0 %v941
  %v981 = vpop.f32.mrf.mxu0
  %v982 = vadd.f32 %v917, %v981
  %983 = vdwg.mxu0
  %984 = vrot.lane.b32.xlu0 %v151, 112
  %v985 = vpop.permute.xlu0 %984
  %986 = vrot.lane.b32.xlu0 %v154, 112
  %v987 = vpop.permute.xlu0 %986
  %988 = vrot.lane.b32.xlu0 %v157, 112
  %v989 = vpop.permute.xlu0 %988
  %990 = vrot.lane.b32.xlu0 %v160, 112
  %v991 = vpop.permute.xlu0 %990
  %992 = vrot.lane.b32.xlu0 %v163, 112
  %v993 = vpop.permute.xlu0 %992
  %994 = vrot.lane.b32.xlu0 %v166, 112
  %v995 = vpop.permute.xlu0 %994
  %996 = vrot.lane.b32.xlu0 %v169, 112
  %v997 = vpop.permute.xlu0 %996
  %998 = vrot.lane.b32.xlu0 %v172, 112
  %v999 = vpop.permute.xlu0 %998
  %1000 = vrot.lane.b32.xlu0 %v151, 80
  %v1001 = vpop.permute.xlu0 %1000
  %1002 = vrot.lane.b32.xlu0 %v154, 80
  %v1003 = vpop.permute.xlu0 %1002
  %1004 = vrot.lane.b32.xlu0 %v157, 80
  %v1005 = vpop.permute.xlu0 %1004
  %1006 = vrot.lane.b32.xlu0 %v160, 80
  %v1007 = vpop.permute.xlu0 %1006
  %1008 = vrot.lane.b32.xlu0 %v163, 80
  %v1009 = vpop.permute.xlu0 %1008
  %1010 = vrot.lane.b32.xlu0 %v166, 80
  %v1011 = vpop.permute.xlu0 %1010
  %1012 = vrot.lane.b32.xlu0 %v169, 80
  %v1013 = vpop.permute.xlu0 %1012
  %1014 = vrot.lane.b32.xlu0 %v172, 80
  %v1015 = vpop.permute.xlu0 %1014
  %v1016 = vsel %vm336, %v985, 0
  %v1018 = vsel %vm336, %v987, 0
  %v1020 = vsel %vm336, %v989, 0
  %v1022 = vsel %vm336, %v991, 0
  %v1024 = vsel %vm336, %v993, 0
  %v1026 = vsel %vm336, %v995, 0
  %v1028 = vsel %vm336, %v997, 0
  %v1030 = vsel %vm336, %v999, 0
  %v1032 = vsel %vm336, %v1001, 0
  %v1034 = vsel %vm336, %v1003, 0
  %v1036 = vsel %vm336, %v1005, 0
  %v1038 = vsel %vm336, %v1007, 0
  %v1040 = vsel %vm336, %v1009, 0
  %v1042 = vsel %vm336, %v1011, 0
  %v1044 = vsel %vm336, %v1013, 0
  %v1046 = vsel %vm336, %v1015, 0
  %1048 = vmatpush.xpose.msra.mxu0 0.0
  %1049 = vmatpush.xpose.msra.mxu0 0.0
  %1050 = vmatpush.xpose.msra.mxu0 0.0
  %1051 = vmatpush.xpose.msra.mxu0 0.0
  %1052 = vmatpush.xpose.msra.mxu0 0.0
  %1053 = vmatpush.xpose.msra.mxu0 0.0
  %1054 = vmatpush.xpose.msra.mxu0 0.0
  %1055 = vmatpush.xpose.msra.mxu0 0.0
  %1056 = vmatpush.xpose.msra.mxu0 %v1046
  %1057 = vmatpush.xpose.msra.mxu0 %v1044
  %1058 = vmatpush.xpose.msra.mxu0 %v1042
  %1059 = vmatpush.xpose.msra.mxu0 %v1040
  %1060 = vmatpush.xpose.msra.mxu0 %v1038
  %1061 = vmatpush.xpose.msra.mxu0 %v1036
  %1062 = vmatpush.xpose.msra.mxu0 %v1034
  %1063 = vmatpush.xpose.msra.mxu0 %v1032
  %1064 = vmatmul.f32.gmra.mxu0 %v1016
  %v1065 = vpop.f32.mrf.mxu0
  %v1066 = vadd.f32 0.0, %v1065
  %1067 = vmatmul.f32.gmra.mxu0 %v1018
  %v1068 = vpop.f32.mrf.mxu0
  %v1069 = vadd.f32 0.0, %v1068
  %1070 = vmatmul.f32.gmra.mxu0 %v1020
  %v1071 = vpop.f32.mrf.mxu0
  %v1072 = vadd.f32 0.0, %v1071
  %1073 = vmatmul.f32.gmra.mxu0 %v1022
  %v1074 = vpop.f32.mrf.mxu0
  %v1075 = vadd.f32 0.0, %v1074
  %1076 = vmatmul.f32.gmra.mxu0 %v1024
  %v1077 = vpop.f32.mrf.mxu0
  %v1078 = vadd.f32 0.0, %v1077
  %1079 = vmatmul.f32.gmra.mxu0 %v1026
  %v1080 = vpop.f32.mrf.mxu0
  %v1081 = vadd.f32 0.0, %v1080
  %1082 = vmatmul.f32.gmra.mxu0 %v1028
  %v1083 = vpop.f32.mrf.mxu0
  %v1084 = vadd.f32 0.0, %v1083
  %1085 = vmatmul.f32.gmra.mxu0 %v1030
  %v1086 = vpop.f32.mrf.mxu0
  %v1087 = vadd.f32 0.0, %v1086
  %1088 = vdwg.mxu0
  %v1089 = vsel %vm410, %v1066, -inf
  %1090 = vmax.xlane.f32.xlu0 %v1089
  %v1091 = vpop.xlane.xlu0 %1090
  %v1092 = vsel %vm410, %v1069, -inf
  %1093 = vmax.xlane.f32.xlu0 %v1092
  %v1094 = vpop.xlane.xlu0 %1093
  %v1095 = vsel %vm410, %v1072, -inf
  %1096 = vmax.xlane.f32.xlu0 %v1095
  %v1097 = vpop.xlane.xlu0 %1096
  %v1098 = vsel %vm410, %v1075, -inf
  %1099 = vmax.xlane.f32.xlu0 %v1098
  %v1100 = vpop.xlane.xlu0 %1099
  %v1101 = vsel %vm410, %v1078, -inf
  %1102 = vmax.xlane.f32.xlu0 %v1101
  %v1103 = vpop.xlane.xlu0 %1102
  %v1104 = vsel %vm410, %v1081, -inf
  %1105 = vmax.xlane.f32.xlu0 %v1104
  %v1106 = vpop.xlane.xlu0 %1105
  %v1107 = vsel %vm410, %v1084, -inf
  %1108 = vmax.xlane.f32.xlu0 %v1107
  %v1109 = vpop.xlane.xlu0 %1108
  %v1110 = vsel %vm410, %v1087, -inf
  %1111 = vmax.xlane.f32.xlu0 %v1110
  %v1112 = vpop.xlane.xlu0 %1111
  %v1113 = vsub.f32 %v1066, %v1091
  %v1114 = vsub.f32 %v1069, %v1094
  %v1115 = vsub.f32 %v1072, %v1097
  %v1116 = vsub.f32 %v1075, %v1100
  %v1117 = vsub.f32 %v1078, %v1103
  %v1118 = vsub.f32 %v1081, %v1106
  %v1119 = vsub.f32 %v1084, %v1109
  %v1120 = vsub.f32 %v1087, %v1112
  %v1121 = vmul.f32 %v1113, 1.442695
  %v1122 = vpow.pop %v1121
  %v1123 = vmul.f32 %v1114, 1.442695
  %v1124 = vpow.pop %v1123
  %v1125 = vmul.f32 %v1115, 1.442695
  %v1126 = vpow.pop %v1125
  %v1127 = vmul.f32 %v1116, 1.442695
  %v1128 = vpow.pop %v1127
  %v1129 = vmul.f32 %v1117, 1.442695
  %v1130 = vpow.pop %v1129
  %v1131 = vmul.f32 %v1118, 1.442695
  %v1132 = vpow.pop %v1131
  %v1133 = vmul.f32 %v1119, 1.442695
  %v1134 = vpow.pop %v1133
  %v1135 = vmul.f32 %v1120, 1.442695
  %v1136 = vpow.pop %v1135
  %v1137 = vsel %vm410, %v1122, 0.0
  %1138 = vadd.xlane.f32.xlu0 %v1137
  %v1139 = vpop.xlane.xlu0 %1138
  %v1140 = vsel %vm410, %v1124, 0.0
  %1141 = vadd.xlane.f32.xlu0 %v1140
  %v1142 = vpop.xlane.xlu0 %1141
  %v1143 = vsel %vm410, %v1126, 0.0
  %1144 = vadd.xlane.f32.xlu0 %v1143
  %v1145 = vpop.xlane.xlu0 %1144
  %v1146 = vsel %vm410, %v1128, 0.0
  %1147 = vadd.xlane.f32.xlu0 %v1146
  %v1148 = vpop.xlane.xlu0 %1147
  %v1149 = vsel %vm410, %v1130, 0.0
  %1150 = vadd.xlane.f32.xlu0 %v1149
  %v1151 = vpop.xlane.xlu0 %1150
  %v1152 = vsel %vm410, %v1132, 0.0
  %1153 = vadd.xlane.f32.xlu0 %v1152
  %v1154 = vpop.xlane.xlu0 %1153
  %v1155 = vsel %vm410, %v1134, 0.0
  %1156 = vadd.xlane.f32.xlu0 %v1155
  %v1157 = vpop.xlane.xlu0 %1156
  %v1158 = vsel %vm410, %v1136, 0.0
  %1159 = vadd.xlane.f32.xlu0 %v1158
  %v1160 = vpop.xlane.xlu0 %1159
  %v1161 = vrcp.pop %v1139
  %v1162 = vrcp.pop %v1142
  %v1163 = vrcp.pop %v1145
  %v1164 = vrcp.pop %v1148
  %v1165 = vrcp.pop %v1151
  %v1166 = vrcp.pop %v1154
  %v1167 = vrcp.pop %v1157
  %v1168 = vrcp.pop %v1160
  %v1169 = vmul.f32 %v1122, %v1161
  %v1170 = vmul.f32 %v1124, %v1162
  %v1171 = vmul.f32 %v1126, %v1163
  %v1172 = vmul.f32 %v1128, %v1164
  %v1173 = vmul.f32 %v1130, %v1165
  %v1174 = vmul.f32 %v1132, %v1166
  %v1175 = vmul.f32 %v1134, %v1167
  %v1176 = vmul.f32 %v1136, %v1168
  %1177 = vrot.lane.b32.xlu0 %v265, 112
  %v1178 = vpop.permute.xlu0 %1177
  %1179 = vrot.lane.b32.xlu0 %v268, 112
  %v1180 = vpop.permute.xlu0 %1179
  %1181 = vrot.lane.b32.xlu0 %v271, 112
  %v1182 = vpop.permute.xlu0 %1181
  %1183 = vrot.lane.b32.xlu0 %v274, 112
  %v1184 = vpop.permute.xlu0 %1183
  %1185 = vrot.lane.b32.xlu0 %v277, 112
  %v1186 = vpop.permute.xlu0 %1185
  %1187 = vrot.lane.b32.xlu0 %v280, 112
  %v1188 = vpop.permute.xlu0 %1187
  %1189 = vrot.lane.b32.xlu0 %v283, 112
  %v1190 = vpop.permute.xlu0 %1189
  %1191 = vrot.lane.b32.xlu0 %v286, 112
  %v1192 = vpop.permute.xlu0 %1191
  %v1202 = vsel %vm410, %v1169, 0
  %v1205 = vsel %vm410, %v1170, 0
  %v1208 = vsel %vm410, %v1171, 0
  %v1211 = vsel %vm410, %v1172, 0
  %v1214 = vsel %vm410, %v1173, 0
  %v1217 = vsel %vm410, %v1174, 0
  %v1220 = vsel %vm410, %v1175, 0
  %v1223 = vsel %vm410, %v1176, 0
  %1225 = vmatpush.msra.mxu0 0.0
  %1226 = vmatpush.msra.mxu0 0.0
  %1227 = vmatpush.msra.mxu0 0.0
  %1228 = vmatpush.msra.mxu0 0.0
  %1229 = vmatpush.msra.mxu0 0.0
  %1230 = vmatpush.msra.mxu0 0.0
  %1231 = vmatpush.msra.mxu0 0.0
  %1232 = vmatpush.msra.mxu0 0.0
  %1233 = vmatpush.msra.mxu0 %v1192
  %1234 = vmatpush.msra.mxu0 %v1190
  %1235 = vmatpush.msra.mxu0 %v1188
  %1236 = vmatpush.msra.mxu0 %v1186
  %1237 = vmatpush.msra.mxu0 %v1184
  %1238 = vmatpush.msra.mxu0 %v1182
  %1239 = vmatpush.msra.mxu0 %v1180
  %1240 = vmatpush.msra.mxu0 %v1178
  %1241 = vmatmul.f32.gmra.mxu0 %v1202
  %v1242 = vpop.f32.mrf.mxu0
  %v1243 = vadd.f32 0.0, %v1242
  %1244 = vmatmul.f32.gmra.mxu0 %v1205
  %v1245 = vpop.f32.mrf.mxu0
  %v1246 = vadd.f32 0.0, %v1245
  %1247 = vmatmul.f32.gmra.mxu0 %v1208
  %v1248 = vpop.f32.mrf.mxu0
  %v1249 = vadd.f32 0.0, %v1248
  %1250 = vmatmul.f32.gmra.mxu0 %v1211
  %v1251 = vpop.f32.mrf.mxu0
  %v1252 = vadd.f32 0.0, %v1251
  %1253 = vmatmul.f32.gmra.mxu0 %v1214
  %v1254 = vpop.f32.mrf.mxu0
  %v1255 = vadd.f32 0.0, %v1254
  %1256 = vmatmul.f32.gmra.mxu0 %v1217
  %v1257 = vpop.f32.mrf.mxu0
  %v1258 = vadd.f32 0.0, %v1257
  %1259 = vmatmul.f32.gmra.mxu0 %v1220
  %v1260 = vpop.f32.mrf.mxu0
  %v1261 = vadd.f32 0.0, %v1260
  %1262 = vmatmul.f32.gmra.mxu0 %v1223
  %v1263 = vpop.f32.mrf.mxu0
  %v1264 = vadd.f32 0.0, %v1263
  %1265 = vdwg.mxu0
  %v1267 = vsel %vm336, %v1243, 0
  %v1270 = vsel %vm336, %v1246, 0
  %v1273 = vsel %vm336, %v1249, 0
  %v1276 = vsel %vm336, %v1252, 0
  %v1279 = vsel %vm336, %v1255, 0
  %v1282 = vsel %vm336, %v1258, 0
  %v1285 = vsel %vm336, %v1261, 0
  %v1288 = vsel %vm336, %v1264, 0
  %1290 = vmatpush.msra.mxu0 0.0
  %1291 = vmatpush.msra.mxu0 0.0
  %1292 = vmatpush.msra.mxu0 0.0
  %1293 = vmatpush.msra.mxu0 0.0
  %1294 = vmatpush.msra.mxu0 0.0
  %1295 = vmatpush.msra.mxu0 0.0
  %1296 = vmatpush.msra.mxu0 0.0
  %1297 = vmatpush.msra.mxu0 0.0
  %1298 = vmatpush.msra.mxu0 0.0
  %1299 = vmatpush.msra.mxu0 0.0
  %1300 = vmatpush.msra.mxu0 0.0
  %1301 = vmatpush.msra.mxu0 0.0
  %1302 = vmatpush.msra.mxu0 0.0
  %1303 = vmatpush.msra.mxu0 0.0
  %1304 = vmatpush.msra.mxu0 0.0
  %1305 = vmatpush.msra.mxu0 %v51
  %1306 = vmatmul.f32.gmra.mxu0 %v1267
  %v1307 = vpop.f32.mrf.mxu0
  %v1308 = vadd.f32 0.0, %v1307
  %1309 = vmatmul.f32.gmra.mxu0 %v1270
  %v1310 = vpop.f32.mrf.mxu0
  %v1311 = vadd.f32 0.0, %v1310
  %1312 = vmatmul.f32.gmra.mxu0 %v1273
  %v1313 = vpop.f32.mrf.mxu0
  %v1314 = vadd.f32 0.0, %v1313
  %1315 = vmatmul.f32.gmra.mxu0 %v1276
  %v1316 = vpop.f32.mrf.mxu0
  %v1317 = vadd.f32 0.0, %v1316
  %1318 = vmatmul.f32.gmra.mxu0 %v1279
  %v1319 = vpop.f32.mrf.mxu0
  %v1320 = vadd.f32 0.0, %v1319
  %1321 = vmatmul.f32.gmra.mxu0 %v1282
  %v1322 = vpop.f32.mrf.mxu0
  %v1323 = vadd.f32 0.0, %v1322
  %1324 = vmatmul.f32.gmra.mxu0 %v1285
  %v1325 = vpop.f32.mrf.mxu0
  %v1326 = vadd.f32 0.0, %v1325
  %1327 = vmatmul.f32.gmra.mxu0 %v1288
  %v1328 = vpop.f32.mrf.mxu0
  %v1329 = vadd.f32 0.0, %v1328
  %1330 = vdwg.mxu0
  %v1331 = vadd.f32 %v961, %v1308
  %v1332 = vadd.f32 %v964, %v1311
  %v1333 = vadd.f32 %v967, %v1314
  %v1334 = vadd.f32 %v970, %v1317
  %v1335 = vadd.f32 %v973, %v1320
  %v1336 = vadd.f32 %v976, %v1323
  %v1337 = vadd.f32 %v979, %v1326
  %v1338 = vadd.f32 %v982, %v1329
  %1339 = vrot.lane.b32.xlu0 %v151, 104
  %v1340 = vpop.permute.xlu0 %1339
  %1341 = vrot.lane.b32.xlu0 %v154, 104
  %v1342 = vpop.permute.xlu0 %1341
  %1343 = vrot.lane.b32.xlu0 %v157, 104
  %v1344 = vpop.permute.xlu0 %1343
  %1345 = vrot.lane.b32.xlu0 %v160, 104
  %v1346 = vpop.permute.xlu0 %1345
  %1347 = vrot.lane.b32.xlu0 %v163, 104
  %v1348 = vpop.permute.xlu0 %1347
  %1349 = vrot.lane.b32.xlu0 %v166, 104
  %v1350 = vpop.permute.xlu0 %1349
  %1351 = vrot.lane.b32.xlu0 %v169, 104
  %v1352 = vpop.permute.xlu0 %1351
  %1353 = vrot.lane.b32.xlu0 %v172, 104
  %v1354 = vpop.permute.xlu0 %1353
  %1355 = vrot.lane.b32.xlu0 %v151, 72
  %v1356 = vpop.permute.xlu0 %1355
  %1357 = vrot.lane.b32.xlu0 %v154, 72
  %v1358 = vpop.permute.xlu0 %1357
  %1359 = vrot.lane.b32.xlu0 %v157, 72
  %v1360 = vpop.permute.xlu0 %1359
  %1361 = vrot.lane.b32.xlu0 %v160, 72
  %v1362 = vpop.permute.xlu0 %1361
  %1363 = vrot.lane.b32.xlu0 %v163, 72
  %v1364 = vpop.permute.xlu0 %1363
  %1365 = vrot.lane.b32.xlu0 %v166, 72
  %v1366 = vpop.permute.xlu0 %1365
  %1367 = vrot.lane.b32.xlu0 %v169, 72
  %v1368 = vpop.permute.xlu0 %1367
  %1369 = vrot.lane.b32.xlu0 %v172, 72
  %v1370 = vpop.permute.xlu0 %1369
  %v1371 = vsel %vm336, %v1340, 0
  %v1373 = vsel %vm336, %v1342, 0
  %v1375 = vsel %vm336, %v1344, 0
  %v1377 = vsel %vm336, %v1346, 0
  %v1379 = vsel %vm336, %v1348, 0
  %v1381 = vsel %vm336, %v1350, 0
  %v1383 = vsel %vm336, %v1352, 0
  %v1385 = vsel %vm336, %v1354, 0
  %v1387 = vsel %vm336, %v1356, 0
  %v1389 = vsel %vm336, %v1358, 0
  %v1391 = vsel %vm336, %v1360, 0
  %v1393 = vsel %vm336, %v1362, 0
  %v1395 = vsel %vm336, %v1364, 0
  %v1397 = vsel %vm336, %v1366, 0
  %v1399 = vsel %vm336, %v1368, 0
  %v1401 = vsel %vm336, %v1370, 0
  %1403 = vmatpush.xpose.msra.mxu0 0.0
  %1404 = vmatpush.xpose.msra.mxu0 0.0
  %1405 = vmatpush.xpose.msra.mxu0 0.0
  %1406 = vmatpush.xpose.msra.mxu0 0.0
  %1407 = vmatpush.xpose.msra.mxu0 0.0
  %1408 = vmatpush.xpose.msra.mxu0 0.0
  %1409 = vmatpush.xpose.msra.mxu0 0.0
  %1410 = vmatpush.xpose.msra.mxu0 0.0
  %1411 = vmatpush.xpose.msra.mxu0 %v1401
  %1412 = vmatpush.xpose.msra.mxu0 %v1399
  %1413 = vmatpush.xpose.msra.mxu0 %v1397
  %1414 = vmatpush.xpose.msra.mxu0 %v1395
  %1415 = vmatpush.xpose.msra.mxu0 %v1393
  %1416 = vmatpush.xpose.msra.mxu0 %v1391
  %1417 = vmatpush.xpose.msra.mxu0 %v1389
  %1418 = vmatpush.xpose.msra.mxu0 %v1387
  %1419 = vmatmul.f32.gmra.mxu0 %v1371
  %v1420 = vpop.f32.mrf.mxu0
  %v1421 = vadd.f32 0.0, %v1420
  %1422 = vmatmul.f32.gmra.mxu0 %v1373
  %v1423 = vpop.f32.mrf.mxu0
  %v1424 = vadd.f32 0.0, %v1423
  %1425 = vmatmul.f32.gmra.mxu0 %v1375
  %v1426 = vpop.f32.mrf.mxu0
  %v1427 = vadd.f32 0.0, %v1426
  %1428 = vmatmul.f32.gmra.mxu0 %v1377
  %v1429 = vpop.f32.mrf.mxu0
  %v1430 = vadd.f32 0.0, %v1429
  %1431 = vmatmul.f32.gmra.mxu0 %v1379
  %v1432 = vpop.f32.mrf.mxu0
  %v1433 = vadd.f32 0.0, %v1432
  %1434 = vmatmul.f32.gmra.mxu0 %v1381
  %v1435 = vpop.f32.mrf.mxu0
  %v1436 = vadd.f32 0.0, %v1435
  %1437 = vmatmul.f32.gmra.mxu0 %v1383
  %v1438 = vpop.f32.mrf.mxu0
  %v1439 = vadd.f32 0.0, %v1438
  %1440 = vmatmul.f32.gmra.mxu0 %v1385
  %v1441 = vpop.f32.mrf.mxu0
  %v1442 = vadd.f32 0.0, %v1441
  %1443 = vdwg.mxu0
  %v1444 = vsel %vm410, %v1421, -inf
  %1445 = vmax.xlane.f32.xlu0 %v1444
  %v1446 = vpop.xlane.xlu0 %1445
  %v1447 = vsel %vm410, %v1424, -inf
  %1448 = vmax.xlane.f32.xlu0 %v1447
  %v1449 = vpop.xlane.xlu0 %1448
  %v1450 = vsel %vm410, %v1427, -inf
  %1451 = vmax.xlane.f32.xlu0 %v1450
  %v1452 = vpop.xlane.xlu0 %1451
  %v1453 = vsel %vm410, %v1430, -inf
  %1454 = vmax.xlane.f32.xlu0 %v1453
  %v1455 = vpop.xlane.xlu0 %1454
  %v1456 = vsel %vm410, %v1433, -inf
  %1457 = vmax.xlane.f32.xlu0 %v1456
  %v1458 = vpop.xlane.xlu0 %1457
  %v1459 = vsel %vm410, %v1436, -inf
  %1460 = vmax.xlane.f32.xlu0 %v1459
  %v1461 = vpop.xlane.xlu0 %1460
  %v1462 = vsel %vm410, %v1439, -inf
  %1463 = vmax.xlane.f32.xlu0 %v1462
  %v1464 = vpop.xlane.xlu0 %1463
  %v1465 = vsel %vm410, %v1442, -inf
  %1466 = vmax.xlane.f32.xlu0 %v1465
  %v1467 = vpop.xlane.xlu0 %1466
  %v1468 = vsub.f32 %v1421, %v1446
  %v1469 = vsub.f32 %v1424, %v1449
  %v1470 = vsub.f32 %v1427, %v1452
  %v1471 = vsub.f32 %v1430, %v1455
  %v1472 = vsub.f32 %v1433, %v1458
  %v1473 = vsub.f32 %v1436, %v1461
  %v1474 = vsub.f32 %v1439, %v1464
  %v1475 = vsub.f32 %v1442, %v1467
  %v1476 = vmul.f32 %v1468, 1.442695
  %v1477 = vpow.pop %v1476
  %v1478 = vmul.f32 %v1469, 1.442695
  %v1479 = vpow.pop %v1478
  %v1480 = vmul.f32 %v1470, 1.442695
  %v1481 = vpow.pop %v1480
  %v1482 = vmul.f32 %v1471, 1.442695
  %v1483 = vpow.pop %v1482
  %v1484 = vmul.f32 %v1472, 1.442695
  %v1485 = vpow.pop %v1484
  %v1486 = vmul.f32 %v1473, 1.442695
  %v1487 = vpow.pop %v1486
  %v1488 = vmul.f32 %v1474, 1.442695
  %v1489 = vpow.pop %v1488
  %v1490 = vmul.f32 %v1475, 1.442695
  %v1491 = vpow.pop %v1490
  %v1492 = vsel %vm410, %v1477, 0.0
  %1493 = vadd.xlane.f32.xlu0 %v1492
  %v1494 = vpop.xlane.xlu0 %1493
  %v1495 = vsel %vm410, %v1479, 0.0
  %1496 = vadd.xlane.f32.xlu0 %v1495
  %v1497 = vpop.xlane.xlu0 %1496
  %v1498 = vsel %vm410, %v1481, 0.0
  %1499 = vadd.xlane.f32.xlu0 %v1498
  %v1500 = vpop.xlane.xlu0 %1499
  %v1501 = vsel %vm410, %v1483, 0.0
  %1502 = vadd.xlane.f32.xlu0 %v1501
  %v1503 = vpop.xlane.xlu0 %1502
  %v1504 = vsel %vm410, %v1485, 0.0
  %1505 = vadd.xlane.f32.xlu0 %v1504
  %v1506 = vpop.xlane.xlu0 %1505
  %v1507 = vsel %vm410, %v1487, 0.0
  %1508 = vadd.xlane.f32.xlu0 %v1507
  %v1509 = vpop.xlane.xlu0 %1508
  %v1510 = vsel %vm410, %v1489, 0.0
  %1511 = vadd.xlane.f32.xlu0 %v1510
  %v1512 = vpop.xlane.xlu0 %1511
  %v1513 = vsel %vm410, %v1491, 0.0
  %1514 = vadd.xlane.f32.xlu0 %v1513
  %v1515 = vpop.xlane.xlu0 %1514
  %v1516 = vrcp.pop %v1494
  %v1517 = vrcp.pop %v1497
  %v1518 = vrcp.pop %v1500
  %v1519 = vrcp.pop %v1503
  %v1520 = vrcp.pop %v1506
  %v1521 = vrcp.pop %v1509
  %v1522 = vrcp.pop %v1512
  %v1523 = vrcp.pop %v1515
  %v1524 = vmul.f32 %v1477, %v1516
  %v1525 = vmul.f32 %v1479, %v1517
  %v1526 = vmul.f32 %v1481, %v1518
  %v1527 = vmul.f32 %v1483, %v1519
  %v1528 = vmul.f32 %v1485, %v1520
  %v1529 = vmul.f32 %v1487, %v1521
  %v1530 = vmul.f32 %v1489, %v1522
  %v1531 = vmul.f32 %v1491, %v1523
  %1532 = vrot.lane.b32.xlu0 %v265, 104
  %v1533 = vpop.permute.xlu0 %1532
  %1534 = vrot.lane.b32.xlu0 %v268, 104
  %v1535 = vpop.permute.xlu0 %1534
  %1536 = vrot.lane.b32.xlu0 %v271, 104
  %v1537 = vpop.permute.xlu0 %1536
  %1538 = vrot.lane.b32.xlu0 %v274, 104
  %v1539 = vpop.permute.xlu0 %1538
  %1540 = vrot.lane.b32.xlu0 %v277, 104
  %v1541 = vpop.permute.xlu0 %1540
  %1542 = vrot.lane.b32.xlu0 %v280, 104
  %v1543 = vpop.permute.xlu0 %1542
  %1544 = vrot.lane.b32.xlu0 %v283, 104
  %v1545 = vpop.permute.xlu0 %1544
  %1546 = vrot.lane.b32.xlu0 %v286, 104
  %v1547 = vpop.permute.xlu0 %1546
  %v1557 = vsel %vm410, %v1524, 0
  %v1560 = vsel %vm410, %v1525, 0
  %v1563 = vsel %vm410, %v1526, 0
  %v1566 = vsel %vm410, %v1527, 0
  %v1569 = vsel %vm410, %v1528, 0
  %v1572 = vsel %vm410, %v1529, 0
  %v1575 = vsel %vm410, %v1530, 0
  %v1578 = vsel %vm410, %v1531, 0
  %1580 = vmatpush.msra.mxu0 0.0
  %1581 = vmatpush.msra.mxu0 0.0
  %1582 = vmatpush.msra.mxu0 0.0
  %1583 = vmatpush.msra.mxu0 0.0
  %1584 = vmatpush.msra.mxu0 0.0
  %1585 = vmatpush.msra.mxu0 0.0
  %1586 = vmatpush.msra.mxu0 0.0
  %1587 = vmatpush.msra.mxu0 0.0
  %1588 = vmatpush.msra.mxu0 %v1547
  %1589 = vmatpush.msra.mxu0 %v1545
  %1590 = vmatpush.msra.mxu0 %v1543
  %1591 = vmatpush.msra.mxu0 %v1541
  %1592 = vmatpush.msra.mxu0 %v1539
  %1593 = vmatpush.msra.mxu0 %v1537
  %1594 = vmatpush.msra.mxu0 %v1535
  %1595 = vmatpush.msra.mxu0 %v1533
  %1596 = vmatmul.f32.gmra.mxu0 %v1557
  %v1597 = vpop.f32.mrf.mxu0
  %v1598 = vadd.f32 0.0, %v1597
  %1599 = vmatmul.f32.gmra.mxu0 %v1560
  %v1600 = vpop.f32.mrf.mxu0
  %v1601 = vadd.f32 0.0, %v1600
  %1602 = vmatmul.f32.gmra.mxu0 %v1563
  %v1603 = vpop.f32.mrf.mxu0
  %v1604 = vadd.f32 0.0, %v1603
  %1605 = vmatmul.f32.gmra.mxu0 %v1566
  %v1606 = vpop.f32.mrf.mxu0
  %v1607 = vadd.f32 0.0, %v1606
  %1608 = vmatmul.f32.gmra.mxu0 %v1569
  %v1609 = vpop.f32.mrf.mxu0
  %v1610 = vadd.f32 0.0, %v1609
  %1611 = vmatmul.f32.gmra.mxu0 %v1572
  %v1612 = vpop.f32.mrf.mxu0
  %v1613 = vadd.f32 0.0, %v1612
  %1614 = vmatmul.f32.gmra.mxu0 %v1575
  %v1615 = vpop.f32.mrf.mxu0
  %v1616 = vadd.f32 0.0, %v1615
  %1617 = vmatmul.f32.gmra.mxu0 %v1578
  %v1618 = vpop.f32.mrf.mxu0
  %v1619 = vadd.f32 0.0, %v1618
  %1620 = vdwg.mxu0
  %v1622 = vsel %vm336, %v1598, 0
  %v1625 = vsel %vm336, %v1601, 0
  %v1628 = vsel %vm336, %v1604, 0
  %v1631 = vsel %vm336, %v1607, 0
  %v1634 = vsel %vm336, %v1610, 0
  %v1637 = vsel %vm336, %v1613, 0
  %v1640 = vsel %vm336, %v1616, 0
  %v1643 = vsel %vm336, %v1619, 0
  %1645 = vmatpush.msra.mxu0 0.0
  %1646 = vmatpush.msra.mxu0 0.0
  %1647 = vmatpush.msra.mxu0 0.0
  %1648 = vmatpush.msra.mxu0 0.0
  %1649 = vmatpush.msra.mxu0 0.0
  %1650 = vmatpush.msra.mxu0 0.0
  %1651 = vmatpush.msra.mxu0 0.0
  %1652 = vmatpush.msra.mxu0 0.0
  %1653 = vmatpush.msra.mxu0 0.0
  %1654 = vmatpush.msra.mxu0 0.0
  %1655 = vmatpush.msra.mxu0 0.0
  %1656 = vmatpush.msra.mxu0 0.0
  %1657 = vmatpush.msra.mxu0 0.0
  %1658 = vmatpush.msra.mxu0 0.0
  %1659 = vmatpush.msra.mxu0 0.0
  %1660 = vmatpush.msra.mxu0 %v52
  %1661 = vmatmul.f32.gmra.mxu0 %v1622
  %v1662 = vpop.f32.mrf.mxu0
  %v1663 = vadd.f32 0.0, %v1662
  %1664 = vmatmul.f32.gmra.mxu0 %v1625
  %v1665 = vpop.f32.mrf.mxu0
  %v1666 = vadd.f32 0.0, %v1665
  %1667 = vmatmul.f32.gmra.mxu0 %v1628
  %v1668 = vpop.f32.mrf.mxu0
  %v1669 = vadd.f32 0.0, %v1668
  %1670 = vmatmul.f32.gmra.mxu0 %v1631
  %v1671 = vpop.f32.mrf.mxu0
  %v1672 = vadd.f32 0.0, %v1671
  %1673 = vmatmul.f32.gmra.mxu0 %v1634
  %v1674 = vpop.f32.mrf.mxu0
  %v1675 = vadd.f32 0.0, %v1674
  %1676 = vmatmul.f32.gmra.mxu0 %v1637
  %v1677 = vpop.f32.mrf.mxu0
  %v1678 = vadd.f32 0.0, %v1677
  %1679 = vmatmul.f32.gmra.mxu0 %v1640
  %v1680 = vpop.f32.mrf.mxu0
  %v1681 = vadd.f32 0.0, %v1680
  %1682 = vmatmul.f32.gmra.mxu0 %v1643
  %v1683 = vpop.f32.mrf.mxu0
  %v1684 = vadd.f32 0.0, %v1683
  %1685 = vdwg.mxu0
  %v1686 = vadd.f32 %v1331, %v1663
  %v1687 = vadd.f32 %v1332, %v1666
  %v1688 = vadd.f32 %v1333, %v1669
  %v1689 = vadd.f32 %v1334, %v1672
  %v1690 = vadd.f32 %v1335, %v1675
  %v1691 = vadd.f32 %v1336, %v1678
  %v1692 = vadd.f32 %v1337, %v1681
  %v1693 = vadd.f32 %v1338, %v1684
  %1702 = vrot.lane.b32.xlu0 %v175, 96
  %v1703 = vpop.permute.xlu0 %1702
  %1704 = vrot.lane.b32.xlu0 %v178, 96
  %v1705 = vpop.permute.xlu0 %1704
  %1706 = vrot.lane.b32.xlu0 %v181, 96
  %v1707 = vpop.permute.xlu0 %1706
  %1708 = vrot.lane.b32.xlu0 %v184, 96
  %v1709 = vpop.permute.xlu0 %1708
  %1710 = vrot.lane.b32.xlu0 %v187, 96
  %v1711 = vpop.permute.xlu0 %1710
  %1712 = vrot.lane.b32.xlu0 %v190, 96
  %v1713 = vpop.permute.xlu0 %1712
  %1714 = vrot.lane.b32.xlu0 %v193, 96
  %v1715 = vpop.permute.xlu0 %1714
  %1716 = vrot.lane.b32.xlu0 %v196, 96
  %v1717 = vpop.permute.xlu0 %1716
  %v1718 = vsel %vm336, %v175, 0
  %v1720 = vsel %vm336, %v178, 0
  %v1722 = vsel %vm336, %v181, 0
  %v1724 = vsel %vm336, %v184, 0
  %v1726 = vsel %vm336, %v187, 0
  %v1728 = vsel %vm336, %v190, 0
  %v1730 = vsel %vm336, %v193, 0
  %v1732 = vsel %vm336, %v196, 0
  %v1734 = vsel %vm336, %v1703, 0
  %v1736 = vsel %vm336, %v1705, 0
  %v1738 = vsel %vm336, %v1707, 0
  %v1740 = vsel %vm336, %v1709, 0
  %v1742 = vsel %vm336, %v1711, 0
  %v1744 = vsel %vm336, %v1713, 0
  %v1746 = vsel %vm336, %v1715, 0
  %v1748 = vsel %vm336, %v1717, 0
  %1750 = vmatpush.xpose.msra.mxu0 0.0
  %1751 = vmatpush.xpose.msra.mxu0 0.0
  %1752 = vmatpush.xpose.msra.mxu0 0.0
  %1753 = vmatpush.xpose.msra.mxu0 0.0
  %1754 = vmatpush.xpose.msra.mxu0 0.0
  %1755 = vmatpush.xpose.msra.mxu0 0.0
  %1756 = vmatpush.xpose.msra.mxu0 0.0
  %1757 = vmatpush.xpose.msra.mxu0 0.0
  %1758 = vmatpush.xpose.msra.mxu0 %v1748
  %1759 = vmatpush.xpose.msra.mxu0 %v1746
  %1760 = vmatpush.xpose.msra.mxu0 %v1744
  %1761 = vmatpush.xpose.msra.mxu0 %v1742
  %1762 = vmatpush.xpose.msra.mxu0 %v1740
  %1763 = vmatpush.xpose.msra.mxu0 %v1738
  %1764 = vmatpush.xpose.msra.mxu0 %v1736
  %1765 = vmatpush.xpose.msra.mxu0 %v1734
  %1766 = vmatmul.f32.gmra.mxu0 %v1718
  %v1767 = vpop.f32.mrf.mxu0
  %v1768 = vadd.f32 0.0, %v1767
  %1769 = vmatmul.f32.gmra.mxu0 %v1720
  %v1770 = vpop.f32.mrf.mxu0
  %v1771 = vadd.f32 0.0, %v1770
  %1772 = vmatmul.f32.gmra.mxu0 %v1722
  %v1773 = vpop.f32.mrf.mxu0
  %v1774 = vadd.f32 0.0, %v1773
  %1775 = vmatmul.f32.gmra.mxu0 %v1724
  %v1776 = vpop.f32.mrf.mxu0
  %v1777 = vadd.f32 0.0, %v1776
  %1778 = vmatmul.f32.gmra.mxu0 %v1726
  %v1779 = vpop.f32.mrf.mxu0
  %v1780 = vadd.f32 0.0, %v1779
  %1781 = vmatmul.f32.gmra.mxu0 %v1728
  %v1782 = vpop.f32.mrf.mxu0
  %v1783 = vadd.f32 0.0, %v1782
  %1784 = vmatmul.f32.gmra.mxu0 %v1730
  %v1785 = vpop.f32.mrf.mxu0
  %v1786 = vadd.f32 0.0, %v1785
  %1787 = vmatmul.f32.gmra.mxu0 %v1732
  %v1788 = vpop.f32.mrf.mxu0
  %v1789 = vadd.f32 0.0, %v1788
  %1790 = vdwg.mxu0
  %v1791 = vsel %vm410, %v1768, -inf
  %1792 = vmax.xlane.f32.xlu0 %v1791
  %v1793 = vpop.xlane.xlu0 %1792
  %v1794 = vsel %vm410, %v1771, -inf
  %1795 = vmax.xlane.f32.xlu0 %v1794
  %v1796 = vpop.xlane.xlu0 %1795
  %v1797 = vsel %vm410, %v1774, -inf
  %1798 = vmax.xlane.f32.xlu0 %v1797
  %v1799 = vpop.xlane.xlu0 %1798
  %v1800 = vsel %vm410, %v1777, -inf
  %1801 = vmax.xlane.f32.xlu0 %v1800
  %v1802 = vpop.xlane.xlu0 %1801
  %v1803 = vsel %vm410, %v1780, -inf
  %1804 = vmax.xlane.f32.xlu0 %v1803
  %v1805 = vpop.xlane.xlu0 %1804
  %v1806 = vsel %vm410, %v1783, -inf
  %1807 = vmax.xlane.f32.xlu0 %v1806
  %v1808 = vpop.xlane.xlu0 %1807
  %v1809 = vsel %vm410, %v1786, -inf
  %1810 = vmax.xlane.f32.xlu0 %v1809
  %v1811 = vpop.xlane.xlu0 %1810
  %v1812 = vsel %vm410, %v1789, -inf
  %1813 = vmax.xlane.f32.xlu0 %v1812
  %v1814 = vpop.xlane.xlu0 %1813
  %v1815 = vsub.f32 %v1768, %v1793
  %v1816 = vsub.f32 %v1771, %v1796
  %v1817 = vsub.f32 %v1774, %v1799
  %v1818 = vsub.f32 %v1777, %v1802
  %v1819 = vsub.f32 %v1780, %v1805
  %v1820 = vsub.f32 %v1783, %v1808
  %v1821 = vsub.f32 %v1786, %v1811
  %v1822 = vsub.f32 %v1789, %v1814
  %v1823 = vmul.f32 %v1815, 1.442695
  %v1824 = vpow.pop %v1823
  %v1825 = vmul.f32 %v1816, 1.442695
  %v1826 = vpow.pop %v1825
  %v1827 = vmul.f32 %v1817, 1.442695
  %v1828 = vpow.pop %v1827
  %v1829 = vmul.f32 %v1818, 1.442695
  %v1830 = vpow.pop %v1829
  %v1831 = vmul.f32 %v1819, 1.442695
  %v1832 = vpow.pop %v1831
  %v1833 = vmul.f32 %v1820, 1.442695
  %v1834 = vpow.pop %v1833
  %v1835 = vmul.f32 %v1821, 1.442695
  %v1836 = vpow.pop %v1835
  %v1837 = vmul.f32 %v1822, 1.442695
  %v1838 = vpow.pop %v1837
  %v1839 = vsel %vm410, %v1824, 0.0
  %1840 = vadd.xlane.f32.xlu0 %v1839
  %v1841 = vpop.xlane.xlu0 %1840
  %v1842 = vsel %vm410, %v1826, 0.0
  %1843 = vadd.xlane.f32.xlu0 %v1842
  %v1844 = vpop.xlane.xlu0 %1843
  %v1845 = vsel %vm410, %v1828, 0.0
  %1846 = vadd.xlane.f32.xlu0 %v1845
  %v1847 = vpop.xlane.xlu0 %1846
  %v1848 = vsel %vm410, %v1830, 0.0
  %1849 = vadd.xlane.f32.xlu0 %v1848
  %v1850 = vpop.xlane.xlu0 %1849
  %v1851 = vsel %vm410, %v1832, 0.0
  %1852 = vadd.xlane.f32.xlu0 %v1851
  %v1853 = vpop.xlane.xlu0 %1852
  %v1854 = vsel %vm410, %v1834, 0.0
  %1855 = vadd.xlane.f32.xlu0 %v1854
  %v1856 = vpop.xlane.xlu0 %1855
  %v1857 = vsel %vm410, %v1836, 0.0
  %1858 = vadd.xlane.f32.xlu0 %v1857
  %v1859 = vpop.xlane.xlu0 %1858
  %v1860 = vsel %vm410, %v1838, 0.0
  %1861 = vadd.xlane.f32.xlu0 %v1860
  %v1862 = vpop.xlane.xlu0 %1861
  %v1863 = vrcp.pop %v1841
  %v1864 = vrcp.pop %v1844
  %v1865 = vrcp.pop %v1847
  %v1866 = vrcp.pop %v1850
  %v1867 = vrcp.pop %v1853
  %v1868 = vrcp.pop %v1856
  %v1869 = vrcp.pop %v1859
  %v1870 = vrcp.pop %v1862
  %v1871 = vmul.f32 %v1824, %v1863
  %v1872 = vmul.f32 %v1826, %v1864
  %v1873 = vmul.f32 %v1828, %v1865
  %v1874 = vmul.f32 %v1830, %v1866
  %v1875 = vmul.f32 %v1832, %v1867
  %v1876 = vmul.f32 %v1834, %v1868
  %v1877 = vmul.f32 %v1836, %v1869
  %v1878 = vmul.f32 %v1838, %v1870
  %v1880 = vsel %vm410, %v1871, 0
  %v1883 = vsel %vm410, %v1872, 0
  %v1886 = vsel %vm410, %v1873, 0
  %v1889 = vsel %vm410, %v1874, 0
  %v1892 = vsel %vm410, %v1875, 0
  %v1895 = vsel %vm410, %v1876, 0
  %v1898 = vsel %vm410, %v1877, 0
  %v1901 = vsel %vm410, %v1878, 0
  %1903 = vmatpush.msra.mxu0 0.0
  %1904 = vmatpush.msra.mxu0 0.0
  %1905 = vmatpush.msra.mxu0 0.0
  %1906 = vmatpush.msra.mxu0 0.0
  %1907 = vmatpush.msra.mxu0 0.0
  %1908 = vmatpush.msra.mxu0 0.0
  %1909 = vmatpush.msra.mxu0 0.0
  %1910 = vmatpush.msra.mxu0 0.0
  %1911 = vmatpush.msra.mxu0 %v310
  %1912 = vmatpush.msra.mxu0 %v307
  %1913 = vmatpush.msra.mxu0 %v304
  %1914 = vmatpush.msra.mxu0 %v301
  %1915 = vmatpush.msra.mxu0 %v298
  %1916 = vmatpush.msra.mxu0 %v295
  %1917 = vmatpush.msra.mxu0 %v292
  %1918 = vmatpush.msra.mxu0 %v289
  %1919 = vmatmul.f32.gmra.mxu0 %v1880
  %v1920 = vpop.f32.mrf.mxu0
  %v1921 = vadd.f32 0.0, %v1920
  %1922 = vmatmul.f32.gmra.mxu0 %v1883
  %v1923 = vpop.f32.mrf.mxu0
  %v1924 = vadd.f32 0.0, %v1923
  %1925 = vmatmul.f32.gmra.mxu0 %v1886
  %v1926 = vpop.f32.mrf.mxu0
  %v1927 = vadd.f32 0.0, %v1926
  %1928 = vmatmul.f32.gmra.mxu0 %v1889
  %v1929 = vpop.f32.mrf.mxu0
  %v1930 = vadd.f32 0.0, %v1929
  %1931 = vmatmul.f32.gmra.mxu0 %v1892
  %v1932 = vpop.f32.mrf.mxu0
  %v1933 = vadd.f32 0.0, %v1932
  %1934 = vmatmul.f32.gmra.mxu0 %v1895
  %v1935 = vpop.f32.mrf.mxu0
  %v1936 = vadd.f32 0.0, %v1935
  %1937 = vmatmul.f32.gmra.mxu0 %v1898
  %v1938 = vpop.f32.mrf.mxu0
  %v1939 = vadd.f32 0.0, %v1938
  %1940 = vmatmul.f32.gmra.mxu0 %v1901
  %v1941 = vpop.f32.mrf.mxu0
  %v1942 = vadd.f32 0.0, %v1941
  %1943 = vdwg.mxu0
  %1944 = vrot.lane.b32.xlu0 %v175, 120
  %v1945 = vpop.permute.xlu0 %1944
  %1946 = vrot.lane.b32.xlu0 %v178, 120
  %v1947 = vpop.permute.xlu0 %1946
  %1948 = vrot.lane.b32.xlu0 %v181, 120
  %v1949 = vpop.permute.xlu0 %1948
  %1950 = vrot.lane.b32.xlu0 %v184, 120
  %v1951 = vpop.permute.xlu0 %1950
  %1952 = vrot.lane.b32.xlu0 %v187, 120
  %v1953 = vpop.permute.xlu0 %1952
  %1954 = vrot.lane.b32.xlu0 %v190, 120
  %v1955 = vpop.permute.xlu0 %1954
  %1956 = vrot.lane.b32.xlu0 %v193, 120
  %v1957 = vpop.permute.xlu0 %1956
  %1958 = vrot.lane.b32.xlu0 %v196, 120
  %v1959 = vpop.permute.xlu0 %1958
  %1960 = vrot.lane.b32.xlu0 %v175, 88
  %v1961 = vpop.permute.xlu0 %1960
  %1962 = vrot.lane.b32.xlu0 %v178, 88
  %v1963 = vpop.permute.xlu0 %1962
  %1964 = vrot.lane.b32.xlu0 %v181, 88
  %v1965 = vpop.permute.xlu0 %1964
  %1966 = vrot.lane.b32.xlu0 %v184, 88
  %v1967 = vpop.permute.xlu0 %1966
  %1968 = vrot.lane.b32.xlu0 %v187, 88
  %v1969 = vpop.permute.xlu0 %1968
  %1970 = vrot.lane.b32.xlu0 %v190, 88
  %v1971 = vpop.permute.xlu0 %1970
  %1972 = vrot.lane.b32.xlu0 %v193, 88
  %v1973 = vpop.permute.xlu0 %1972
  %1974 = vrot.lane.b32.xlu0 %v196, 88
  %v1975 = vpop.permute.xlu0 %1974
  %v1976 = vsel %vm336, %v1945, 0
  %v1978 = vsel %vm336, %v1947, 0
  %v1980 = vsel %vm336, %v1949, 0
  %v1982 = vsel %vm336, %v1951, 0
  %v1984 = vsel %vm336, %v1953, 0
  %v1986 = vsel %vm336, %v1955, 0
  %v1988 = vsel %vm336, %v1957, 0
  %v1990 = vsel %vm336, %v1959, 0
  %v1992 = vsel %vm336, %v1961, 0
  %v1994 = vsel %vm336, %v1963, 0
  %v1996 = vsel %vm336, %v1965, 0
  %v1998 = vsel %vm336, %v1967, 0
  %v2000 = vsel %vm336, %v1969, 0
  %v2002 = vsel %vm336, %v1971, 0
  %v2004 = vsel %vm336, %v1973, 0
  %v2006 = vsel %vm336, %v1975, 0
  %2008 = vmatpush.xpose.msra.mxu0 0.0
  %2009 = vmatpush.xpose.msra.mxu0 0.0
  %2010 = vmatpush.xpose.msra.mxu0 0.0
  %2011 = vmatpush.xpose.msra.mxu0 0.0
  %2012 = vmatpush.xpose.msra.mxu0 0.0
  %2013 = vmatpush.xpose.msra.mxu0 0.0
  %2014 = vmatpush.xpose.msra.mxu0 0.0
  %2015 = vmatpush.xpose.msra.mxu0 0.0
  %2016 = vmatpush.xpose.msra.mxu0 %v2006
  %2017 = vmatpush.xpose.msra.mxu0 %v2004
  %2018 = vmatpush.xpose.msra.mxu0 %v2002
  %2019 = vmatpush.xpose.msra.mxu0 %v2000
  %2020 = vmatpush.xpose.msra.mxu0 %v1998
  %2021 = vmatpush.xpose.msra.mxu0 %v1996
  %2022 = vmatpush.xpose.msra.mxu0 %v1994
  %2023 = vmatpush.xpose.msra.mxu0 %v1992
  %2024 = vmatmul.f32.gmra.mxu0 %v1976
  %v2025 = vpop.f32.mrf.mxu0
  %v2026 = vadd.f32 0.0, %v2025
  %2027 = vmatmul.f32.gmra.mxu0 %v1978
  %v2028 = vpop.f32.mrf.mxu0
  %v2029 = vadd.f32 0.0, %v2028
  %2030 = vmatmul.f32.gmra.mxu0 %v1980
  %v2031 = vpop.f32.mrf.mxu0
  %v2032 = vadd.f32 0.0, %v2031
  %2033 = vmatmul.f32.gmra.mxu0 %v1982
  %v2034 = vpop.f32.mrf.mxu0
  %v2035 = vadd.f32 0.0, %v2034
  %2036 = vmatmul.f32.gmra.mxu0 %v1984
  %v2037 = vpop.f32.mrf.mxu0
  %v2038 = vadd.f32 0.0, %v2037
  %2039 = vmatmul.f32.gmra.mxu0 %v1986
  %v2040 = vpop.f32.mrf.mxu0
  %v2041 = vadd.f32 0.0, %v2040
  %2042 = vmatmul.f32.gmra.mxu0 %v1988
  %v2043 = vpop.f32.mrf.mxu0
  %v2044 = vadd.f32 0.0, %v2043
  %2045 = vmatmul.f32.gmra.mxu0 %v1990
  %v2046 = vpop.f32.mrf.mxu0
  %v2047 = vadd.f32 0.0, %v2046
  %2048 = vdwg.mxu0
  %v2049 = vsel %vm410, %v2026, -inf
  %2050 = vmax.xlane.f32.xlu0 %v2049
  %v2051 = vpop.xlane.xlu0 %2050
  %v2052 = vsel %vm410, %v2029, -inf
  %2053 = vmax.xlane.f32.xlu0 %v2052
  %v2054 = vpop.xlane.xlu0 %2053
  %v2055 = vsel %vm410, %v2032, -inf
  %2056 = vmax.xlane.f32.xlu0 %v2055
  %v2057 = vpop.xlane.xlu0 %2056
  %v2058 = vsel %vm410, %v2035, -inf
  %2059 = vmax.xlane.f32.xlu0 %v2058
  %v2060 = vpop.xlane.xlu0 %2059
  %v2061 = vsel %vm410, %v2038, -inf
  %2062 = vmax.xlane.f32.xlu0 %v2061
  %v2063 = vpop.xlane.xlu0 %2062
  %v2064 = vsel %vm410, %v2041, -inf
  %2065 = vmax.xlane.f32.xlu0 %v2064
  %v2066 = vpop.xlane.xlu0 %2065
  %v2067 = vsel %vm410, %v2044, -inf
  %2068 = vmax.xlane.f32.xlu0 %v2067
  %v2069 = vpop.xlane.xlu0 %2068
  %v2070 = vsel %vm410, %v2047, -inf
  %2071 = vmax.xlane.f32.xlu0 %v2070
  %v2072 = vpop.xlane.xlu0 %2071
  %v2073 = vsub.f32 %v2026, %v2051
  %v2074 = vsub.f32 %v2029, %v2054
  %v2075 = vsub.f32 %v2032, %v2057
  %v2076 = vsub.f32 %v2035, %v2060
  %v2077 = vsub.f32 %v2038, %v2063
  %v2078 = vsub.f32 %v2041, %v2066
  %v2079 = vsub.f32 %v2044, %v2069
  %v2080 = vsub.f32 %v2047, %v2072
  %v2081 = vmul.f32 %v2073, 1.442695
  %v2082 = vpow.pop %v2081
  %v2083 = vmul.f32 %v2074, 1.442695
  %v2084 = vpow.pop %v2083
  %v2085 = vmul.f32 %v2075, 1.442695
  %v2086 = vpow.pop %v2085
  %v2087 = vmul.f32 %v2076, 1.442695
  %v2088 = vpow.pop %v2087
  %v2089 = vmul.f32 %v2077, 1.442695
  %v2090 = vpow.pop %v2089
  %v2091 = vmul.f32 %v2078, 1.442695
  %v2092 = vpow.pop %v2091
  %v2093 = vmul.f32 %v2079, 1.442695
  %v2094 = vpow.pop %v2093
  %v2095 = vmul.f32 %v2080, 1.442695
  %v2096 = vpow.pop %v2095
  %v2097 = vsel %vm410, %v2082, 0.0
  %2098 = vadd.xlane.f32.xlu0 %v2097
  %v2099 = vpop.xlane.xlu0 %2098
  %v2100 = vsel %vm410, %v2084, 0.0
  %2101 = vadd.xlane.f32.xlu0 %v2100
  %v2102 = vpop.xlane.xlu0 %2101
  %v2103 = vsel %vm410, %v2086, 0.0
  %2104 = vadd.xlane.f32.xlu0 %v2103
  %v2105 = vpop.xlane.xlu0 %2104
  %v2106 = vsel %vm410, %v2088, 0.0
  %2107 = vadd.xlane.f32.xlu0 %v2106
  %v2108 = vpop.xlane.xlu0 %2107
  %v2109 = vsel %vm410, %v2090, 0.0
  %2110 = vadd.xlane.f32.xlu0 %v2109
  %v2111 = vpop.xlane.xlu0 %2110
  %v2112 = vsel %vm410, %v2092, 0.0
  %2113 = vadd.xlane.f32.xlu0 %v2112
  %v2114 = vpop.xlane.xlu0 %2113
  %v2115 = vsel %vm410, %v2094, 0.0
  %2116 = vadd.xlane.f32.xlu0 %v2115
  %v2117 = vpop.xlane.xlu0 %2116
  %v2118 = vsel %vm410, %v2096, 0.0
  %2119 = vadd.xlane.f32.xlu0 %v2118
  %v2120 = vpop.xlane.xlu0 %2119
  %v2121 = vrcp.pop %v2099
  %v2122 = vrcp.pop %v2102
  %v2123 = vrcp.pop %v2105
  %v2124 = vrcp.pop %v2108
  %v2125 = vrcp.pop %v2111
  %v2126 = vrcp.pop %v2114
  %v2127 = vrcp.pop %v2117
  %v2128 = vrcp.pop %v2120
  %v2129 = vmul.f32 %v2082, %v2121
  %v2130 = vmul.f32 %v2084, %v2122
  %v2131 = vmul.f32 %v2086, %v2123
  %v2132 = vmul.f32 %v2088, %v2124
  %v2133 = vmul.f32 %v2090, %v2125
  %v2134 = vmul.f32 %v2092, %v2126
  %v2135 = vmul.f32 %v2094, %v2127
  %v2136 = vmul.f32 %v2096, %v2128
  %2145 = vrot.lane.b32.xlu0 %v289, 120
  %v2146 = vpop.permute.xlu0 %2145
  %2147 = vrot.lane.b32.xlu0 %v292, 120
  %v2148 = vpop.permute.xlu0 %2147
  %2149 = vrot.lane.b32.xlu0 %v295, 120
  %v2150 = vpop.permute.xlu0 %2149
  %2151 = vrot.lane.b32.xlu0 %v298, 120
  %v2152 = vpop.permute.xlu0 %2151
  %2153 = vrot.lane.b32.xlu0 %v301, 120
  %v2154 = vpop.permute.xlu0 %2153
  %2155 = vrot.lane.b32.xlu0 %v304, 120
  %v2156 = vpop.permute.xlu0 %2155
  %2157 = vrot.lane.b32.xlu0 %v307, 120
  %v2158 = vpop.permute.xlu0 %2157
  %2159 = vrot.lane.b32.xlu0 %v310, 120
  %v2160 = vpop.permute.xlu0 %2159
  %v2170 = vsel %vm410, %v2129, 0
  %v2173 = vsel %vm410, %v2130, 0
  %v2176 = vsel %vm410, %v2131, 0
  %v2179 = vsel %vm410, %v2132, 0
  %v2182 = vsel %vm410, %v2133, 0
  %v2185 = vsel %vm410, %v2134, 0
  %v2188 = vsel %vm410, %v2135, 0
  %v2191 = vsel %vm410, %v2136, 0
  %2193 = vmatpush.msra.mxu0 0.0
  %2194 = vmatpush.msra.mxu0 0.0
  %2195 = vmatpush.msra.mxu0 0.0
  %2196 = vmatpush.msra.mxu0 0.0
  %2197 = vmatpush.msra.mxu0 0.0
  %2198 = vmatpush.msra.mxu0 0.0
  %2199 = vmatpush.msra.mxu0 0.0
  %2200 = vmatpush.msra.mxu0 0.0
  %2201 = vmatpush.msra.mxu0 %v2160
  %2202 = vmatpush.msra.mxu0 %v2158
  %2203 = vmatpush.msra.mxu0 %v2156
  %2204 = vmatpush.msra.mxu0 %v2154
  %2205 = vmatpush.msra.mxu0 %v2152
  %2206 = vmatpush.msra.mxu0 %v2150
  %2207 = vmatpush.msra.mxu0 %v2148
  %2208 = vmatpush.msra.mxu0 %v2146
  %2209 = vmatmul.f32.gmra.mxu0 %v2170
  %v2210 = vpop.f32.mrf.mxu0
  %v2211 = vadd.f32 0.0, %v2210
  %2212 = vmatmul.f32.gmra.mxu0 %v2173
  %v2213 = vpop.f32.mrf.mxu0
  %v2214 = vadd.f32 0.0, %v2213
  %2215 = vmatmul.f32.gmra.mxu0 %v2176
  %v2216 = vpop.f32.mrf.mxu0
  %v2217 = vadd.f32 0.0, %v2216
  %2218 = vmatmul.f32.gmra.mxu0 %v2179
  %v2219 = vpop.f32.mrf.mxu0
  %v2220 = vadd.f32 0.0, %v2219
  %2221 = vmatmul.f32.gmra.mxu0 %v2182
  %v2222 = vpop.f32.mrf.mxu0
  %v2223 = vadd.f32 0.0, %v2222
  %2224 = vmatmul.f32.gmra.mxu0 %v2185
  %v2225 = vpop.f32.mrf.mxu0
  %v2226 = vadd.f32 0.0, %v2225
  %2227 = vmatmul.f32.gmra.mxu0 %v2188
  %v2228 = vpop.f32.mrf.mxu0
  %v2229 = vadd.f32 0.0, %v2228
  %2230 = vmatmul.f32.gmra.mxu0 %v2191
  %v2231 = vpop.f32.mrf.mxu0
  %v2232 = vadd.f32 0.0, %v2231
  %2233 = vdwg.mxu0
  %v2235 = vsel %vm336, %v2211, 0
  %v2238 = vsel %vm336, %v2214, 0
  %v2241 = vsel %vm336, %v2217, 0
  %v2244 = vsel %vm336, %v2220, 0
  %v2247 = vsel %vm336, %v2223, 0
  %v2250 = vsel %vm336, %v2226, 0
  %v2253 = vsel %vm336, %v2229, 0
  %v2256 = vsel %vm336, %v2232, 0
  %2258 = vmatpush.msra.mxu0 0.0
  %2259 = vmatpush.msra.mxu0 0.0
  %2260 = vmatpush.msra.mxu0 0.0
  %2261 = vmatpush.msra.mxu0 0.0
  %2262 = vmatpush.msra.mxu0 0.0
  %2263 = vmatpush.msra.mxu0 0.0
  %2264 = vmatpush.msra.mxu0 0.0
  %2265 = vmatpush.msra.mxu0 0.0
  %2266 = vmatpush.msra.mxu0 0.0
  %2267 = vmatpush.msra.mxu0 0.0
  %2268 = vmatpush.msra.mxu0 0.0
  %2269 = vmatpush.msra.mxu0 0.0
  %2270 = vmatpush.msra.mxu0 0.0
  %2271 = vmatpush.msra.mxu0 0.0
  %2272 = vmatpush.msra.mxu0 0.0
  %2273 = vmatpush.msra.mxu0 %v50
  %2274 = vmatmul.f32.gmra.mxu0 %v2235
  %v2275 = vpop.f32.mrf.mxu0
  %v2276 = vadd.f32 0.0, %v2275
  %2277 = vmatmul.f32.gmra.mxu0 %v2238
  %v2278 = vpop.f32.mrf.mxu0
  %v2279 = vadd.f32 0.0, %v2278
  %2280 = vmatmul.f32.gmra.mxu0 %v2241
  %v2281 = vpop.f32.mrf.mxu0
  %v2282 = vadd.f32 0.0, %v2281
  %2283 = vmatmul.f32.gmra.mxu0 %v2244
  %v2284 = vpop.f32.mrf.mxu0
  %v2285 = vadd.f32 0.0, %v2284
  %2286 = vmatmul.f32.gmra.mxu0 %v2247
  %v2287 = vpop.f32.mrf.mxu0
  %v2288 = vadd.f32 0.0, %v2287
  %2289 = vmatmul.f32.gmra.mxu0 %v2250
  %v2290 = vpop.f32.mrf.mxu0
  %v2291 = vadd.f32 0.0, %v2290
  %2292 = vmatmul.f32.gmra.mxu0 %v2253
  %v2293 = vpop.f32.mrf.mxu0
  %v2294 = vadd.f32 0.0, %v2293
  %2295 = vmatmul.f32.gmra.mxu0 %v2256
  %v2296 = vpop.f32.mrf.mxu0
  %v2297 = vadd.f32 0.0, %v2296
  %2298 = vdwg.mxu0
  %v2300 = vsel %vm336, %v1921, 0
  %v2303 = vsel %vm336, %v1924, 0
  %v2306 = vsel %vm336, %v1927, 0
  %v2309 = vsel %vm336, %v1930, 0
  %v2312 = vsel %vm336, %v1933, 0
  %v2315 = vsel %vm336, %v1936, 0
  %v2318 = vsel %vm336, %v1939, 0
  %v2321 = vsel %vm336, %v1942, 0
  %2323 = vmatpush.msra.mxu0 0.0
  %2324 = vmatpush.msra.mxu0 0.0
  %2325 = vmatpush.msra.mxu0 0.0
  %2326 = vmatpush.msra.mxu0 0.0
  %2327 = vmatpush.msra.mxu0 0.0
  %2328 = vmatpush.msra.mxu0 0.0
  %2329 = vmatpush.msra.mxu0 0.0
  %2330 = vmatpush.msra.mxu0 0.0
  %2331 = vmatpush.msra.mxu0 0.0
  %2332 = vmatpush.msra.mxu0 0.0
  %2333 = vmatpush.msra.mxu0 0.0
  %2334 = vmatpush.msra.mxu0 0.0
  %2335 = vmatpush.msra.mxu0 0.0
  %2336 = vmatpush.msra.mxu0 0.0
  %2337 = vmatpush.msra.mxu0 0.0
  %2338 = vmatpush.msra.mxu0 %v49
  %2339 = vmatmul.f32.gmra.mxu0 %v2300
  %v2340 = vpop.f32.mrf.mxu0
  %v2341 = vadd.f32 %v2276, %v2340
  %2342 = vmatmul.f32.gmra.mxu0 %v2303
  %v2343 = vpop.f32.mrf.mxu0
  %v2344 = vadd.f32 %v2279, %v2343
  %2345 = vmatmul.f32.gmra.mxu0 %v2306
  %v2346 = vpop.f32.mrf.mxu0
  %v2347 = vadd.f32 %v2282, %v2346
  %2348 = vmatmul.f32.gmra.mxu0 %v2309
  %v2349 = vpop.f32.mrf.mxu0
  %v2350 = vadd.f32 %v2285, %v2349
  %2351 = vmatmul.f32.gmra.mxu0 %v2312
  %v2352 = vpop.f32.mrf.mxu0
  %v2353 = vadd.f32 %v2288, %v2352
  %2354 = vmatmul.f32.gmra.mxu0 %v2315
  %v2355 = vpop.f32.mrf.mxu0
  %v2356 = vadd.f32 %v2291, %v2355
  %2357 = vmatmul.f32.gmra.mxu0 %v2318
  %v2358 = vpop.f32.mrf.mxu0
  %v2359 = vadd.f32 %v2294, %v2358
  %2360 = vmatmul.f32.gmra.mxu0 %v2321
  %v2361 = vpop.f32.mrf.mxu0
  %v2362 = vadd.f32 %v2297, %v2361
  %2363 = vdwg.mxu0
  %2364 = vrot.lane.b32.xlu0 %v175, 112
  %v2365 = vpop.permute.xlu0 %2364
  %2366 = vrot.lane.b32.xlu0 %v178, 112
  %v2367 = vpop.permute.xlu0 %2366
  %2368 = vrot.lane.b32.xlu0 %v181, 112
  %v2369 = vpop.permute.xlu0 %2368
  %2370 = vrot.lane.b32.xlu0 %v184, 112
  %v2371 = vpop.permute.xlu0 %2370
  %2372 = vrot.lane.b32.xlu0 %v187, 112
  %v2373 = vpop.permute.xlu0 %2372
  %2374 = vrot.lane.b32.xlu0 %v190, 112
  %v2375 = vpop.permute.xlu0 %2374
  %2376 = vrot.lane.b32.xlu0 %v193, 112
  %v2377 = vpop.permute.xlu0 %2376
  %2378 = vrot.lane.b32.xlu0 %v196, 112
  %v2379 = vpop.permute.xlu0 %2378
  %2380 = vrot.lane.b32.xlu0 %v175, 80
  %v2381 = vpop.permute.xlu0 %2380
  %2382 = vrot.lane.b32.xlu0 %v178, 80
  %v2383 = vpop.permute.xlu0 %2382
  %2384 = vrot.lane.b32.xlu0 %v181, 80
  %v2385 = vpop.permute.xlu0 %2384
  %2386 = vrot.lane.b32.xlu0 %v184, 80
  %v2387 = vpop.permute.xlu0 %2386
  %2388 = vrot.lane.b32.xlu0 %v187, 80
  %v2389 = vpop.permute.xlu0 %2388
  %2390 = vrot.lane.b32.xlu0 %v190, 80
  %v2391 = vpop.permute.xlu0 %2390
  %2392 = vrot.lane.b32.xlu0 %v193, 80
  %v2393 = vpop.permute.xlu0 %2392
  %2394 = vrot.lane.b32.xlu0 %v196, 80
  %v2395 = vpop.permute.xlu0 %2394
  %v2396 = vsel %vm336, %v2365, 0
  %v2398 = vsel %vm336, %v2367, 0
  %v2400 = vsel %vm336, %v2369, 0
  %v2402 = vsel %vm336, %v2371, 0
  %v2404 = vsel %vm336, %v2373, 0
  %v2406 = vsel %vm336, %v2375, 0
  %v2408 = vsel %vm336, %v2377, 0
  %v2410 = vsel %vm336, %v2379, 0
  %v2412 = vsel %vm336, %v2381, 0
  %v2414 = vsel %vm336, %v2383, 0
  %v2416 = vsel %vm336, %v2385, 0
  %v2418 = vsel %vm336, %v2387, 0
  %v2420 = vsel %vm336, %v2389, 0
  %v2422 = vsel %vm336, %v2391, 0
  %v2424 = vsel %vm336, %v2393, 0
  %v2426 = vsel %vm336, %v2395, 0
  %2428 = vmatpush.xpose.msra.mxu0 0.0
  %2429 = vmatpush.xpose.msra.mxu0 0.0
  %2430 = vmatpush.xpose.msra.mxu0 0.0
  %2431 = vmatpush.xpose.msra.mxu0 0.0
  %2432 = vmatpush.xpose.msra.mxu0 0.0
  %2433 = vmatpush.xpose.msra.mxu0 0.0
  %2434 = vmatpush.xpose.msra.mxu0 0.0
  %2435 = vmatpush.xpose.msra.mxu0 0.0
  %2436 = vmatpush.xpose.msra.mxu0 %v2426
  %2437 = vmatpush.xpose.msra.mxu0 %v2424
  %2438 = vmatpush.xpose.msra.mxu0 %v2422
  %2439 = vmatpush.xpose.msra.mxu0 %v2420
  %2440 = vmatpush.xpose.msra.mxu0 %v2418
  %2441 = vmatpush.xpose.msra.mxu0 %v2416
  %2442 = vmatpush.xpose.msra.mxu0 %v2414
  %2443 = vmatpush.xpose.msra.mxu0 %v2412
  %2444 = vmatmul.f32.gmra.mxu0 %v2396
  %v2445 = vpop.f32.mrf.mxu0
  %v2446 = vadd.f32 0.0, %v2445
  %2447 = vmatmul.f32.gmra.mxu0 %v2398
  %v2448 = vpop.f32.mrf.mxu0
  %v2449 = vadd.f32 0.0, %v2448
  %2450 = vmatmul.f32.gmra.mxu0 %v2400
  %v2451 = vpop.f32.mrf.mxu0
  %v2452 = vadd.f32 0.0, %v2451
  %2453 = vmatmul.f32.gmra.mxu0 %v2402
  %v2454 = vpop.f32.mrf.mxu0
  %v2455 = vadd.f32 0.0, %v2454
  %2456 = vmatmul.f32.gmra.mxu0 %v2404
  %v2457 = vpop.f32.mrf.mxu0
  %v2458 = vadd.f32 0.0, %v2457
  %2459 = vmatmul.f32.gmra.mxu0 %v2406
  %v2460 = vpop.f32.mrf.mxu0
  %v2461 = vadd.f32 0.0, %v2460
  %2462 = vmatmul.f32.gmra.mxu0 %v2408
  %v2463 = vpop.f32.mrf.mxu0
  %v2464 = vadd.f32 0.0, %v2463
  %2465 = vmatmul.f32.gmra.mxu0 %v2410
  %v2466 = vpop.f32.mrf.mxu0
  %v2467 = vadd.f32 0.0, %v2466
  %2468 = vdwg.mxu0
  %v2469 = vsel %vm410, %v2446, -inf
  %2470 = vmax.xlane.f32.xlu0 %v2469
  %v2471 = vpop.xlane.xlu0 %2470
  %v2472 = vsel %vm410, %v2449, -inf
  %2473 = vmax.xlane.f32.xlu0 %v2472
  %v2474 = vpop.xlane.xlu0 %2473
  %v2475 = vsel %vm410, %v2452, -inf
  %2476 = vmax.xlane.f32.xlu0 %v2475
  %v2477 = vpop.xlane.xlu0 %2476
  %v2478 = vsel %vm410, %v2455, -inf
  %2479 = vmax.xlane.f32.xlu0 %v2478
  %v2480 = vpop.xlane.xlu0 %2479
  %v2481 = vsel %vm410, %v2458, -inf
  %2482 = vmax.xlane.f32.xlu0 %v2481
  %v2483 = vpop.xlane.xlu0 %2482
  %v2484 = vsel %vm410, %v2461, -inf
  %2485 = vmax.xlane.f32.xlu0 %v2484
  %v2486 = vpop.xlane.xlu0 %2485
  %v2487 = vsel %vm410, %v2464, -inf
  %2488 = vmax.xlane.f32.xlu0 %v2487
  %v2489 = vpop.xlane.xlu0 %2488
  %v2490 = vsel %vm410, %v2467, -inf
  %2491 = vmax.xlane.f32.xlu0 %v2490
  %v2492 = vpop.xlane.xlu0 %2491
  %v2493 = vsub.f32 %v2446, %v2471
  %v2494 = vsub.f32 %v2449, %v2474
  %v2495 = vsub.f32 %v2452, %v2477
  %v2496 = vsub.f32 %v2455, %v2480
  %v2497 = vsub.f32 %v2458, %v2483
  %v2498 = vsub.f32 %v2461, %v2486
  %v2499 = vsub.f32 %v2464, %v2489
  %v2500 = vsub.f32 %v2467, %v2492
  %v2501 = vmul.f32 %v2493, 1.442695
  %v2502 = vpow.pop %v2501
  %v2503 = vmul.f32 %v2494, 1.442695
  %v2504 = vpow.pop %v2503
  %v2505 = vmul.f32 %v2495, 1.442695
  %v2506 = vpow.pop %v2505
  %v2507 = vmul.f32 %v2496, 1.442695
  %v2508 = vpow.pop %v2507
  %v2509 = vmul.f32 %v2497, 1.442695
  %v2510 = vpow.pop %v2509
  %v2511 = vmul.f32 %v2498, 1.442695
  %v2512 = vpow.pop %v2511
  %v2513 = vmul.f32 %v2499, 1.442695
  %v2514 = vpow.pop %v2513
  %v2515 = vmul.f32 %v2500, 1.442695
  %v2516 = vpow.pop %v2515
  %v2517 = vsel %vm410, %v2502, 0.0
  %2518 = vadd.xlane.f32.xlu0 %v2517
  %v2519 = vpop.xlane.xlu0 %2518
  %v2520 = vsel %vm410, %v2504, 0.0
  %2521 = vadd.xlane.f32.xlu0 %v2520
  %v2522 = vpop.xlane.xlu0 %2521
  %v2523 = vsel %vm410, %v2506, 0.0
  %2524 = vadd.xlane.f32.xlu0 %v2523
  %v2525 = vpop.xlane.xlu0 %2524
  %v2526 = vsel %vm410, %v2508, 0.0
  %2527 = vadd.xlane.f32.xlu0 %v2526
  %v2528 = vpop.xlane.xlu0 %2527
  %v2529 = vsel %vm410, %v2510, 0.0
  %2530 = vadd.xlane.f32.xlu0 %v2529
  %v2531 = vpop.xlane.xlu0 %2530
  %v2532 = vsel %vm410, %v2512, 0.0
  %2533 = vadd.xlane.f32.xlu0 %v2532
  %v2534 = vpop.xlane.xlu0 %2533
  %v2535 = vsel %vm410, %v2514, 0.0
  %2536 = vadd.xlane.f32.xlu0 %v2535
  %v2537 = vpop.xlane.xlu0 %2536
  %v2538 = vsel %vm410, %v2516, 0.0
  %2539 = vadd.xlane.f32.xlu0 %v2538
  %v2540 = vpop.xlane.xlu0 %2539
  %v2541 = vrcp.pop %v2519
  %v2542 = vrcp.pop %v2522
  %v2543 = vrcp.pop %v2525
  %v2544 = vrcp.pop %v2528
  %v2545 = vrcp.pop %v2531
  %v2546 = vrcp.pop %v2534
  %v2547 = vrcp.pop %v2537
  %v2548 = vrcp.pop %v2540
  %v2549 = vmul.f32 %v2502, %v2541
  %v2550 = vmul.f32 %v2504, %v2542
  %v2551 = vmul.f32 %v2506, %v2543
  %v2552 = vmul.f32 %v2508, %v2544
  %v2553 = vmul.f32 %v2510, %v2545
  %v2554 = vmul.f32 %v2512, %v2546
  %v2555 = vmul.f32 %v2514, %v2547
  %v2556 = vmul.f32 %v2516, %v2548
  %2557 = vrot.lane.b32.xlu0 %v289, 112
  %v2558 = vpop.permute.xlu0 %2557
  %2559 = vrot.lane.b32.xlu0 %v292, 112
  %v2560 = vpop.permute.xlu0 %2559
  %2561 = vrot.lane.b32.xlu0 %v295, 112
  %v2562 = vpop.permute.xlu0 %2561
  %2563 = vrot.lane.b32.xlu0 %v298, 112
  %v2564 = vpop.permute.xlu0 %2563
  %2565 = vrot.lane.b32.xlu0 %v301, 112
  %v2566 = vpop.permute.xlu0 %2565
  %2567 = vrot.lane.b32.xlu0 %v304, 112
  %v2568 = vpop.permute.xlu0 %2567
  %2569 = vrot.lane.b32.xlu0 %v307, 112
  %v2570 = vpop.permute.xlu0 %2569
  %2571 = vrot.lane.b32.xlu0 %v310, 112
  %v2572 = vpop.permute.xlu0 %2571
  %v2582 = vsel %vm410, %v2549, 0
  %v2585 = vsel %vm410, %v2550, 0
  %v2588 = vsel %vm410, %v2551, 0
  %v2591 = vsel %vm410, %v2552, 0
  %v2594 = vsel %vm410, %v2553, 0
  %v2597 = vsel %vm410, %v2554, 0
  %v2600 = vsel %vm410, %v2555, 0
  %v2603 = vsel %vm410, %v2556, 0
  %2605 = vmatpush.msra.mxu0 0.0
  %2606 = vmatpush.msra.mxu0 0.0
  %2607 = vmatpush.msra.mxu0 0.0
  %2608 = vmatpush.msra.mxu0 0.0
  %2609 = vmatpush.msra.mxu0 0.0
  %2610 = vmatpush.msra.mxu0 0.0
  %2611 = vmatpush.msra.mxu0 0.0
  %2612 = vmatpush.msra.mxu0 0.0
  %2613 = vmatpush.msra.mxu0 %v2572
  %2614 = vmatpush.msra.mxu0 %v2570
  %2615 = vmatpush.msra.mxu0 %v2568
  %2616 = vmatpush.msra.mxu0 %v2566
  %2617 = vmatpush.msra.mxu0 %v2564
  %2618 = vmatpush.msra.mxu0 %v2562
  %2619 = vmatpush.msra.mxu0 %v2560
  %2620 = vmatpush.msra.mxu0 %v2558
  %2621 = vmatmul.f32.gmra.mxu0 %v2582
  %v2622 = vpop.f32.mrf.mxu0
  %v2623 = vadd.f32 0.0, %v2622
  %2624 = vmatmul.f32.gmra.mxu0 %v2585
  %v2625 = vpop.f32.mrf.mxu0
  %v2626 = vadd.f32 0.0, %v2625
  %2627 = vmatmul.f32.gmra.mxu0 %v2588
  %v2628 = vpop.f32.mrf.mxu0
  %v2629 = vadd.f32 0.0, %v2628
  %2630 = vmatmul.f32.gmra.mxu0 %v2591
  %v2631 = vpop.f32.mrf.mxu0
  %v2632 = vadd.f32 0.0, %v2631
  %2633 = vmatmul.f32.gmra.mxu0 %v2594
  %v2634 = vpop.f32.mrf.mxu0
  %v2635 = vadd.f32 0.0, %v2634
  %2636 = vmatmul.f32.gmra.mxu0 %v2597
  %v2637 = vpop.f32.mrf.mxu0
  %v2638 = vadd.f32 0.0, %v2637
  %2639 = vmatmul.f32.gmra.mxu0 %v2600
  %v2640 = vpop.f32.mrf.mxu0
  %v2641 = vadd.f32 0.0, %v2640
  %2642 = vmatmul.f32.gmra.mxu0 %v2603
  %v2643 = vpop.f32.mrf.mxu0
  %v2644 = vadd.f32 0.0, %v2643
  %2645 = vdwg.mxu0
  %v2647 = vsel %vm336, %v2623, 0
  %v2650 = vsel %vm336, %v2626, 0
  %v2653 = vsel %vm336, %v2629, 0
  %v2656 = vsel %vm336, %v2632, 0
  %v2659 = vsel %vm336, %v2635, 0
  %v2662 = vsel %vm336, %v2638, 0
  %v2665 = vsel %vm336, %v2641, 0
  %v2668 = vsel %vm336, %v2644, 0
  %2670 = vmatpush.msra.mxu0 0.0
  %2671 = vmatpush.msra.mxu0 0.0
  %2672 = vmatpush.msra.mxu0 0.0
  %2673 = vmatpush.msra.mxu0 0.0
  %2674 = vmatpush.msra.mxu0 0.0
  %2675 = vmatpush.msra.mxu0 0.0
  %2676 = vmatpush.msra.mxu0 0.0
  %2677 = vmatpush.msra.mxu0 0.0
  %2678 = vmatpush.msra.mxu0 0.0
  %2679 = vmatpush.msra.mxu0 0.0
  %2680 = vmatpush.msra.mxu0 0.0
  %2681 = vmatpush.msra.mxu0 0.0
  %2682 = vmatpush.msra.mxu0 0.0
  %2683 = vmatpush.msra.mxu0 0.0
  %2684 = vmatpush.msra.mxu0 0.0
  %2685 = vmatpush.msra.mxu0 %v51
  %2686 = vmatmul.f32.gmra.mxu0 %v2647
  %v2687 = vpop.f32.mrf.mxu0
  %v2688 = vadd.f32 0.0, %v2687
  %2689 = vmatmul.f32.gmra.mxu0 %v2650
  %v2690 = vpop.f32.mrf.mxu0
  %v2691 = vadd.f32 0.0, %v2690
  %2692 = vmatmul.f32.gmra.mxu0 %v2653
  %v2693 = vpop.f32.mrf.mxu0
  %v2694 = vadd.f32 0.0, %v2693
  %2695 = vmatmul.f32.gmra.mxu0 %v2656
  %v2696 = vpop.f32.mrf.mxu0
  %v2697 = vadd.f32 0.0, %v2696
  %2698 = vmatmul.f32.gmra.mxu0 %v2659
  %v2699 = vpop.f32.mrf.mxu0
  %v2700 = vadd.f32 0.0, %v2699
  %2701 = vmatmul.f32.gmra.mxu0 %v2662
  %v2702 = vpop.f32.mrf.mxu0
  %v2703 = vadd.f32 0.0, %v2702
  %2704 = vmatmul.f32.gmra.mxu0 %v2665
  %v2705 = vpop.f32.mrf.mxu0
  %v2706 = vadd.f32 0.0, %v2705
  %2707 = vmatmul.f32.gmra.mxu0 %v2668
  %v2708 = vpop.f32.mrf.mxu0
  %v2709 = vadd.f32 0.0, %v2708
  %2710 = vdwg.mxu0
  %v2711 = vadd.f32 %v2341, %v2688
  %v2712 = vadd.f32 %v2344, %v2691
  %v2713 = vadd.f32 %v2347, %v2694
  %v2714 = vadd.f32 %v2350, %v2697
  %v2715 = vadd.f32 %v2353, %v2700
  %v2716 = vadd.f32 %v2356, %v2703
  %v2717 = vadd.f32 %v2359, %v2706
  %v2718 = vadd.f32 %v2362, %v2709
  %2719 = vrot.lane.b32.xlu0 %v175, 104
  %v2720 = vpop.permute.xlu0 %2719
  %2721 = vrot.lane.b32.xlu0 %v178, 104
  %v2722 = vpop.permute.xlu0 %2721
  %2723 = vrot.lane.b32.xlu0 %v181, 104
  %v2724 = vpop.permute.xlu0 %2723
  %2725 = vrot.lane.b32.xlu0 %v184, 104
  %v2726 = vpop.permute.xlu0 %2725
  %2727 = vrot.lane.b32.xlu0 %v187, 104
  %v2728 = vpop.permute.xlu0 %2727
  %2729 = vrot.lane.b32.xlu0 %v190, 104
  %v2730 = vpop.permute.xlu0 %2729
  %2731 = vrot.lane.b32.xlu0 %v193, 104
  %v2732 = vpop.permute.xlu0 %2731
  %2733 = vrot.lane.b32.xlu0 %v196, 104
  %v2734 = vpop.permute.xlu0 %2733
  %2735 = vrot.lane.b32.xlu0 %v175, 72
  %v2736 = vpop.permute.xlu0 %2735
  %2737 = vrot.lane.b32.xlu0 %v178, 72
  %v2738 = vpop.permute.xlu0 %2737
  %2739 = vrot.lane.b32.xlu0 %v181, 72
  %v2740 = vpop.permute.xlu0 %2739
  %2741 = vrot.lane.b32.xlu0 %v184, 72
  %v2742 = vpop.permute.xlu0 %2741
  %2743 = vrot.lane.b32.xlu0 %v187, 72
  %v2744 = vpop.permute.xlu0 %2743
  %2745 = vrot.lane.b32.xlu0 %v190, 72
  %v2746 = vpop.permute.xlu0 %2745
  %2747 = vrot.lane.b32.xlu0 %v193, 72
  %v2748 = vpop.permute.xlu0 %2747
  %2749 = vrot.lane.b32.xlu0 %v196, 72
  %v2750 = vpop.permute.xlu0 %2749
  %v2751 = vsel %vm336, %v2720, 0
  %v2753 = vsel %vm336, %v2722, 0
  %v2755 = vsel %vm336, %v2724, 0
  %v2757 = vsel %vm336, %v2726, 0
  %v2759 = vsel %vm336, %v2728, 0
  %v2761 = vsel %vm336, %v2730, 0
  %v2763 = vsel %vm336, %v2732, 0
  %v2765 = vsel %vm336, %v2734, 0
  %v2767 = vsel %vm336, %v2736, 0
  %v2769 = vsel %vm336, %v2738, 0
  %v2771 = vsel %vm336, %v2740, 0
  %v2773 = vsel %vm336, %v2742, 0
  %v2775 = vsel %vm336, %v2744, 0
  %v2777 = vsel %vm336, %v2746, 0
  %v2779 = vsel %vm336, %v2748, 0
  %v2781 = vsel %vm336, %v2750, 0
  %2783 = vmatpush.xpose.msra.mxu0 0.0
  %2784 = vmatpush.xpose.msra.mxu0 0.0
  %2785 = vmatpush.xpose.msra.mxu0 0.0
  %2786 = vmatpush.xpose.msra.mxu0 0.0
  %2787 = vmatpush.xpose.msra.mxu0 0.0
  %2788 = vmatpush.xpose.msra.mxu0 0.0
  %2789 = vmatpush.xpose.msra.mxu0 0.0
  %2790 = vmatpush.xpose.msra.mxu0 0.0
  %2791 = vmatpush.xpose.msra.mxu0 %v2781
  %2792 = vmatpush.xpose.msra.mxu0 %v2779
  %2793 = vmatpush.xpose.msra.mxu0 %v2777
  %2794 = vmatpush.xpose.msra.mxu0 %v2775
  %2795 = vmatpush.xpose.msra.mxu0 %v2773
  %2796 = vmatpush.xpose.msra.mxu0 %v2771
  %2797 = vmatpush.xpose.msra.mxu0 %v2769
  %2798 = vmatpush.xpose.msra.mxu0 %v2767
  %2799 = vmatmul.f32.gmra.mxu0 %v2751
  %v2800 = vpop.f32.mrf.mxu0
  %v2801 = vadd.f32 0.0, %v2800
  %2802 = vmatmul.f32.gmra.mxu0 %v2753
  %v2803 = vpop.f32.mrf.mxu0
  %v2804 = vadd.f32 0.0, %v2803
  %2805 = vmatmul.f32.gmra.mxu0 %v2755
  %v2806 = vpop.f32.mrf.mxu0
  %v2807 = vadd.f32 0.0, %v2806
  %2808 = vmatmul.f32.gmra.mxu0 %v2757
  %v2809 = vpop.f32.mrf.mxu0
  %v2810 = vadd.f32 0.0, %v2809
  %2811 = vmatmul.f32.gmra.mxu0 %v2759
  %v2812 = vpop.f32.mrf.mxu0
  %v2813 = vadd.f32 0.0, %v2812
  %2814 = vmatmul.f32.gmra.mxu0 %v2761
  %v2815 = vpop.f32.mrf.mxu0
  %v2816 = vadd.f32 0.0, %v2815
  %2817 = vmatmul.f32.gmra.mxu0 %v2763
  %v2818 = vpop.f32.mrf.mxu0
  %v2819 = vadd.f32 0.0, %v2818
  %2820 = vmatmul.f32.gmra.mxu0 %v2765
  %v2821 = vpop.f32.mrf.mxu0
  %v2822 = vadd.f32 0.0, %v2821
  %2823 = vdwg.mxu0
  %v2824 = vsel %vm410, %v2801, -inf
  %2825 = vmax.xlane.f32.xlu0 %v2824
  %v2826 = vpop.xlane.xlu0 %2825
  %v2827 = vsel %vm410, %v2804, -inf
  %2828 = vmax.xlane.f32.xlu0 %v2827
  %v2829 = vpop.xlane.xlu0 %2828
  %v2830 = vsel %vm410, %v2807, -inf
  %2831 = vmax.xlane.f32.xlu0 %v2830
  %v2832 = vpop.xlane.xlu0 %2831
  %v2833 = vsel %vm410, %v2810, -inf
  %2834 = vmax.xlane.f32.xlu0 %v2833
  %v2835 = vpop.xlane.xlu0 %2834
  %v2836 = vsel %vm410, %v2813, -inf
  %2837 = vmax.xlane.f32.xlu0 %v2836
  %v2838 = vpop.xlane.xlu0 %2837
  %v2839 = vsel %vm410, %v2816, -inf
  %2840 = vmax.xlane.f32.xlu0 %v2839
  %v2841 = vpop.xlane.xlu0 %2840
  %v2842 = vsel %vm410, %v2819, -inf
  %2843 = vmax.xlane.f32.xlu0 %v2842
  %v2844 = vpop.xlane.xlu0 %2843
  %v2845 = vsel %vm410, %v2822, -inf
  %2846 = vmax.xlane.f32.xlu0 %v2845
  %v2847 = vpop.xlane.xlu0 %2846
  %v2848 = vsub.f32 %v2801, %v2826
  %v2849 = vsub.f32 %v2804, %v2829
  %v2850 = vsub.f32 %v2807, %v2832
  %v2851 = vsub.f32 %v2810, %v2835
  %v2852 = vsub.f32 %v2813, %v2838
  %v2853 = vsub.f32 %v2816, %v2841
  %v2854 = vsub.f32 %v2819, %v2844
  %v2855 = vsub.f32 %v2822, %v2847
  %v2856 = vmul.f32 %v2848, 1.442695
  %v2857 = vpow.pop %v2856
  %v2858 = vmul.f32 %v2849, 1.442695
  %v2859 = vpow.pop %v2858
  %v2860 = vmul.f32 %v2850, 1.442695
  %v2861 = vpow.pop %v2860
  %v2862 = vmul.f32 %v2851, 1.442695
  %v2863 = vpow.pop %v2862
  %v2864 = vmul.f32 %v2852, 1.442695
  %v2865 = vpow.pop %v2864
  %v2866 = vmul.f32 %v2853, 1.442695
  %v2867 = vpow.pop %v2866
  %v2868 = vmul.f32 %v2854, 1.442695
  %v2869 = vpow.pop %v2868
  %v2870 = vmul.f32 %v2855, 1.442695
  %v2871 = vpow.pop %v2870
  %v2872 = vsel %vm410, %v2857, 0.0
  %2873 = vadd.xlane.f32.xlu0 %v2872
  %v2874 = vpop.xlane.xlu0 %2873
  %v2875 = vsel %vm410, %v2859, 0.0
  %2876 = vadd.xlane.f32.xlu0 %v2875
  %v2877 = vpop.xlane.xlu0 %2876
  %v2878 = vsel %vm410, %v2861, 0.0
  %2879 = vadd.xlane.f32.xlu0 %v2878
  %v2880 = vpop.xlane.xlu0 %2879
  %v2881 = vsel %vm410, %v2863, 0.0
  %2882 = vadd.xlane.f32.xlu0 %v2881
  %v2883 = vpop.xlane.xlu0 %2882
  %v2884 = vsel %vm410, %v2865, 0.0
  %2885 = vadd.xlane.f32.xlu0 %v2884
  %v2886 = vpop.xlane.xlu0 %2885
  %v2887 = vsel %vm410, %v2867, 0.0
  %2888 = vadd.xlane.f32.xlu0 %v2887
  %v2889 = vpop.xlane.xlu0 %2888
  %v2890 = vsel %vm410, %v2869, 0.0
  %2891 = vadd.xlane.f32.xlu0 %v2890
  %v2892 = vpop.xlane.xlu0 %2891
  %v2893 = vsel %vm410, %v2871, 0.0
  %2894 = vadd.xlane.f32.xlu0 %v2893
  %v2895 = vpop.xlane.xlu0 %2894
  %v2896 = vrcp.pop %v2874
  %v2897 = vrcp.pop %v2877
  %v2898 = vrcp.pop %v2880
  %v2899 = vrcp.pop %v2883
  %v2900 = vrcp.pop %v2886
  %v2901 = vrcp.pop %v2889
  %v2902 = vrcp.pop %v2892
  %v2903 = vrcp.pop %v2895
  %v2904 = vmul.f32 %v2857, %v2896
  %v2905 = vmul.f32 %v2859, %v2897
  %v2906 = vmul.f32 %v2861, %v2898
  %v2907 = vmul.f32 %v2863, %v2899
  %v2908 = vmul.f32 %v2865, %v2900
  %v2909 = vmul.f32 %v2867, %v2901
  %v2910 = vmul.f32 %v2869, %v2902
  %v2911 = vmul.f32 %v2871, %v2903
  %2912 = vrot.lane.b32.xlu0 %v289, 104
  %v2913 = vpop.permute.xlu0 %2912
  %2914 = vrot.lane.b32.xlu0 %v292, 104
  %v2915 = vpop.permute.xlu0 %2914
  %2916 = vrot.lane.b32.xlu0 %v295, 104
  %v2917 = vpop.permute.xlu0 %2916
  %2918 = vrot.lane.b32.xlu0 %v298, 104
  %v2919 = vpop.permute.xlu0 %2918
  %2920 = vrot.lane.b32.xlu0 %v301, 104
  %v2921 = vpop.permute.xlu0 %2920
  %2922 = vrot.lane.b32.xlu0 %v304, 104
  %v2923 = vpop.permute.xlu0 %2922
  %2924 = vrot.lane.b32.xlu0 %v307, 104
  %v2925 = vpop.permute.xlu0 %2924
  %2926 = vrot.lane.b32.xlu0 %v310, 104
  %v2927 = vpop.permute.xlu0 %2926
  %v2937 = vsel %vm410, %v2904, 0
  %v2940 = vsel %vm410, %v2905, 0
  %v2943 = vsel %vm410, %v2906, 0
  %v2946 = vsel %vm410, %v2907, 0
  %v2949 = vsel %vm410, %v2908, 0
  %v2952 = vsel %vm410, %v2909, 0
  %v2955 = vsel %vm410, %v2910, 0
  %v2958 = vsel %vm410, %v2911, 0
  %2960 = vmatpush.msra.mxu0 0.0
  %2961 = vmatpush.msra.mxu0 0.0
  %2962 = vmatpush.msra.mxu0 0.0
  %2963 = vmatpush.msra.mxu0 0.0
  %2964 = vmatpush.msra.mxu0 0.0
  %2965 = vmatpush.msra.mxu0 0.0
  %2966 = vmatpush.msra.mxu0 0.0
  %2967 = vmatpush.msra.mxu0 0.0
  %2968 = vmatpush.msra.mxu0 %v2927
  %2969 = vmatpush.msra.mxu0 %v2925
  %2970 = vmatpush.msra.mxu0 %v2923
  %2971 = vmatpush.msra.mxu0 %v2921
  %2972 = vmatpush.msra.mxu0 %v2919
  %2973 = vmatpush.msra.mxu0 %v2917
  %2974 = vmatpush.msra.mxu0 %v2915
  %2975 = vmatpush.msra.mxu0 %v2913
  %2976 = vmatmul.f32.gmra.mxu0 %v2937
  %v2977 = vpop.f32.mrf.mxu0
  %v2978 = vadd.f32 0.0, %v2977
  %2979 = vmatmul.f32.gmra.mxu0 %v2940
  %v2980 = vpop.f32.mrf.mxu0
  %v2981 = vadd.f32 0.0, %v2980
  %2982 = vmatmul.f32.gmra.mxu0 %v2943
  %v2983 = vpop.f32.mrf.mxu0
  %v2984 = vadd.f32 0.0, %v2983
  %2985 = vmatmul.f32.gmra.mxu0 %v2946
  %v2986 = vpop.f32.mrf.mxu0
  %v2987 = vadd.f32 0.0, %v2986
  %2988 = vmatmul.f32.gmra.mxu0 %v2949
  %v2989 = vpop.f32.mrf.mxu0
  %v2990 = vadd.f32 0.0, %v2989
  %2991 = vmatmul.f32.gmra.mxu0 %v2952
  %v2992 = vpop.f32.mrf.mxu0
  %v2993 = vadd.f32 0.0, %v2992
  %2994 = vmatmul.f32.gmra.mxu0 %v2955
  %v2995 = vpop.f32.mrf.mxu0
  %v2996 = vadd.f32 0.0, %v2995
  %2997 = vmatmul.f32.gmra.mxu0 %v2958
  %v2998 = vpop.f32.mrf.mxu0
  %v2999 = vadd.f32 0.0, %v2998
  %3000 = vdwg.mxu0
  %v3002 = vsel %vm336, %v2978, 0
  %v3005 = vsel %vm336, %v2981, 0
  %v3008 = vsel %vm336, %v2984, 0
  %v3011 = vsel %vm336, %v2987, 0
  %v3014 = vsel %vm336, %v2990, 0
  %v3017 = vsel %vm336, %v2993, 0
  %v3020 = vsel %vm336, %v2996, 0
  %v3023 = vsel %vm336, %v2999, 0
  %3025 = vmatpush.msra.mxu0 0.0
  %3026 = vmatpush.msra.mxu0 0.0
  %3027 = vmatpush.msra.mxu0 0.0
  %3028 = vmatpush.msra.mxu0 0.0
  %3029 = vmatpush.msra.mxu0 0.0
  %3030 = vmatpush.msra.mxu0 0.0
  %3031 = vmatpush.msra.mxu0 0.0
  %3032 = vmatpush.msra.mxu0 0.0
  %3033 = vmatpush.msra.mxu0 0.0
  %3034 = vmatpush.msra.mxu0 0.0
  %3035 = vmatpush.msra.mxu0 0.0
  %3036 = vmatpush.msra.mxu0 0.0
  %3037 = vmatpush.msra.mxu0 0.0
  %3038 = vmatpush.msra.mxu0 0.0
  %3039 = vmatpush.msra.mxu0 0.0
  %3040 = vmatpush.msra.mxu0 %v52
  %3041 = vmatmul.f32.gmra.mxu0 %v3002
  %v3042 = vpop.f32.mrf.mxu0
  %v3043 = vadd.f32 0.0, %v3042
  %3044 = vmatmul.f32.gmra.mxu0 %v3005
  %v3045 = vpop.f32.mrf.mxu0
  %v3046 = vadd.f32 0.0, %v3045
  %3047 = vmatmul.f32.gmra.mxu0 %v3008
  %v3048 = vpop.f32.mrf.mxu0
  %v3049 = vadd.f32 0.0, %v3048
  %3050 = vmatmul.f32.gmra.mxu0 %v3011
  %v3051 = vpop.f32.mrf.mxu0
  %v3052 = vadd.f32 0.0, %v3051
  %3053 = vmatmul.f32.gmra.mxu0 %v3014
  %v3054 = vpop.f32.mrf.mxu0
  %v3055 = vadd.f32 0.0, %v3054
  %3056 = vmatmul.f32.gmra.mxu0 %v3017
  %v3057 = vpop.f32.mrf.mxu0
  %v3058 = vadd.f32 0.0, %v3057
  %3059 = vmatmul.f32.gmra.mxu0 %v3020
  %v3060 = vpop.f32.mrf.mxu0
  %v3061 = vadd.f32 0.0, %v3060
  %3062 = vmatmul.f32.gmra.mxu0 %v3023
  %v3063 = vpop.f32.mrf.mxu0
  %v3064 = vadd.f32 0.0, %v3063
  %3065 = vdwg.mxu0
  %v3066 = vadd.f32 %v2711, %v3043
  %v3067 = vadd.f32 %v2712, %v3046
  %v3068 = vadd.f32 %v2713, %v3049
  %v3069 = vadd.f32 %v2714, %v3052
  %v3070 = vadd.f32 %v2715, %v3055
  %v3071 = vadd.f32 %v2716, %v3058
  %v3072 = vadd.f32 %v2717, %v3061
  %v3073 = vadd.f32 %v2718, %v3064
  %v3074 = vperm.slane %v65, 2
  %v3075 = vadd.f32 %v1686, %v3074
  %v3076 = vadd.f32 %v1687, %v3074
  %v3077 = vadd.f32 %v1688, %v3074
  %v3078 = vadd.f32 %v1689, %v3074
  %v3079 = vadd.f32 %v1690, %v3074
  %v3080 = vadd.f32 %v1691, %v3074
  %v3081 = vadd.f32 %v1692, %v3074
  %v3082 = vadd.f32 %v1693, %v3074
  %v3083 = vadd.f32 %v3066, %v3074
  %v3084 = vadd.f32 %v3067, %v3074
  %v3085 = vadd.f32 %v3068, %v3074
  %v3086 = vadd.f32 %v3069, %v3074
  %v3087 = vadd.f32 %v3070, %v3074
  %v3088 = vadd.f32 %v3071, %v3074
  %v3089 = vadd.f32 %v3072, %v3074
  %v3090 = vadd.f32 %v3073, %v3074
  %v3091 = vadd.f32 %v17, %v3075
  %v3092 = vadd.f32 %v18, %v3076
  %v3093 = vadd.f32 %v19, %v3077
  %v3094 = vadd.f32 %v20, %v3078
  %v3095 = vadd.f32 %v21, %v3079
  %v3096 = vadd.f32 %v22, %v3080
  %v3097 = vadd.f32 %v23, %v3081
  %v3098 = vadd.f32 %v24, %v3082
  %v3099 = vadd.f32 %v25, %v3083
  %v3100 = vadd.f32 %v26, %v3084
  %v3101 = vadd.f32 %v27, %v3085
  %v3102 = vadd.f32 %v28, %v3086
  %v3103 = vadd.f32 %v29, %v3087
  %v3104 = vadd.f32 %v30, %v3088
  %v3105 = vadd.f32 %v31, %v3089
  %v3106 = vadd.f32 %v32, %v3090
  %v3107 = vsel %vm84, %v3091, 0.0
  %3108 = vadd.xlane.f32.xlu0 %v3107
  %v3109 = vpop.xlane.xlu0 %3108
  %v3110 = vsel %vm84, %v3092, 0.0
  %3111 = vadd.xlane.f32.xlu0 %v3110
  %v3112 = vpop.xlane.xlu0 %3111
  %v3113 = vsel %vm84, %v3093, 0.0
  %3114 = vadd.xlane.f32.xlu0 %v3113
  %v3115 = vpop.xlane.xlu0 %3114
  %v3116 = vsel %vm84, %v3094, 0.0
  %3117 = vadd.xlane.f32.xlu0 %v3116
  %v3118 = vpop.xlane.xlu0 %3117
  %v3119 = vsel %vm84, %v3095, 0.0
  %3120 = vadd.xlane.f32.xlu0 %v3119
  %v3121 = vpop.xlane.xlu0 %3120
  %v3122 = vsel %vm84, %v3096, 0.0
  %3123 = vadd.xlane.f32.xlu0 %v3122
  %v3124 = vpop.xlane.xlu0 %3123
  %v3125 = vsel %vm84, %v3097, 0.0
  %3126 = vadd.xlane.f32.xlu0 %v3125
  %v3127 = vpop.xlane.xlu0 %3126
  %v3128 = vsel %vm84, %v3098, 0.0
  %3129 = vadd.xlane.f32.xlu0 %v3128
  %v3130 = vpop.xlane.xlu0 %3129
  %v3131 = vsel %vm84, %v3099, 0.0
  %3132 = vadd.xlane.f32.xlu0 %v3131
  %v3133 = vpop.xlane.xlu0 %3132
  %v3134 = vsel %vm84, %v3100, 0.0
  %3135 = vadd.xlane.f32.xlu0 %v3134
  %v3136 = vpop.xlane.xlu0 %3135
  %v3137 = vsel %vm84, %v3101, 0.0
  %3138 = vadd.xlane.f32.xlu0 %v3137
  %v3139 = vpop.xlane.xlu0 %3138
  %v3140 = vsel %vm84, %v3102, 0.0
  %3141 = vadd.xlane.f32.xlu0 %v3140
  %v3142 = vpop.xlane.xlu0 %3141
  %v3143 = vsel %vm84, %v3103, 0.0
  %3144 = vadd.xlane.f32.xlu0 %v3143
  %v3145 = vpop.xlane.xlu0 %3144
  %v3146 = vsel %vm84, %v3104, 0.0
  %3147 = vadd.xlane.f32.xlu0 %v3146
  %v3148 = vpop.xlane.xlu0 %3147
  %v3149 = vsel %vm84, %v3105, 0.0
  %3150 = vadd.xlane.f32.xlu0 %v3149
  %v3151 = vpop.xlane.xlu0 %3150
  %v3152 = vsel %vm84, %v3106, 0.0
  %3153 = vadd.xlane.f32.xlu0 %v3152
  %v3154 = vpop.xlane.xlu0 %3153
  %v3155 = vrcp.pop 32.0
  %v3156 = vmul.f32 32.0, %v3155
  %v3157 = vsub.f32 1.0, %v3156
  %v3158 = vmul.f32 %v3155, %v3157
  %v3159 = vadd.f32 %v3155, %v3158
  %vm3160 = vweird.f32 %v3155
  %v3161 = vsel %vm3160, %v3155, %v3159
  %v3162 = vmul.f32 %v3109, %v3161
  %v3163 = vmul.f32 %v3112, %v3161
  %v3164 = vmul.f32 %v3115, %v3161
  %v3165 = vmul.f32 %v3118, %v3161
  %v3166 = vmul.f32 %v3121, %v3161
  %v3167 = vmul.f32 %v3124, %v3161
  %v3168 = vmul.f32 %v3127, %v3161
  %v3169 = vmul.f32 %v3130, %v3161
  %v3170 = vmul.f32 %v3133, %v3161
  %v3171 = vmul.f32 %v3136, %v3161
  %v3172 = vmul.f32 %v3139, %v3161
  %v3173 = vmul.f32 %v3142, %v3161
  %v3174 = vmul.f32 %v3145, %v3161
  %v3175 = vmul.f32 %v3148, %v3161
  %v3176 = vmul.f32 %v3151, %v3161
  %v3177 = vmul.f32 %v3154, %v3161
  %v3178 = vsub.f32 %v3091, %v3162
  %v3179 = vsub.f32 %v3092, %v3163
  %v3180 = vsub.f32 %v3093, %v3164
  %v3181 = vsub.f32 %v3094, %v3165
  %v3182 = vsub.f32 %v3095, %v3166
  %v3183 = vsub.f32 %v3096, %v3167
  %v3184 = vsub.f32 %v3097, %v3168
  %v3185 = vsub.f32 %v3098, %v3169
  %v3186 = vsub.f32 %v3099, %v3170
  %v3187 = vsub.f32 %v3100, %v3171
  %v3188 = vsub.f32 %v3101, %v3172
  %v3189 = vsub.f32 %v3102, %v3173
  %v3190 = vsub.f32 %v3103, %v3174
  %v3191 = vsub.f32 %v3104, %v3175
  %v3192 = vsub.f32 %v3105, %v3176
  %v3193 = vsub.f32 %v3106, %v3177
  %v3194 = vmul.f32 %v3178, %v3178
  %v3195 = vmul.f32 %v3179, %v3179
  %v3196 = vmul.f32 %v3180, %v3180
  %v3197 = vmul.f32 %v3181, %v3181
  %v3198 = vmul.f32 %v3182, %v3182
  %v3199 = vmul.f32 %v3183, %v3183
  %v3200 = vmul.f32 %v3184, %v3184
  %v3201 = vmul.f32 %v3185, %v3185
  %v3202 = vmul.f32 %v3186, %v3186
  %v3203 = vmul.f32 %v3187, %v3187
  %v3204 = vmul.f32 %v3188, %v3188
  %v3205 = vmul.f32 %v3189, %v3189
  %v3206 = vmul.f32 %v3190, %v3190
  %v3207 = vmul.f32 %v3191, %v3191
  %v3208 = vmul.f32 %v3192, %v3192
  %v3209 = vmul.f32 %v3193, %v3193
  %v3210 = vsel %vm84, %v3194, 0.0
  %3211 = vadd.xlane.f32.xlu0 %v3210
  %v3212 = vpop.xlane.xlu0 %3211
  %v3213 = vsel %vm84, %v3195, 0.0
  %3214 = vadd.xlane.f32.xlu0 %v3213
  %v3215 = vpop.xlane.xlu0 %3214
  %v3216 = vsel %vm84, %v3196, 0.0
  %3217 = vadd.xlane.f32.xlu0 %v3216
  %v3218 = vpop.xlane.xlu0 %3217
  %v3219 = vsel %vm84, %v3197, 0.0
  %3220 = vadd.xlane.f32.xlu0 %v3219
  %v3221 = vpop.xlane.xlu0 %3220
  %v3222 = vsel %vm84, %v3198, 0.0
  %3223 = vadd.xlane.f32.xlu0 %v3222
  %v3224 = vpop.xlane.xlu0 %3223
  %v3225 = vsel %vm84, %v3199, 0.0
  %3226 = vadd.xlane.f32.xlu0 %v3225
  %v3227 = vpop.xlane.xlu0 %3226
  %v3228 = vsel %vm84, %v3200, 0.0
  %3229 = vadd.xlane.f32.xlu0 %v3228
  %v3230 = vpop.xlane.xlu0 %3229
  %v3231 = vsel %vm84, %v3201, 0.0
  %3232 = vadd.xlane.f32.xlu0 %v3231
  %v3233 = vpop.xlane.xlu0 %3232
  %v3234 = vsel %vm84, %v3202, 0.0
  %3235 = vadd.xlane.f32.xlu0 %v3234
  %v3236 = vpop.xlane.xlu0 %3235
  %v3237 = vsel %vm84, %v3203, 0.0
  %3238 = vadd.xlane.f32.xlu0 %v3237
  %v3239 = vpop.xlane.xlu0 %3238
  %v3240 = vsel %vm84, %v3204, 0.0
  %3241 = vadd.xlane.f32.xlu0 %v3240
  %v3242 = vpop.xlane.xlu0 %3241
  %v3243 = vsel %vm84, %v3205, 0.0
  %3244 = vadd.xlane.f32.xlu0 %v3243
  %v3245 = vpop.xlane.xlu0 %3244
  %v3246 = vsel %vm84, %v3206, 0.0
  %3247 = vadd.xlane.f32.xlu0 %v3246
  %v3248 = vpop.xlane.xlu0 %3247
  %v3249 = vsel %vm84, %v3207, 0.0
  %3250 = vadd.xlane.f32.xlu0 %v3249
  %v3251 = vpop.xlane.xlu0 %3250
  %v3252 = vsel %vm84, %v3208, 0.0
  %3253 = vadd.xlane.f32.xlu0 %v3252
  %v3254 = vpop.xlane.xlu0 %3253
  %v3255 = vsel %vm84, %v3209, 0.0
  %3256 = vadd.xlane.f32.xlu0 %v3255
  %v3257 = vpop.xlane.xlu0 %3256
  %v3258 = vmul.f32 %v3212, %v3161
  %v3259 = vmul.f32 %v3215, %v3161
  %v3260 = vmul.f32 %v3218, %v3161
  %v3261 = vmul.f32 %v3221, %v3161
  %v3262 = vmul.f32 %v3224, %v3161
  %v3263 = vmul.f32 %v3227, %v3161
  %v3264 = vmul.f32 %v3230, %v3161
  %v3265 = vmul.f32 %v3233, %v3161
  %v3266 = vmul.f32 %v3236, %v3161
  %v3267 = vmul.f32 %v3239, %v3161
  %v3268 = vmul.f32 %v3242, %v3161
  %v3269 = vmul.f32 %v3245, %v3161
  %v3270 = vmul.f32 %v3248, %v3161
  %v3271 = vmul.f32 %v3251, %v3161
  %v3272 = vmul.f32 %v3254, %v3161
  %v3273 = vmul.f32 %v3257, %v3161
  %v3274 = vadd.f32 %v3258, 1e-05
  %v3275 = vadd.f32 %v3259, 1e-05
  %v3276 = vadd.f32 %v3260, 1e-05
  %v3277 = vadd.f32 %v3261, 1e-05
  %v3278 = vadd.f32 %v3262, 1e-05
  %v3279 = vadd.f32 %v3263, 1e-05
  %v3280 = vadd.f32 %v3264, 1e-05
  %v3281 = vadd.f32 %v3265, 1e-05
  %v3282 = vadd.f32 %v3266, 1e-05
  %v3283 = vadd.f32 %v3267, 1e-05
  %v3284 = vadd.f32 %v3268, 1e-05
  %v3285 = vadd.f32 %v3269, 1e-05
  %v3286 = vadd.f32 %v3270, 1e-05
  %v3287 = vadd.f32 %v3271, 1e-05
  %v3288 = vadd.f32 %v3272, 1e-05
  %v3289 = vadd.f32 %v3273, 1e-05
  %v3290 = vrsqrt.pop %v3274
  %v3291 = vmul.f32 %v3290, %v3274
  %v3292 = vmul.f32 %v3291, %v3290
  %v3293 = vmul.f32 0.5, %v3292
  %v3294 = vsub.f32 1.5, %v3293
  %v3295 = vmul.f32 %v3290, %v3294
  %vm3296 = vweird.f32 %v3274
  %vm3297 = vweird.f32 %v3290
  %vm3298 = vmor %vm3296, %vm3297
  %v3299 = vsel %vm3298, %v3290, %v3295
  %v3300 = vrsqrt.pop %v3275
  %v3301 = vmul.f32 %v3300, %v3275
  %v3302 = vmul.f32 %v3301, %v3300
  %v3303 = vmul.f32 0.5, %v3302
  %v3304 = vsub.f32 1.5, %v3303
  %v3305 = vmul.f32 %v3300, %v3304
  %vm3306 = vweird.f32 %v3275
  %vm3307 = vweird.f32 %v3300
  %vm3308 = vmor %vm3306, %vm3307
  %v3309 = vsel %vm3308, %v3300, %v3305
  %v3310 = vrsqrt.pop %v3276
  %v3311 = vmul.f32 %v3310, %v3276
  %v3312 = vmul.f32 %v3311, %v3310
  %v3313 = vmul.f32 0.5, %v3312
  %v3314 = vsub.f32 1.5, %v3313
  %v3315 = vmul.f32 %v3310, %v3314
  %vm3316 = vweird.f32 %v3276
  %vm3317 = vweird.f32 %v3310
  %vm3318 = vmor %vm3316, %vm3317
  %v3319 = vsel %vm3318, %v3310, %v3315
  %v3320 = vrsqrt.pop %v3277
  %v3321 = vmul.f32 %v3320, %v3277
  %v3322 = vmul.f32 %v3321, %v3320
  %v3323 = vmul.f32 0.5, %v3322
  %v3324 = vsub.f32 1.5, %v3323
  %v3325 = vmul.f32 %v3320, %v3324
  %vm3326 = vweird.f32 %v3277
  %vm3327 = vweird.f32 %v3320
  %vm3328 = vmor %vm3326, %vm3327
  %v3329 = vsel %vm3328, %v3320, %v3325
  %v3330 = vrsqrt.pop %v3278
  %v3331 = vmul.f32 %v3330, %v3278
  %v3332 = vmul.f32 %v3331, %v3330
  %v3333 = vmul.f32 0.5, %v3332
  %v3334 = vsub.f32 1.5, %v3333
  %v3335 = vmul.f32 %v3330, %v3334
  %vm3336 = vweird.f32 %v3278
  %vm3337 = vweird.f32 %v3330
  %vm3338 = vmor %vm3336, %vm3337
  %v3339 = vsel %vm3338, %v3330, %v3335
  %v3340 = vrsqrt.pop %v3279
  %v3341 = vmul.f32 %v3340, %v3279
  %v3342 = vmul.f32 %v3341, %v3340
  %v3343 = vmul.f32 0.5, %v3342
  %v3344 = vsub.f32 1.5, %v3343
  %v3345 = vmul.f32 %v3340, %v3344
  %vm3346 = vweird.f32 %v3279
  %vm3347 = vweird.f32 %v3340
  %vm3348 = vmor %vm3346, %vm3347
  %v3349 = vsel %vm3348, %v3340, %v3345
  %v3350 = vrsqrt.pop %v3280
  %v3351 = vmul.f32 %v3350, %v3280
  %v3352 = vmul.f32 %v3351, %v3350
  %v3353 = vmul.f32 0.5, %v3352
  %v3354 = vsub.f32 1.5, %v3353
  %v3355 = vmul.f32 %v3350, %v3354
  %vm3356 = vweird.f32 %v3280
  %vm3357 = vweird.f32 %v3350
  %vm3358 = vmor %vm3356, %vm3357
  %v3359 = vsel %vm3358, %v3350, %v3355
  %v3360 = vrsqrt.pop %v3281
  %v3361 = vmul.f32 %v3360, %v3281
  %v3362 = vmul.f32 %v3361, %v3360
  %v3363 = vmul.f32 0.5, %v3362
  %v3364 = vsub.f32 1.5, %v3363
  %v3365 = vmul.f32 %v3360, %v3364
  %vm3366 = vweird.f32 %v3281
  %vm3367 = vweird.f32 %v3360
  %vm3368 = vmor %vm3366, %vm3367
  %v3369 = vsel %vm3368, %v3360, %v3365
  %v3370 = vrsqrt.pop %v3282
  %v3371 = vmul.f32 %v3370, %v3282
  %v3372 = vmul.f32 %v3371, %v3370
  %v3373 = vmul.f32 0.5, %v3372
  %v3374 = vsub.f32 1.5, %v3373
  %v3375 = vmul.f32 %v3370, %v3374
  %vm3376 = vweird.f32 %v3282
  %vm3377 = vweird.f32 %v3370
  %vm3378 = vmor %vm3376, %vm3377
  %v3379 = vsel %vm3378, %v3370, %v3375
  %v3380 = vrsqrt.pop %v3283
  %v3381 = vmul.f32 %v3380, %v3283
  %v3382 = vmul.f32 %v3381, %v3380
  %v3383 = vmul.f32 0.5, %v3382
  %v3384 = vsub.f32 1.5, %v3383
  %v3385 = vmul.f32 %v3380, %v3384
  %vm3386 = vweird.f32 %v3283
  %vm3387 = vweird.f32 %v3380
  %vm3388 = vmor %vm3386, %vm3387
  %v3389 = vsel %vm3388, %v3380, %v3385
  %v3390 = vrsqrt.pop %v3284
  %v3391 = vmul.f32 %v3390, %v3284
  %v3392 = vmul.f32 %v3391, %v3390
  %v3393 = vmul.f32 0.5, %v3392
  %v3394 = vsub.f32 1.5, %v3393
  %v3395 = vmul.f32 %v3390, %v3394
  %vm3396 = vweird.f32 %v3284
  %vm3397 = vweird.f32 %v3390
  %vm3398 = vmor %vm3396, %vm3397
  %v3399 = vsel %vm3398, %v3390, %v3395
  %v3400 = vrsqrt.pop %v3285
  %v3401 = vmul.f32 %v3400, %v3285
  %v3402 = vmul.f32 %v3401, %v3400
  %v3403 = vmul.f32 0.5, %v3402
  %v3404 = vsub.f32 1.5, %v3403
  %v3405 = vmul.f32 %v3400, %v3404
  %vm3406 = vweird.f32 %v3285
  %vm3407 = vweird.f32 %v3400
  %vm3408 = vmor %vm3406, %vm3407
  %v3409 = vsel %vm3408, %v3400, %v3405
  %v3410 = vrsqrt.pop %v3286
  %v3411 = vmul.f32 %v3410, %v3286
  %v3412 = vmul.f32 %v3411, %v3410
  %v3413 = vmul.f32 0.5, %v3412
  %v3414 = vsub.f32 1.5, %v3413
  %v3415 = vmul.f32 %v3410, %v3414
  %vm3416 = vweird.f32 %v3286
  %vm3417 = vweird.f32 %v3410
  %vm3418 = vmor %vm3416, %vm3417
  %v3419 = vsel %vm3418, %v3410, %v3415
  %v3420 = vrsqrt.pop %v3287
  %v3421 = vmul.f32 %v3420, %v3287
  %v3422 = vmul.f32 %v3421, %v3420
  %v3423 = vmul.f32 0.5, %v3422
  %v3424 = vsub.f32 1.5, %v3423
  %v3425 = vmul.f32 %v3420, %v3424
  %vm3426 = vweird.f32 %v3287
  %vm3427 = vweird.f32 %v3420
  %vm3428 = vmor %vm3426, %vm3427
  %v3429 = vsel %vm3428, %v3420, %v3425
  %v3430 = vrsqrt.pop %v3288
  %v3431 = vmul.f32 %v3430, %v3288
  %v3432 = vmul.f32 %v3431, %v3430
  %v3433 = vmul.f32 0.5, %v3432
  %v3434 = vsub.f32 1.5, %v3433
  %v3435 = vmul.f32 %v3430, %v3434
  %vm3436 = vweird.f32 %v3288
  %vm3437 = vweird.f32 %v3430
  %vm3438 = vmor %vm3436, %vm3437
  %v3439 = vsel %vm3438, %v3430, %v3435
  %v3440 = vrsqrt.pop %v3289
  %v3441 = vmul.f32 %v3440, %v3289
  %v3442 = vmul.f32 %v3441, %v3440
  %v3443 = vmul.f32 0.5, %v3442
  %v3444 = vsub.f32 1.5, %v3443
  %v3445 = vmul.f32 %v3440, %v3444
  %vm3446 = vweird.f32 %v3289
  %vm3447 = vweird.f32 %v3440
  %vm3448 = vmor %vm3446, %vm3447
  %v3449 = vsel %vm3448, %v3440, %v3445
  %v3450 = vmul.f32 %v3178, %v3299
  %v3451 = vmul.f32 %v3179, %v3309
  %v3452 = vmul.f32 %v3180, %v3319
  %v3453 = vmul.f32 %v3181, %v3329
  %v3454 = vmul.f32 %v3182, %v3339
  %v3455 = vmul.f32 %v3183, %v3349
  %v3456 = vmul.f32 %v3184, %v3359
  %v3457 = vmul.f32 %v3185, %v3369
  %v3458 = vmul.f32 %v3186, %v3379
  %v3459 = vmul.f32 %v3187, %v3389
  %v3460 = vmul.f32 %v3188, %v3399
  %v3461 = vmul.f32 %v3189, %v3409
  %v3462 = vmul.f32 %v3190, %v3419
  %v3463 = vmul.f32 %v3191, %v3429
  %v3464 = vmul.f32 %v3192, %v3439
  %v3465 = vmul.f32 %v3193, %v3449
  %v3466 = vperm.slane %v65, 5
  %v3467 = vmul.f32 %v3450, %v3466
  %v3468 = vmul.f32 %v3451, %v3466
  %v3469 = vmul.f32 %v3452, %v3466
  %v3470 = vmul.f32 %v3453, %v3466
  %v3471 = vmul.f32 %v3454, %v3466
  %v3472 = vmul.f32 %v3455, %v3466
  %v3473 = vmul.f32 %v3456, %v3466
  %v3474 = vmul.f32 %v3457, %v3466
  %v3475 = vmul.f32 %v3458, %v3466
  %v3476 = vmul.f32 %v3459, %v3466
  %v3477 = vmul.f32 %v3460, %v3466
  %v3478 = vmul.f32 %v3461, %v3466
  %v3479 = vmul.f32 %v3462, %v3466
  %v3480 = vmul.f32 %v3463, %v3466
  %v3481 = vmul.f32 %v3464, %v3466
  %v3482 = vmul.f32 %v3465, %v3466
  %v3483 = vperm.slane %v65, 6
  %v3484 = vadd.f32 %v3467, %v3483
  %v3485 = vadd.f32 %v3468, %v3483
  %v3486 = vadd.f32 %v3469, %v3483
  %v3487 = vadd.f32 %v3470, %v3483
  %v3488 = vadd.f32 %v3471, %v3483
  %v3489 = vadd.f32 %v3472, %v3483
  %v3490 = vadd.f32 %v3473, %v3483
  %v3491 = vadd.f32 %v3474, %v3483
  %v3492 = vadd.f32 %v3475, %v3483
  %v3493 = vadd.f32 %v3476, %v3483
  %v3494 = vadd.f32 %v3477, %v3483
  %v3495 = vadd.f32 %v3478, %v3483
  %v3496 = vadd.f32 %v3479, %v3483
  %v3497 = vadd.f32 %v3480, %v3483
  %v3498 = vadd.f32 %v3481, %v3483
  %v3499 = vadd.f32 %v3482, %v3483
  %v3500 = vperm.slane %v65, 3
  %v3502 = vsel %vm84, %v3484, 0
  %v3505 = vsel %vm84, %v3485, 0
  %v3508 = vsel %vm84, %v3486, 0
  %v3511 = vsel %vm84, %v3487, 0
  %v3514 = vsel %vm84, %v3488, 0
  %v3517 = vsel %vm84, %v3489, 0
  %v3520 = vsel %vm84, %v3490, 0
  %v3523 = vsel %vm84, %v3491, 0
  %v3526 = vsel %vm84, %v3492, 0
  %v3529 = vsel %vm84, %v3493, 0
  %v3532 = vsel %vm84, %v3494, 0
  %v3535 = vsel %vm84, %v3495, 0
  %v3538 = vsel %vm84, %v3496, 0
  %v3541 = vsel %vm84, %v3497, 0
  %v3544 = vsel %vm84, %v3498, 0
  %v3547 = vsel %vm84, %v3499, 0
  %3549 = vmatpush.msra.mxu0 0.0
  %3550 = vmatpush.msra.mxu0 0.0
  %3551 = vmatpush.msra.mxu0 0.0
  %3552 = vmatpush.msra.mxu0 0.0
  %3553 = vmatpush.msra.mxu0 0.0
  %3554 = vmatpush.msra.mxu0 0.0
  %3555 = vmatpush.msra.mxu0 0.0
  %3556 = vmatpush.msra.mxu0 0.0
  %3557 = vmatpush.msra.mxu0 0.0
  %3558 = vmatpush.msra.mxu0 0.0
  %3559 = vmatpush.msra.mxu0 0.0
  %3560 = vmatpush.msra.mxu0 0.0
  %3561 = vmatpush.msra.mxu0 %v56
  %3562 = vmatpush.msra.mxu0 %v55
  %3563 = vmatpush.msra.mxu0 %v54
  %3564 = vmatpush.msra.mxu0 %v53
  %3565 = vmatmul.f32.gmra.mxu0 %v3502
  %v3566 = vpop.f32.mrf.mxu0
  %v3567 = vadd.f32 %v3500, %v3566
  %3568 = vmatmul.f32.gmra.mxu0 %v3505
  %v3569 = vpop.f32.mrf.mxu0
  %v3570 = vadd.f32 %v3500, %v3569
  %3571 = vmatmul.f32.gmra.mxu0 %v3508
  %v3572 = vpop.f32.mrf.mxu0
  %v3573 = vadd.f32 %v3500, %v3572
  %3574 = vmatmul.f32.gmra.mxu0 %v3511
  %v3575 = vpop.f32.mrf.mxu0
  %v3576 = vadd.f32 %v3500, %v3575
  %3577 = vmatmul.f32.gmra.mxu0 %v3514
  %v3578 = vpop.f32.mrf.mxu0
  %v3579 = vadd.f32 %v3500, %v3578
  %3580 = vmatmul.f32.gmra.mxu0 %v3517
  %v3581 = vpop.f32.mrf.mxu0
  %v3582 = vadd.f32 %v3500, %v3581
  %3583 = vmatmul.f32.gmra.mxu0 %v3520
  %v3584 = vpop.f32.mrf.mxu0
  %v3585 = vadd.f32 %v3500, %v3584
  %3586 = vmatmul.f32.gmra.mxu0 %v3523
  %v3587 = vpop.f32.mrf.mxu0
  %v3588 = vadd.f32 %v3500, %v3587
  %3589 = vmatmul.f32.gmra.mxu0 %v3526
  %v3590 = vpop.f32.mrf.mxu0
  %v3591 = vadd.f32 %v3500, %v3590
  %3592 = vmatmul.f32.gmra.mxu0 %v3529
  %v3593 = vpop.f32.mrf.mxu0
  %v3594 = vadd.f32 %v3500, %v3593
  %3595 = vmatmul.f32.gmra.mxu0 %v3532
  %v3596 = vpop.f32.mrf.mxu0
  %v3597 = vadd.f32 %v3500, %v3596
  %3598 = vmatmul.f32.gmra.mxu0 %v3535
  %v3599 = vpop.f32.mrf.mxu0
  %v3600 = vadd.f32 %v3500, %v3599
  %3601 = vmatmul.f32.gmra.mxu0 %v3538
  %v3602 = vpop.f32.mrf.mxu0
  %v3603 = vadd.f32 %v3500, %v3602
  %3604 = vmatmul.f32.gmra.mxu0 %v3541
  %v3605 = vpop.f32.mrf.mxu0
  %v3606 = vadd.f32 %v3500, %v3605
  %3607 = vmatmul.f32.gmra.mxu0 %v3544
  %v3608 = vpop.f32.mrf.mxu0
  %v3609 = vadd.f32 %v3500, %v3608
  %3610 = vmatmul.f32.gmra.mxu0 %v3547
  %v3611 = vpop.f32.mrf.mxu0
  %v3612 = vadd.f32 %v3500, %v3611
  %3613 = vdwg.mxu0
  %v3614 = vmul.f32 %v3567, 0.5
  %v3615 = vmul.f32 %v3570, 0.5
  %v3616 = vmul.f32 %v3573, 0.5
  %v3617 = vmul.f32 %v3576, 0.5
  %v3618 = vmul.f32 %v3579, 0.5
  %v3619 = vmul.f32 %v3582, 0.5
  %v3620 = vmul.f32 %v3585, 0.5
  %v3621 = vmul.f32 %v3588, 0.5
  %v3622 = vmul.f32 %v3591, 0.5
  %v3623 = vmul.f32 %v3594, 0.5
  %v3624 = vmul.f32 %v3597, 0.5
  %v3625 = vmul.f32 %v3600, 0.5
  %v3626 = vmul.f32 %v3603, 0.5
  %v3627 = vmul.f32 %v3606, 0.5
  %v3628 = vmul.f32 %v3609, 0.5
  %v3629 = vmul.f32 %v3612, 0.5
  %v3630 = vmul.f32 %v3567, 0.70710677
  %v3631 = vmul.f32 %v3570, 0.70710677
  %v3632 = vmul.f32 %v3573, 0.70710677
  %v3633 = vmul.f32 %v3576, 0.70710677
  %v3634 = vmul.f32 %v3579, 0.70710677
  %v3635 = vmul.f32 %v3582, 0.70710677
  %v3636 = vmul.f32 %v3585, 0.70710677
  %v3637 = vmul.f32 %v3588, 0.70710677
  %v3638 = vmul.f32 %v3591, 0.70710677
  %v3639 = vmul.f32 %v3594, 0.70710677
  %v3640 = vmul.f32 %v3597, 0.70710677
  %v3641 = vmul.f32 %v3600, 0.70710677
  %v3642 = vmul.f32 %v3603, 0.70710677
  %v3643 = vmul.f32 %v3606, 0.70710677
  %v3644 = vmul.f32 %v3609, 0.70710677
  %v3645 = vmul.f32 %v3612, 0.70710677
  %v3646 = vmul.f32 %v3630, %v3630
  %v3647 = vmin.f32 16.0, %v3646
  %v3648 = vmul.f32 %v3647, 2.1237322e-06
  %v3649 = vadd.f32 %v3648, 0.00028619796
  %v3650 = vmul.f32 %v3647, %v3649
  %v3651 = vadd.f32 %v3650, 0.0036580483
  %v3652 = vmul.f32 %v3647, %v3651
  %v3653 = vadd.f32 %v3652, 0.05243302
  %v3654 = vmul.f32 %v3647, %v3653
  %v3655 = vadd.f32 %v3654, 0.18741608
  %v3656 = vmul.f32 %v3647, %v3655
  %v3657 = vadd.f32 %v3656, 1.1283791
  %v3658 = vmul.f32 %v3630, %v3657
  %v3659 = vmul.f32 %v3647, 3.8918573e-05
  %v3660 = vadd.f32 %v3659, 0.001143296
  %v3661 = vmul.f32 %v3647, %v3660
  %v3662 = vadd.f32 %v3661, 0.014752088
  %v3663 = vmul.f32 %v3647, %v3662
  %v3664 = vadd.f32 %v3663, 0.112945676
  %v3665 = vmul.f32 %v3647, %v3664
  %v3666 = vadd.f32 %v3665, 0.4994258
  %v3667 = vmul.f32 %v3647, %v3666
  %v3668 = vadd.f32 %v3667, 1.0
  %v3669 = vrcp.pop %v3668
  %v3670 = vmul.f32 %v3668, %v3669
  %v3671 = vsub.f32 1.0, %v3670
  %v3672 = vmul.f32 %v3669, %v3671
  %v3673 = vadd.f32 %v3669, %v3672
  %vm3674 = vweird.f32 %v3668
  %vm3675 = vweird.f32 %v3669
  %vm3676 = vmor %vm3674, %vm3675
  %v3677 = vsel %vm3676, %v3669, %v3673
  %v3678 = vand.u32 2147483647, %v3668
  %vm3679 = vcmp.eq.f32.partialorder %v3678, 8.507059e+37
  %v3680 = vand.u32 %v3668, 2147483648
  %v3681 = vor.u32 1.1754944e-38, %v3680
  %v3682 = vsel %vm3679, %v3681, %v3677
  %v3683 = vmul.f32 %v3658, %v3682
  %v3684 = vmin.f32 %v3683, 1.0
  %v3685 = vmax.f32 %v3684, -1.0
  %v3686 = vmul.f32 %v3631, %v3631
  %v3687 = vmin.f32 16.0, %v3686
  %v3688 = vmul.f32 %v3687, 2.1237322e-06
  %v3689 = vadd.f32 %v3688, 0.00028619796
  %v3690 = vmul.f32 %v3687, %v3689
  %v3691 = vadd.f32 %v3690, 0.0036580483
  %v3692 = vmul.f32 %v3687, %v3691
  %v3693 = vadd.f32 %v3692, 0.05243302
  %v3694 = vmul.f32 %v3687, %v3693
  %v3695 = vadd.f32 %v3694, 0.18741608
  %v3696 = vmul.f32 %v3687, %v3695
  %v3697 = vadd.f32 %v3696, 1.1283791
  %v3698 = vmul.f32 %v3631, %v3697
  %v3699 = vmul.f32 %v3687, 3.8918573e-05
  %v3700 = vadd.f32 %v3699, 0.001143296
  %v3701 = vmul.f32 %v3687, %v3700
  %v3702 = vadd.f32 %v3701, 0.014752088
  %v3703 = vmul.f32 %v3687, %v3702
  %v3704 = vadd.f32 %v3703, 0.112945676
  %v3705 = vmul.f32 %v3687, %v3704
  %v3706 = vadd.f32 %v3705, 0.4994258
  %v3707 = vmul.f32 %v3687, %v3706
  %v3708 = vadd.f32 %v3707, 1.0
  %v3709 = vrcp.pop %v3708
  %v3710 = vmul.f32 %v3708, %v3709
  %v3711 = vsub.f32 1.0, %v3710
  %v3712 = vmul.f32 %v3709, %v3711
  %v3713 = vadd.f32 %v3709, %v3712
  %vm3714 = vweird.f32 %v3708
  %vm3715 = vweird.f32 %v3709
  %vm3716 = vmor %vm3714, %vm3715
  %v3717 = vsel %vm3716, %v3709, %v3713
  %v3718 = vand.u32 2147483647, %v3708
  %vm3719 = vcmp.eq.f32.partialorder %v3718, 8.507059e+37
  %v3720 = vand.u32 %v3708, 2147483648
  %v3721 = vor.u32 1.1754944e-38, %v3720
  %v3722 = vsel %vm3719, %v3721, %v3717
  %v3723 = vmul.f32 %v3698, %v3722
  %v3724 = vmin.f32 %v3723, 1.0
  %v3725 = vmax.f32 %v3724, -1.0
  %v3726 = vmul.f32 %v3632, %v3632
  %v3727 = vmin.f32 16.0, %v3726
  %v3728 = vmul.f32 %v3727, 2.1237322e-06
  %v3729 = vadd.f32 %v3728, 0.00028619796
  %v3730 = vmul.f32 %v3727, %v3729
  %v3731 = vadd.f32 %v3730, 0.0036580483
  %v3732 = vmul.f32 %v3727, %v3731
  %v3733 = vadd.f32 %v3732, 0.05243302
  %v3734 = vmul.f32 %v3727, %v3733
  %v3735 = vadd.f32 %v3734, 0.18741608
  %v3736 = vmul.f32 %v3727, %v3735
  %v3737 = vadd.f32 %v3736, 1.1283791
  %v3738 = vmul.f32 %v3632, %v3737
  %v3739 = vmul.f32 %v3727, 3.8918573e-05
  %v3740 = vadd.f32 %v3739, 0.001143296
  %v3741 = vmul.f32 %v3727, %v3740
  %v3742 = vadd.f32 %v3741, 0.014752088
  %v3743 = vmul.f32 %v3727, %v3742
  %v3744 = vadd.f32 %v3743, 0.112945676
  %v3745 = vmul.f32 %v3727, %v3744
  %v3746 = vadd.f32 %v3745, 0.4994258
  %v3747 = vmul.f32 %v3727, %v3746
  %v3748 = vadd.f32 %v3747, 1.0
  %v3749 = vrcp.pop %v3748
  %v3750 = vmul.f32 %v3748, %v3749
  %v3751 = vsub.f32 1.0, %v3750
  %v3752 = vmul.f32 %v3749, %v3751
  %v3753 = vadd.f32 %v3749, %v3752
  %vm3754 = vweird.f32 %v3748
  %vm3755 = vweird.f32 %v3749
  %vm3756 = vmor %vm3754, %vm3755
  %v3757 = vsel %vm3756, %v3749, %v3753
  %v3758 = vand.u32 2147483647, %v3748
  %vm3759 = vcmp.eq.f32.partialorder %v3758, 8.507059e+37
  %v3760 = vand.u32 %v3748, 2147483648
  %v3761 = vor.u32 1.1754944e-38, %v3760
  %v3762 = vsel %vm3759, %v3761, %v3757
  %v3763 = vmul.f32 %v3738, %v3762
  %v3764 = vmin.f32 %v3763, 1.0
  %v3765 = vmax.f32 %v3764, -1.0
  %v3766 = vmul.f32 %v3633, %v3633
  %v3767 = vmin.f32 16.0, %v3766
  %v3768 = vmul.f32 %v3767, 2.1237322e-06
  %v3769 = vadd.f32 %v3768, 0.00028619796
  %v3770 = vmul.f32 %v3767, %v3769
  %v3771 = vadd.f32 %v3770, 0.0036580483
  %v3772 = vmul.f32 %v3767, %v3771
  %v3773 = vadd.f32 %v3772, 0.05243302
  %v3774 = vmul.f32 %v3767, %v3773
  %v3775 = vadd.f32 %v3774, 0.18741608
  %v3776 = vmul.f32 %v3767, %v3775
  %v3777 = vadd.f32 %v3776, 1.1283791
  %v3778 = vmul.f32 %v3633, %v3777
  %v3779 = vmul.f32 %v3767, 3.8918573e-05
  %v3780 = vadd.f32 %v3779, 0.001143296
  %v3781 = vmul.f32 %v3767, %v3780
  %v3782 = vadd.f32 %v3781, 0.014752088
  %v3783 = vmul.f32 %v3767, %v3782
  %v3784 = vadd.f32 %v3783, 0.112945676
  %v3785 = vmul.f32 %v3767, %v3784
  %v3786 = vadd.f32 %v3785, 0.4994258
  %v3787 = vmul.f32 %v3767, %v3786
  %v3788 = vadd.f32 %v3787, 1.0
  %v3789 = vrcp.pop %v3788
  %v3790 = vmul.f32 %v3788, %v3789
  %v3791 = vsub.f32 1.0, %v3790
  %v3792 = vmul.f32 %v3789, %v3791
  %v3793 = vadd.f32 %v3789, %v3792
  %vm3794 = vweird.f32 %v3788
  %vm3795 = vweird.f32 %v3789
  %vm3796 = vmor %vm3794, %vm3795
  %v3797 = vsel %vm3796, %v3789, %v3793
  %v3798 = vand.u32 2147483647, %v3788
  %vm3799 = vcmp.eq.f32.partialorder %v3798, 8.507059e+37
  %v3800 = vand.u32 %v3788, 2147483648
  %v3801 = vor.u32 1.1754944e-38, %v3800
  %v3802 = vsel %vm3799, %v3801, %v3797
  %v3803 = vmul.f32 %v3778, %v3802
  %v3804 = vmin.f32 %v3803, 1.0
  %v3805 = vmax.f32 %v3804, -1.0
  %v3806 = vmul.f32 %v3634, %v3634
  %v3807 = vmin.f32 16.0, %v3806
  %v3808 = vmul.f32 %v3807, 2.1237322e-06
  %v3809 = vadd.f32 %v3808, 0.00028619796
  %v3810 = vmul.f32 %v3807, %v3809
  %v3811 = vadd.f32 %v3810, 0.0036580483
  %v3812 = vmul.f32 %v3807, %v3811
  %v3813 = vadd.f32 %v3812, 0.05243302
  %v3814 = vmul.f32 %v3807, %v3813
  %v3815 = vadd.f32 %v3814, 0.18741608
  %v3816 = vmul.f32 %v3807, %v3815
  %v3817 = vadd.f32 %v3816, 1.1283791
  %v3818 = vmul.f32 %v3634, %v3817
  %v3819 = vmul.f32 %v3807, 3.8918573e-05
  %v3820 = vadd.f32 %v3819, 0.001143296
  %v3821 = vmul.f32 %v3807, %v3820
  %v3822 = vadd.f32 %v3821, 0.014752088
  %v3823 = vmul.f32 %v3807, %v3822
  %v3824 = vadd.f32 %v3823, 0.112945676
  %v3825 = vmul.f32 %v3807, %v3824
  %v3826 = vadd.f32 %v3825, 0.4994258
  %v3827 = vmul.f32 %v3807, %v3826
  %v3828 = vadd.f32 %v3827, 1.0
  %v3829 = vrcp.pop %v3828
  %v3830 = vmul.f32 %v3828, %v3829
  %v3831 = vsub.f32 1.0, %v3830
  %v3832 = vmul.f32 %v3829, %v3831
  %v3833 = vadd.f32 %v3829, %v3832
  %vm3834 = vweird.f32 %v3828
  %vm3835 = vweird.f32 %v3829
  %vm3836 = vmor %vm3834, %vm3835
  %v3837 = vsel %vm3836, %v3829, %v3833
  %v3838 = vand.u32 2147483647, %v3828
  %vm3839 = vcmp.eq.f32.partialorder %v3838, 8.507059e+37
  %v3840 = vand.u32 %v3828, 2147483648
  %v3841 = vor.u32 1.1754944e-38, %v3840
  %v3842 = vsel %vm3839, %v3841, %v3837
  %v3843 = vmul.f32 %v3818, %v3842
  %v3844 = vmin.f32 %v3843, 1.0
  %v3845 = vmax.f32 %v3844, -1.0
  %v3846 = vmul.f32 %v3635, %v3635
  %v3847 = vmin.f32 16.0, %v3846
  %v3848 = vmul.f32 %v3847, 2.1237322e-06
  %v3849 = vadd.f32 %v3848, 0.00028619796
  %v3850 = vmul.f32 %v3847, %v3849
  %v3851 = vadd.f32 %v3850, 0.0036580483
  %v3852 = vmul.f32 %v3847, %v3851
  %v3853 = vadd.f32 %v3852, 0.05243302
  %v3854 = vmul.f32 %v3847, %v3853
  %v3855 = vadd.f32 %v3854, 0.18741608
  %v3856 = vmul.f32 %v3847, %v3855
  %v3857 = vadd.f32 %v3856, 1.1283791
  %v3858 = vmul.f32 %v3635, %v3857
  %v3859 = vmul.f32 %v3847, 3.8918573e-05
  %v3860 = vadd.f32 %v3859, 0.001143296
  %v3861 = vmul.f32 %v3847, %v3860
  %v3862 = vadd.f32 %v3861, 0.014752088
  %v3863 = vmul.f32 %v3847, %v3862
  %v3864 = vadd.f32 %v3863, 0.112945676
  %v3865 = vmul.f32 %v3847, %v3864
  %v3866 = vadd.f32 %v3865, 0.4994258
  %v3867 = vmul.f32 %v3847, %v3866
  %v3868 = vadd.f32 %v3867, 1.0
  %v3869 = vrcp.pop %v3868
  %v3870 = vmul.f32 %v3868, %v3869
  %v3871 = vsub.f32 1.0, %v3870
  %v3872 = vmul.f32 %v3869, %v3871
  %v3873 = vadd.f32 %v3869, %v3872
  %vm3874 = vweird.f32 %v3868
  %vm3875 = vweird.f32 %v3869
  %vm3876 = vmor %vm3874, %vm3875
  %v3877 = vsel %vm3876, %v3869, %v3873
  %v3878 = vand.u32 2147483647, %v3868
  %vm3879 = vcmp.eq.f32.partialorder %v3878, 8.507059e+37
  %v3880 = vand.u32 %v3868, 2147483648
  %v3881 = vor.u32 1.1754944e-38, %v3880
  %v3882 = vsel %vm3879, %v3881, %v3877
  %v3883 = vmul.f32 %v3858, %v3882
  %v3884 = vmin.f32 %v3883, 1.0
  %v3885 = vmax.f32 %v3884, -1.0
  %v3886 = vmul.f32 %v3636, %v3636
  %v3887 = vmin.f32 16.0, %v3886
  %v3888 = vmul.f32 %v3887, 2.1237322e-06
  %v3889 = vadd.f32 %v3888, 0.00028619796
  %v3890 = vmul.f32 %v3887, %v3889
  %v3891 = vadd.f32 %v3890, 0.0036580483
  %v3892 = vmul.f32 %v3887, %v3891
  %v3893 = vadd.f32 %v3892, 0.05243302
  %v3894 = vmul.f32 %v3887, %v3893
  %v3895 = vadd.f32 %v3894, 0.18741608
  %v3896 = vmul.f32 %v3887, %v3895
  %v3897 = vadd.f32 %v3896, 1.1283791
  %v3898 = vmul.f32 %v3636, %v3897
  %v3899 = vmul.f32 %v3887, 3.8918573e-05
  %v3900 = vadd.f32 %v3899, 0.001143296
  %v3901 = vmul.f32 %v3887, %v3900
  %v3902 = vadd.f32 %v3901, 0.014752088
  %v3903 = vmul.f32 %v3887, %v3902
  %v3904 = vadd.f32 %v3903, 0.112945676
  %v3905 = vmul.f32 %v3887, %v3904
  %v3906 = vadd.f32 %v3905, 0.4994258
  %v3907 = vmul.f32 %v3887, %v3906
  %v3908 = vadd.f32 %v3907, 1.0
  %v3909 = vrcp.pop %v3908
  %v3910 = vmul.f32 %v3908, %v3909
  %v3911 = vsub.f32 1.0, %v3910
  %v3912 = vmul.f32 %v3909, %v3911
  %v3913 = vadd.f32 %v3909, %v3912
  %vm3914 = vweird.f32 %v3908
  %vm3915 = vweird.f32 %v3909
  %vm3916 = vmor %vm3914, %vm3915
  %v3917 = vsel %vm3916, %v3909, %v3913
  %v3918 = vand.u32 2147483647, %v3908
  %vm3919 = vcmp.eq.f32.partialorder %v3918, 8.507059e+37
  %v3920 = vand.u32 %v3908, 2147483648
  %v3921 = vor.u32 1.1754944e-38, %v3920
  %v3922 = vsel %vm3919, %v3921, %v3917
  %v3923 = vmul.f32 %v3898, %v3922
  %v3924 = vmin.f32 %v3923, 1.0
  %v3925 = vmax.f32 %v3924, -1.0
  %v3926 = vmul.f32 %v3637, %v3637
  %v3927 = vmin.f32 16.0, %v3926
  %v3928 = vmul.f32 %v3927, 2.1237322e-06
  %v3929 = vadd.f32 %v3928, 0.00028619796
  %v3930 = vmul.f32 %v3927, %v3929
  %v3931 = vadd.f32 %v3930, 0.0036580483
  %v3932 = vmul.f32 %v3927, %v3931
  %v3933 = vadd.f32 %v3932, 0.05243302
  %v3934 = vmul.f32 %v3927, %v3933
  %v3935 = vadd.f32 %v3934, 0.18741608
  %v3936 = vmul.f32 %v3927, %v3935
  %v3937 = vadd.f32 %v3936, 1.1283791
  %v3938 = vmul.f32 %v3637, %v3937
  %v3939 = vmul.f32 %v3927, 3.8918573e-05
  %v3940 = vadd.f32 %v3939, 0.001143296
  %v3941 = vmul.f32 %v3927, %v3940
  %v3942 = vadd.f32 %v3941, 0.014752088
  %v3943 = vmul.f32 %v3927, %v3942
  %v3944 = vadd.f32 %v3943, 0.112945676
  %v3945 = vmul.f32 %v3927, %v3944
  %v3946 = vadd.f32 %v3945, 0.4994258
  %v3947 = vmul.f32 %v3927, %v3946
  %v3948 = vadd.f32 %v3947, 1.0
  %v3949 = vrcp.pop %v3948
  %v3950 = vmul.f32 %v3948, %v3949
  %v3951 = vsub.f32 1.0, %v3950
  %v3952 = vmul.f32 %v3949, %v3951
  %v3953 = vadd.f32 %v3949, %v3952
  %vm3954 = vweird.f32 %v3948
  %vm3955 = vweird.f32 %v3949
  %vm3956 = vmor %vm3954, %vm3955
  %v3957 = vsel %vm3956, %v3949, %v3953
  %v3958 = vand.u32 2147483647, %v3948
  %vm3959 = vcmp.eq.f32.partialorder %v3958, 8.507059e+37
  %v3960 = vand.u32 %v3948, 2147483648
  %v3961 = vor.u32 1.1754944e-38, %v3960
  %v3962 = vsel %vm3959, %v3961, %v3957
  %v3963 = vmul.f32 %v3938, %v3962
  %v3964 = vmin.f32 %v3963, 1.0
  %v3965 = vmax.f32 %v3964, -1.0
  %v3966 = vmul.f32 %v3638, %v3638
  %v3967 = vmin.f32 16.0, %v3966
  %v3968 = vmul.f32 %v3967, 2.1237322e-06
  %v3969 = vadd.f32 %v3968, 0.00028619796
  %v3970 = vmul.f32 %v3967, %v3969
  %v3971 = vadd.f32 %v3970, 0.0036580483
  %v3972 = vmul.f32 %v3967, %v3971
  %v3973 = vadd.f32 %v3972, 0.05243302
  %v3974 = vmul.f32 %v3967, %v3973
  %v3975 = vadd.f32 %v3974, 0.18741608
  %v3976 = vmul.f32 %v3967, %v3975
  %v3977 = vadd.f32 %v3976, 1.1283791
  %v3978 = vmul.f32 %v3638, %v3977
  %v3979 = vmul.f32 %v3967, 3.8918573e-05
  %v3980 = vadd.f32 %v3979, 0.001143296
  %v3981 = vmul.f32 %v3967, %v3980
  %v3982 = vadd.f32 %v3981, 0.014752088
  %v3983 = vmul.f32 %v3967, %v3982
  %v3984 = vadd.f32 %v3983, 0.112945676
  %v3985 = vmul.f32 %v3967, %v3984
  %v3986 = vadd.f32 %v3985, 0.4994258
  %v3987 = vmul.f32 %v3967, %v3986
  %v3988 = vadd.f32 %v3987, 1.0
  %v3989 = vrcp.pop %v3988
  %v3990 = vmul.f32 %v3988, %v3989
  %v3991 = vsub.f32 1.0, %v3990
  %v3992 = vmul.f32 %v3989, %v3991
  %v3993 = vadd.f32 %v3989, %v3992
  %vm3994 = vweird.f32 %v3988
  %vm3995 = vweird.f32 %v3989
  %vm3996 = vmor %vm3994, %vm3995
  %v3997 = vsel %vm3996, %v3989, %v3993
  %v3998 = vand.u32 2147483647, %v3988
  %vm3999 = vcmp.eq.f32.partialorder %v3998, 8.507059e+37
  %v4000 = vand.u32 %v3988, 2147483648
  %v4001 = vor.u32 1.1754944e-38, %v4000
  %v4002 = vsel %vm3999, %v4001, %v3997
  %v4003 = vmul.f32 %v3978, %v4002
  %v4004 = vmin.f32 %v4003, 1.0
  %v4005 = vmax.f32 %v4004, -1.0
  %v4006 = vmul.f32 %v3639, %v3639
  %v4007 = vmin.f32 16.0, %v4006
  %v4008 = vmul.f32 %v4007, 2.1237322e-06
  %v4009 = vadd.f32 %v4008, 0.00028619796
  %v4010 = vmul.f32 %v4007, %v4009
  %v4011 = vadd.f32 %v4010, 0.0036580483
  %v4012 = vmul.f32 %v4007, %v4011
  %v4013 = vadd.f32 %v4012, 0.05243302
  %v4014 = vmul.f32 %v4007, %v4013
  %v4015 = vadd.f32 %v4014, 0.18741608
  %v4016 = vmul.f32 %v4007, %v4015
  %v4017 = vadd.f32 %v4016, 1.1283791
  %v4018 = vmul.f32 %v3639, %v4017
  %v4019 = vmul.f32 %v4007, 3.8918573e-05
  %v4020 = vadd.f32 %v4019, 0.001143296
  %v4021 = vmul.f32 %v4007, %v4020
  %v4022 = vadd.f32 %v4021, 0.014752088
  %v4023 = vmul.f32 %v4007, %v4022
  %v4024 = vadd.f32 %v4023, 0.112945676
  %v4025 = vmul.f32 %v4007, %v4024
  %v4026 = vadd.f32 %v4025, 0.4994258
  %v4027 = vmul.f32 %v4007, %v4026
  %v4028 = vadd.f32 %v4027, 1.0
  %v4029 = vrcp.pop %v4028
  %v4030 = vmul.f32 %v4028, %v4029
  %v4031 = vsub.f32 1.0, %v4030
  %v4032 = vmul.f32 %v4029, %v4031
  %v4033 = vadd.f32 %v4029, %v4032
  %vm4034 = vweird.f32 %v4028
  %vm4035 = vweird.f32 %v4029
  %vm4036 = vmor %vm4034, %vm4035
  %v4037 = vsel %vm4036, %v4029, %v4033
  %v4038 = vand.u32 2147483647, %v4028
  %vm4039 = vcmp.eq.f32.partialorder %v4038, 8.507059e+37
  %v4040 = vand.u32 %v4028, 2147483648
  %v4041 = vor.u32 1.1754944e-38, %v4040
  %v4042 = vsel %vm4039, %v4041, %v4037
  %v4043 = vmul.f32 %v4018, %v4042
  %v4044 = vmin.f32 %v4043, 1.0
  %v4045 = vmax.f32 %v4044, -1.0
  %v4046 = vmul.f32 %v3640, %v3640
  %v4047 = vmin.f32 16.0, %v4046
  %v4048 = vmul.f32 %v4047, 2.1237322e-06
  %v4049 = vadd.f32 %v4048, 0.00028619796
  %v4050 = vmul.f32 %v4047, %v4049
  %v4051 = vadd.f32 %v4050, 0.0036580483
  %v4052 = vmul.f32 %v4047, %v4051
  %v4053 = vadd.f32 %v4052, 0.05243302
  %v4054 = vmul.f32 %v4047, %v4053
  %v4055 = vadd.f32 %v4054, 0.18741608
  %v4056 = vmul.f32 %v4047, %v4055
  %v4057 = vadd.f32 %v4056, 1.1283791
  %v4058 = vmul.f32 %v3640, %v4057
  %v4059 = vmul.f32 %v4047, 3.8918573e-05
  %v4060 = vadd.f32 %v4059, 0.001143296
  %v4061 = vmul.f32 %v4047, %v4060
  %v4062 = vadd.f32 %v4061, 0.014752088
  %v4063 = vmul.f32 %v4047, %v4062
  %v4064 = vadd.f32 %v4063, 0.112945676
  %v4065 = vmul.f32 %v4047, %v4064
  %v4066 = vadd.f32 %v4065, 0.4994258
  %v4067 = vmul.f32 %v4047, %v4066
  %v4068 = vadd.f32 %v4067, 1.0
  %v4069 = vrcp.pop %v4068
  %v4070 = vmul.f32 %v4068, %v4069
  %v4071 = vsub.f32 1.0, %v4070
  %v4072 = vmul.f32 %v4069, %v4071
  %v4073 = vadd.f32 %v4069, %v4072
  %vm4074 = vweird.f32 %v4068
  %vm4075 = vweird.f32 %v4069
  %vm4076 = vmor %vm4074, %vm4075
  %v4077 = vsel %vm4076, %v4069, %v4073
  %v4078 = vand.u32 2147483647, %v4068
  %vm4079 = vcmp.eq.f32.partialorder %v4078, 8.507059e+37
  %v4080 = vand.u32 %v4068, 2147483648
  %v4081 = vor.u32 1.1754944e-38, %v4080
  %v4082 = vsel %vm4079, %v4081, %v4077
  %v4083 = vmul.f32 %v4058, %v4082
  %v4084 = vmin.f32 %v4083, 1.0
  %v4085 = vmax.f32 %v4084, -1.0
  %v4086 = vmul.f32 %v3641, %v3641
  %v4087 = vmin.f32 16.0, %v4086
  %v4088 = vmul.f32 %v4087, 2.1237322e-06
  %v4089 = vadd.f32 %v4088, 0.00028619796
  %v4090 = vmul.f32 %v4087, %v4089
  %v4091 = vadd.f32 %v4090, 0.0036580483
  %v4092 = vmul.f32 %v4087, %v4091
  %v4093 = vadd.f32 %v4092, 0.05243302
  %v4094 = vmul.f32 %v4087, %v4093
  %v4095 = vadd.f32 %v4094, 0.18741608
  %v4096 = vmul.f32 %v4087, %v4095
  %v4097 = vadd.f32 %v4096, 1.1283791
  %v4098 = vmul.f32 %v3641, %v4097
  %v4099 = vmul.f32 %v4087, 3.8918573e-05
  %v4100 = vadd.f32 %v4099, 0.001143296
  %v4101 = vmul.f32 %v4087, %v4100
  %v4102 = vadd.f32 %v4101, 0.014752088
  %v4103 = vmul.f32 %v4087, %v4102
  %v4104 = vadd.f32 %v4103, 0.112945676
  %v4105 = vmul.f32 %v4087, %v4104
  %v4106 = vadd.f32 %v4105, 0.4994258
  %v4107 = vmul.f32 %v4087, %v4106
  %v4108 = vadd.f32 %v4107, 1.0
  %v4109 = vrcp.pop %v4108
  %v4110 = vmul.f32 %v4108, %v4109
  %v4111 = vsub.f32 1.0, %v4110
  %v4112 = vmul.f32 %v4109, %v4111
  %v4113 = vadd.f32 %v4109, %v4112
  %vm4114 = vweird.f32 %v4108
  %vm4115 = vweird.f32 %v4109
  %vm4116 = vmor %vm4114, %vm4115
  %v4117 = vsel %vm4116, %v4109, %v4113
  %v4118 = vand.u32 2147483647, %v4108
  %vm4119 = vcmp.eq.f32.partialorder %v4118, 8.507059e+37
  %v4120 = vand.u32 %v4108, 2147483648
  %v4121 = vor.u32 1.1754944e-38, %v4120
  %v4122 = vsel %vm4119, %v4121, %v4117
  %v4123 = vmul.f32 %v4098, %v4122
  %v4124 = vmin.f32 %v4123, 1.0
  %v4125 = vmax.f32 %v4124, -1.0
  %v4126 = vmul.f32 %v3642, %v3642
  %v4127 = vmin.f32 16.0, %v4126
  %v4128 = vmul.f32 %v4127, 2.1237322e-06
  %v4129 = vadd.f32 %v4128, 0.00028619796
  %v4130 = vmul.f32 %v4127, %v4129
  %v4131 = vadd.f32 %v4130, 0.0036580483
  %v4132 = vmul.f32 %v4127, %v4131
  %v4133 = vadd.f32 %v4132, 0.05243302
  %v4134 = vmul.f32 %v4127, %v4133
  %v4135 = vadd.f32 %v4134, 0.18741608
  %v4136 = vmul.f32 %v4127, %v4135
  %v4137 = vadd.f32 %v4136, 1.1283791
  %v4138 = vmul.f32 %v3642, %v4137
  %v4139 = vmul.f32 %v4127, 3.8918573e-05
  %v4140 = vadd.f32 %v4139, 0.001143296
  %v4141 = vmul.f32 %v4127, %v4140
  %v4142 = vadd.f32 %v4141, 0.014752088
  %v4143 = vmul.f32 %v4127, %v4142
  %v4144 = vadd.f32 %v4143, 0.112945676
  %v4145 = vmul.f32 %v4127, %v4144
  %v4146 = vadd.f32 %v4145, 0.4994258
  %v4147 = vmul.f32 %v4127, %v4146
  %v4148 = vadd.f32 %v4147, 1.0
  %v4149 = vrcp.pop %v4148
  %v4150 = vmul.f32 %v4148, %v4149
  %v4151 = vsub.f32 1.0, %v4150
  %v4152 = vmul.f32 %v4149, %v4151
  %v4153 = vadd.f32 %v4149, %v4152
  %vm4154 = vweird.f32 %v4148
  %vm4155 = vweird.f32 %v4149
  %vm4156 = vmor %vm4154, %vm4155
  %v4157 = vsel %vm4156, %v4149, %v4153
  %v4158 = vand.u32 2147483647, %v4148
  %vm4159 = vcmp.eq.f32.partialorder %v4158, 8.507059e+37
  %v4160 = vand.u32 %v4148, 2147483648
  %v4161 = vor.u32 1.1754944e-38, %v4160
  %v4162 = vsel %vm4159, %v4161, %v4157
  %v4163 = vmul.f32 %v4138, %v4162
  %v4164 = vmin.f32 %v4163, 1.0
  %v4165 = vmax.f32 %v4164, -1.0
  %v4166 = vmul.f32 %v3643, %v3643
  %v4167 = vmin.f32 16.0, %v4166
  %v4168 = vmul.f32 %v4167, 2.1237322e-06
  %v4169 = vadd.f32 %v4168, 0.00028619796
  %v4170 = vmul.f32 %v4167, %v4169
  %v4171 = vadd.f32 %v4170, 0.0036580483
  %v4172 = vmul.f32 %v4167, %v4171
  %v4173 = vadd.f32 %v4172, 0.05243302
  %v4174 = vmul.f32 %v4167, %v4173
  %v4175 = vadd.f32 %v4174, 0.18741608
  %v4176 = vmul.f32 %v4167, %v4175
  %v4177 = vadd.f32 %v4176, 1.1283791
  %v4178 = vmul.f32 %v3643, %v4177
  %v4179 = vmul.f32 %v4167, 3.8918573e-05
  %v4180 = vadd.f32 %v4179, 0.001143296
  %v4181 = vmul.f32 %v4167, %v4180
  %v4182 = vadd.f32 %v4181, 0.014752088
  %v4183 = vmul.f32 %v4167, %v4182
  %v4184 = vadd.f32 %v4183, 0.112945676
  %v4185 = vmul.f32 %v4167, %v4184
  %v4186 = vadd.f32 %v4185, 0.4994258
  %v4187 = vmul.f32 %v4167, %v4186
  %v4188 = vadd.f32 %v4187, 1.0
  %v4189 = vrcp.pop %v4188
  %v4190 = vmul.f32 %v4188, %v4189
  %v4191 = vsub.f32 1.0, %v4190
  %v4192 = vmul.f32 %v4189, %v4191
  %v4193 = vadd.f32 %v4189, %v4192
  %vm4194 = vweird.f32 %v4188
  %vm4195 = vweird.f32 %v4189
  %vm4196 = vmor %vm4194, %vm4195
  %v4197 = vsel %vm4196, %v4189, %v4193
  %v4198 = vand.u32 2147483647, %v4188
  %vm4199 = vcmp.eq.f32.partialorder %v4198, 8.507059e+37
  %v4200 = vand.u32 %v4188, 2147483648
  %v4201 = vor.u32 1.1754944e-38, %v4200
  %v4202 = vsel %vm4199, %v4201, %v4197
  %v4203 = vmul.f32 %v4178, %v4202
  %v4204 = vmin.f32 %v4203, 1.0
  %v4205 = vmax.f32 %v4204, -1.0
  %v4206 = vmul.f32 %v3644, %v3644
  %v4207 = vmin.f32 16.0, %v4206
  %v4208 = vmul.f32 %v4207, 2.1237322e-06
  %v4209 = vadd.f32 %v4208, 0.00028619796
  %v4210 = vmul.f32 %v4207, %v4209
  %v4211 = vadd.f32 %v4210, 0.0036580483
  %v4212 = vmul.f32 %v4207, %v4211
  %v4213 = vadd.f32 %v4212, 0.05243302
  %v4214 = vmul.f32 %v4207, %v4213
  %v4215 = vadd.f32 %v4214, 0.18741608
  %v4216 = vmul.f32 %v4207, %v4215
  %v4217 = vadd.f32 %v4216, 1.1283791
  %v4218 = vmul.f32 %v3644, %v4217
  %v4219 = vmul.f32 %v4207, 3.8918573e-05
  %v4220 = vadd.f32 %v4219, 0.001143296
  %v4221 = vmul.f32 %v4207, %v4220
  %v4222 = vadd.f32 %v4221, 0.014752088
  %v4223 = vmul.f32 %v4207, %v4222
  %v4224 = vadd.f32 %v4223, 0.112945676
  %v4225 = vmul.f32 %v4207, %v4224
  %v4226 = vadd.f32 %v4225, 0.4994258
  %v4227 = vmul.f32 %v4207, %v4226
  %v4228 = vadd.f32 %v4227, 1.0
  %v4229 = vrcp.pop %v4228
  %v4230 = vmul.f32 %v4228, %v4229
  %v4231 = vsub.f32 1.0, %v4230
  %v4232 = vmul.f32 %v4229, %v4231
  %v4233 = vadd.f32 %v4229, %v4232
  %vm4234 = vweird.f32 %v4228
  %vm4235 = vweird.f32 %v4229
  %vm4236 = vmor %vm4234, %vm4235
  %v4237 = vsel %vm4236, %v4229, %v4233
  %v4238 = vand.u32 2147483647, %v4228
  %vm4239 = vcmp.eq.f32.partialorder %v4238, 8.507059e+37
  %v4240 = vand.u32 %v4228, 2147483648
  %v4241 = vor.u32 1.1754944e-38, %v4240
  %v4242 = vsel %vm4239, %v4241, %v4237
  %v4243 = vmul.f32 %v4218, %v4242
  %v4244 = vmin.f32 %v4243, 1.0
  %v4245 = vmax.f32 %v4244, -1.0
  %v4246 = vmul.f32 %v3645, %v3645
  %v4247 = vmin.f32 16.0, %v4246
  %v4248 = vmul.f32 %v4247, 2.1237322e-06
  %v4249 = vadd.f32 %v4248, 0.00028619796
  %v4250 = vmul.f32 %v4247, %v4249
  %v4251 = vadd.f32 %v4250, 0.0036580483
  %v4252 = vmul.f32 %v4247, %v4251
  %v4253 = vadd.f32 %v4252, 0.05243302
  %v4254 = vmul.f32 %v4247, %v4253
  %v4255 = vadd.f32 %v4254, 0.18741608
  %v4256 = vmul.f32 %v4247, %v4255
  %v4257 = vadd.f32 %v4256, 1.1283791
  %v4258 = vmul.f32 %v3645, %v4257
  %v4259 = vmul.f32 %v4247, 3.8918573e-05
  %v4260 = vadd.f32 %v4259, 0.001143296
  %v4261 = vmul.f32 %v4247, %v4260
  %v4262 = vadd.f32 %v4261, 0.014752088
  %v4263 = vmul.f32 %v4247, %v4262
  %v4264 = vadd.f32 %v4263, 0.112945676
  %v4265 = vmul.f32 %v4247, %v4264
  %v4266 = vadd.f32 %v4265, 0.4994258
  %v4267 = vmul.f32 %v4247, %v4266
  %v4268 = vadd.f32 %v4267, 1.0
  %v4269 = vrcp.pop %v4268
  %v4270 = vmul.f32 %v4268, %v4269
  %v4271 = vsub.f32 1.0, %v4270
  %v4272 = vmul.f32 %v4269, %v4271
  %v4273 = vadd.f32 %v4269, %v4272
  %vm4274 = vweird.f32 %v4268
  %vm4275 = vweird.f32 %v4269
  %vm4276 = vmor %vm4274, %vm4275
  %v4277 = vsel %vm4276, %v4269, %v4273
  %v4278 = vand.u32 2147483647, %v4268
  %vm4279 = vcmp.eq.f32.partialorder %v4278, 8.507059e+37
  %v4280 = vand.u32 %v4268, 2147483648
  %v4281 = vor.u32 1.1754944e-38, %v4280
  %v4282 = vsel %vm4279, %v4281, %v4277
  %v4283 = vmul.f32 %v4258, %v4282
  %v4284 = vmin.f32 %v4283, 1.0
  %v4285 = vmax.f32 %v4284, -1.0
  %v4286 = vadd.f32 %v3685, 1.0
  %v4287 = vadd.f32 %v3725, 1.0
  %v4288 = vadd.f32 %v3765, 1.0
  %v4289 = vadd.f32 %v3805, 1.0
  %v4290 = vadd.f32 %v3845, 1.0
  %v4291 = vadd.f32 %v3885, 1.0
  %v4292 = vadd.f32 %v3925, 1.0
  %v4293 = vadd.f32 %v3965, 1.0
  %v4294 = vadd.f32 %v4005, 1.0
  %v4295 = vadd.f32 %v4045, 1.0
  %v4296 = vadd.f32 %v4085, 1.0
  %v4297 = vadd.f32 %v4125, 1.0
  %v4298 = vadd.f32 %v4165, 1.0
  %v4299 = vadd.f32 %v4205, 1.0
  %v4300 = vadd.f32 %v4245, 1.0
  %v4301 = vadd.f32 %v4285, 1.0
  %v4302 = vmul.f32 %v3614, %v4286
  %v4303 = vmul.f32 %v3615, %v4287
  %v4304 = vmul.f32 %v3616, %v4288
  %v4305 = vmul.f32 %v3617, %v4289
  %v4306 = vmul.f32 %v3618, %v4290
  %v4307 = vmul.f32 %v3619, %v4291
  %v4308 = vmul.f32 %v3620, %v4292
  %v4309 = vmul.f32 %v3621, %v4293
  %v4310 = vmul.f32 %v3622, %v4294
  %v4311 = vmul.f32 %v3623, %v4295
  %v4312 = vmul.f32 %v3624, %v4296
  %v4313 = vmul.f32 %v3625, %v4297
  %v4314 = vmul.f32 %v3626, %v4298
  %v4315 = vmul.f32 %v3627, %v4299
  %v4316 = vmul.f32 %v3628, %v4300
  %v4317 = vmul.f32 %v3629, %v4301
  %v4318 = vperm.slane %v65, 4
  %v4320 = vsel %vm410, %v4302, 0
  %v4323 = vsel %vm410, %v4303, 0
  %v4326 = vsel %vm410, %v4304, 0
  %v4329 = vsel %vm410, %v4305, 0
  %v4332 = vsel %vm410, %v4306, 0
  %v4335 = vsel %vm410, %v4307, 0
  %v4338 = vsel %vm410, %v4308, 0
  %v4341 = vsel %vm410, %v4309, 0
  %v4344 = vsel %vm410, %v4310, 0
  %v4347 = vsel %vm410, %v4311, 0
  %v4350 = vsel %vm410, %v4312, 0
  %v4353 = vsel %vm410, %v4313, 0
  %v4356 = vsel %vm410, %v4314, 0
  %v4359 = vsel %vm410, %v4315, 0
  %v4362 = vsel %vm410, %v4316, 0
  %v4365 = vsel %vm410, %v4317, 0
  %4367 = vmatpush.msra.mxu0 0.0
  %4368 = vmatpush.msra.mxu0 0.0
  %4369 = vmatpush.msra.mxu0 0.0
  %4370 = vmatpush.msra.mxu0 0.0
  %4371 = vmatpush.msra.mxu0 0.0
  %4372 = vmatpush.msra.mxu0 0.0
  %4373 = vmatpush.msra.mxu0 0.0
  %4374 = vmatpush.msra.mxu0 0.0
  %4375 = vmatpush.msra.mxu0 %v64
  %4376 = vmatpush.msra.mxu0 %v63
  %4377 = vmatpush.msra.mxu0 %v62
  %4378 = vmatpush.msra.mxu0 %v61
  %4379 = vmatpush.msra.mxu0 %v60
  %4380 = vmatpush.msra.mxu0 %v59
  %4381 = vmatpush.msra.mxu0 %v58
  %4382 = vmatpush.msra.mxu0 %v57
  %4383 = vmatmul.f32.gmra.mxu0 %v4320
  %v4384 = vpop.f32.mrf.mxu0
  %v4385 = vadd.f32 %v4318, %v4384
  %4386 = vmatmul.f32.gmra.mxu0 %v4323
  %v4387 = vpop.f32.mrf.mxu0
  %v4388 = vadd.f32 %v4318, %v4387
  %4389 = vmatmul.f32.gmra.mxu0 %v4326
  %v4390 = vpop.f32.mrf.mxu0
  %v4391 = vadd.f32 %v4318, %v4390
  %4392 = vmatmul.f32.gmra.mxu0 %v4329
  %v4393 = vpop.f32.mrf.mxu0
  %v4394 = vadd.f32 %v4318, %v4393
  %4395 = vmatmul.f32.gmra.mxu0 %v4332
  %v4396 = vpop.f32.mrf.mxu0
  %v4397 = vadd.f32 %v4318, %v4396
  %4398 = vmatmul.f32.gmra.mxu0 %v4335
  %v4399 = vpop.f32.mrf.mxu0
  %v4400 = vadd.f32 %v4318, %v4399
  %4401 = vmatmul.f32.gmra.mxu0 %v4338
  %v4402 = vpop.f32.mrf.mxu0
  %v4403 = vadd.f32 %v4318, %v4402
  %4404 = vmatmul.f32.gmra.mxu0 %v4341
  %v4405 = vpop.f32.mrf.mxu0
  %v4406 = vadd.f32 %v4318, %v4405
  %4407 = vmatmul.f32.gmra.mxu0 %v4344
  %v4408 = vpop.f32.mrf.mxu0
  %v4409 = vadd.f32 %v4318, %v4408
  %4410 = vmatmul.f32.gmra.mxu0 %v4347
  %v4411 = vpop.f32.mrf.mxu0
  %v4412 = vadd.f32 %v4318, %v4411
  %4413 = vmatmul.f32.gmra.mxu0 %v4350
  %v4414 = vpop.f32.mrf.mxu0
  %v4415 = vadd.f32 %v4318, %v4414
  %4416 = vmatmul.f32.gmra.mxu0 %v4353
  %v4417 = vpop.f32.mrf.mxu0
  %v4418 = vadd.f32 %v4318, %v4417
  %4419 = vmatmul.f32.gmra.mxu0 %v4356
  %v4420 = vpop.f32.mrf.mxu0
  %v4421 = vadd.f32 %v4318, %v4420
  %4422 = vmatmul.f32.gmra.mxu0 %v4359
  %v4423 = vpop.f32.mrf.mxu0
  %v4424 = vadd.f32 %v4318, %v4423
  %4425 = vmatmul.f32.gmra.mxu0 %v4362
  %v4426 = vpop.f32.mrf.mxu0
  %v4427 = vadd.f32 %v4318, %v4426
  %4428 = vmatmul.f32.gmra.mxu0 %v4365
  %v4429 = vpop.f32.mrf.mxu0
  %v4430 = vadd.f32 %v4318, %v4429
  %4431 = vdwg.mxu0
  %v4432 = vadd.f32 %v3484, %v4385
  %v4433 = vadd.f32 %v3485, %v4388
  %v4434 = vadd.f32 %v3486, %v4391
  %v4435 = vadd.f32 %v3487, %v4394
  %v4436 = vadd.f32 %v3488, %v4397
  %v4437 = vadd.f32 %v3489, %v4400
  %v4438 = vadd.f32 %v3490, %v4403
  %v4439 = vadd.f32 %v3491, %v4406
  %v4440 = vadd.f32 %v3492, %v4409
  %v4441 = vadd.f32 %v3493, %v4412
  %v4442 = vadd.f32 %v3494, %v4415
  %v4443 = vadd.f32 %v3495, %v4418
  %v4444 = vadd.f32 %v3496, %v4421
  %v4445 = vadd.f32 %v3497, %v4424
  %v4446 = vadd.f32 %v3498, %v4427
  %v4447 = vadd.f32 %v3499, %v4430
  %v4448 = vsel %vm84, %v4432, 0.0
  %4449 = vadd.xlane.f32.xlu0 %v4448
  %v4450 = vpop.xlane.xlu0 %4449
  %v4451 = vsel %vm84, %v4433, 0.0
  %4452 = vadd.xlane.f32.xlu0 %v4451
  %v4453 = vpop.xlane.xlu0 %4452
  %v4454 = vsel %vm84, %v4434, 0.0
  %4455 = vadd.xlane.f32.xlu0 %v4454
  %v4456 = vpop.xlane.xlu0 %4455
  %v4457 = vsel %vm84, %v4435, 0.0
  %4458 = vadd.xlane.f32.xlu0 %v4457
  %v4459 = vpop.xlane.xlu0 %4458
  %v4460 = vsel %vm84, %v4436, 0.0
  %4461 = vadd.xlane.f32.xlu0 %v4460
  %v4462 = vpop.xlane.xlu0 %4461
  %v4463 = vsel %vm84, %v4437, 0.0
  %4464 = vadd.xlane.f32.xlu0 %v4463
  %v4465 = vpop.xlane.xlu0 %4464
  %v4466 = vsel %vm84, %v4438, 0.0
  %4467 = vadd.xlane.f32.xlu0 %v4466
  %v4468 = vpop.xlane.xlu0 %4467
  %v4469 = vsel %vm84, %v4439, 0.0
  %4470 = vadd.xlane.f32.xlu0 %v4469
  %v4471 = vpop.xlane.xlu0 %4470
  %v4472 = vsel %vm84, %v4440, 0.0
  %4473 = vadd.xlane.f32.xlu0 %v4472
  %v4474 = vpop.xlane.xlu0 %4473
  %v4475 = vsel %vm84, %v4441, 0.0
  %4476 = vadd.xlane.f32.xlu0 %v4475
  %v4477 = vpop.xlane.xlu0 %4476
  %v4478 = vsel %vm84, %v4442, 0.0
  %4479 = vadd.xlane.f32.xlu0 %v4478
  %v4480 = vpop.xlane.xlu0 %4479
  %v4481 = vsel %vm84, %v4443, 0.0
  %4482 = vadd.xlane.f32.xlu0 %v4481
  %v4483 = vpop.xlane.xlu0 %4482
  %v4484 = vsel %vm84, %v4444, 0.0
  %4485 = vadd.xlane.f32.xlu0 %v4484
  %v4486 = vpop.xlane.xlu0 %4485
  %v4487 = vsel %vm84, %v4445, 0.0
  %4488 = vadd.xlane.f32.xlu0 %v4487
  %v4489 = vpop.xlane.xlu0 %4488
  %v4490 = vsel %vm84, %v4446, 0.0
  %4491 = vadd.xlane.f32.xlu0 %v4490
  %v4492 = vpop.xlane.xlu0 %4491
  %v4493 = vsel %vm84, %v4447, 0.0
  %4494 = vadd.xlane.f32.xlu0 %v4493
  %v4495 = vpop.xlane.xlu0 %4494
  %v4496 = vmul.f32 %v4450, %v3161
  %v4497 = vmul.f32 %v4453, %v3161
  %v4498 = vmul.f32 %v4456, %v3161
  %v4499 = vmul.f32 %v4459, %v3161
  %v4500 = vmul.f32 %v4462, %v3161
  %v4501 = vmul.f32 %v4465, %v3161
  %v4502 = vmul.f32 %v4468, %v3161
  %v4503 = vmul.f32 %v4471, %v3161
  %v4504 = vmul.f32 %v4474, %v3161
  %v4505 = vmul.f32 %v4477, %v3161
  %v4506 = vmul.f32 %v4480, %v3161
  %v4507 = vmul.f32 %v4483, %v3161
  %v4508 = vmul.f32 %v4486, %v3161
  %v4509 = vmul.f32 %v4489, %v3161
  %v4510 = vmul.f32 %v4492, %v3161
  %v4511 = vmul.f32 %v4495, %v3161
  %v4512 = vsub.f32 %v4432, %v4496
  %v4513 = vsub.f32 %v4433, %v4497
  %v4514 = vsub.f32 %v4434, %v4498
  %v4515 = vsub.f32 %v4435, %v4499
  %v4516 = vsub.f32 %v4436, %v4500
  %v4517 = vsub.f32 %v4437, %v4501
  %v4518 = vsub.f32 %v4438, %v4502
  %v4519 = vsub.f32 %v4439, %v4503
  %v4520 = vsub.f32 %v4440, %v4504
  %v4521 = vsub.f32 %v4441, %v4505
  %v4522 = vsub.f32 %v4442, %v4506
  %v4523 = vsub.f32 %v4443, %v4507
  %v4524 = vsub.f32 %v4444, %v4508
  %v4525 = vsub.f32 %v4445, %v4509
  %v4526 = vsub.f32 %v4446, %v4510
  %v4527 = vsub.f32 %v4447, %v4511
  %v4528 = vmul.f32 %v4512, %v4512
  %v4529 = vmul.f32 %v4513, %v4513
  %v4530 = vmul.f32 %v4514, %v4514
  %v4531 = vmul.f32 %v4515, %v4515
  %v4532 = vmul.f32 %v4516, %v4516
  %v4533 = vmul.f32 %v4517, %v4517
  %v4534 = vmul.f32 %v4518, %v4518
  %v4535 = vmul.f32 %v4519, %v4519
  %v4536 = vmul.f32 %v4520, %v4520
  %v4537 = vmul.f32 %v4521, %v4521
  %v4538 = vmul.f32 %v4522, %v4522
  %v4539 = vmul.f32 %v4523, %v4523
  %v4540 = vmul.f32 %v4524, %v4524
  %v4541 = vmul.f32 %v4525, %v4525
  %v4542 = vmul.f32 %v4526, %v4526
  %v4543 = vmul.f32 %v4527, %v4527
  %v4544 = vsel %vm84, %v4528, 0.0
  %4545 = vadd.xlane.f32.xlu0 %v4544
  %v4546 = vpop.xlane.xlu0 %4545
  %v4547 = vsel %vm84, %v4529, 0.0
  %4548 = vadd.xlane.f32.xlu0 %v4547
  %v4549 = vpop.xlane.xlu0 %4548
  %v4550 = vsel %vm84, %v4530, 0.0
  %4551 = vadd.xlane.f32.xlu0 %v4550
  %v4552 = vpop.xlane.xlu0 %4551
  %v4553 = vsel %vm84, %v4531, 0.0
  %4554 = vadd.xlane.f32.xlu0 %v4553
  %v4555 = vpop.xlane.xlu0 %4554
  %v4556 = vsel %vm84, %v4532, 0.0
  %4557 = vadd.xlane.f32.xlu0 %v4556
  %v4558 = vpop.xlane.xlu0 %4557
  %v4559 = vsel %vm84, %v4533, 0.0
  %4560 = vadd.xlane.f32.xlu0 %v4559
  %v4561 = vpop.xlane.xlu0 %4560
  %v4562 = vsel %vm84, %v4534, 0.0
  %4563 = vadd.xlane.f32.xlu0 %v4562
  %v4564 = vpop.xlane.xlu0 %4563
  %v4565 = vsel %vm84, %v4535, 0.0
  %4566 = vadd.xlane.f32.xlu0 %v4565
  %v4567 = vpop.xlane.xlu0 %4566
  %v4568 = vsel %vm84, %v4536, 0.0
  %4569 = vadd.xlane.f32.xlu0 %v4568
  %v4570 = vpop.xlane.xlu0 %4569
  %v4571 = vsel %vm84, %v4537, 0.0
  %4572 = vadd.xlane.f32.xlu0 %v4571
  %v4573 = vpop.xlane.xlu0 %4572
  %v4574 = vsel %vm84, %v4538, 0.0
  %4575 = vadd.xlane.f32.xlu0 %v4574
  %v4576 = vpop.xlane.xlu0 %4575
  %v4577 = vsel %vm84, %v4539, 0.0
  %4578 = vadd.xlane.f32.xlu0 %v4577
  %v4579 = vpop.xlane.xlu0 %4578
  %v4580 = vsel %vm84, %v4540, 0.0
  %4581 = vadd.xlane.f32.xlu0 %v4580
  %v4582 = vpop.xlane.xlu0 %4581
  %v4583 = vsel %vm84, %v4541, 0.0
  %4584 = vadd.xlane.f32.xlu0 %v4583
  %v4585 = vpop.xlane.xlu0 %4584
  %v4586 = vsel %vm84, %v4542, 0.0
  %4587 = vadd.xlane.f32.xlu0 %v4586
  %v4588 = vpop.xlane.xlu0 %4587
  %v4589 = vsel %vm84, %v4543, 0.0
  %4590 = vadd.xlane.f32.xlu0 %v4589
  %v4591 = vpop.xlane.xlu0 %4590
  %v4592 = vmul.f32 %v4546, %v3161
  %v4593 = vmul.f32 %v4549, %v3161
  %v4594 = vmul.f32 %v4552, %v3161
  %v4595 = vmul.f32 %v4555, %v3161
  %v4596 = vmul.f32 %v4558, %v3161
  %v4597 = vmul.f32 %v4561, %v3161
  %v4598 = vmul.f32 %v4564, %v3161
  %v4599 = vmul.f32 %v4567, %v3161
  %v4600 = vmul.f32 %v4570, %v3161
  %v4601 = vmul.f32 %v4573, %v3161
  %v4602 = vmul.f32 %v4576, %v3161
  %v4603 = vmul.f32 %v4579, %v3161
  %v4604 = vmul.f32 %v4582, %v3161
  %v4605 = vmul.f32 %v4585, %v3161
  %v4606 = vmul.f32 %v4588, %v3161
  %v4607 = vmul.f32 %v4591, %v3161
  %v4608 = vadd.f32 %v4592, 1e-05
  %v4609 = vadd.f32 %v4593, 1e-05
  %v4610 = vadd.f32 %v4594, 1e-05
  %v4611 = vadd.f32 %v4595, 1e-05
  %v4612 = vadd.f32 %v4596, 1e-05
  %v4613 = vadd.f32 %v4597, 1e-05
  %v4614 = vadd.f32 %v4598, 1e-05
  %v4615 = vadd.f32 %v4599, 1e-05
  %v4616 = vadd.f32 %v4600, 1e-05
  %v4617 = vadd.f32 %v4601, 1e-05
  %v4618 = vadd.f32 %v4602, 1e-05
  %v4619 = vadd.f32 %v4603, 1e-05
  %v4620 = vadd.f32 %v4604, 1e-05
  %v4621 = vadd.f32 %v4605, 1e-05
  %v4622 = vadd.f32 %v4606, 1e-05
  %v4623 = vadd.f32 %v4607, 1e-05
  %v4624 = vrsqrt.pop %v4608
  %v4625 = vmul.f32 %v4624, %v4608
  %v4626 = vmul.f32 %v4625, %v4624
  %v4627 = vmul.f32 0.5, %v4626
  %v4628 = vsub.f32 1.5, %v4627
  %v4629 = vmul.f32 %v4624, %v4628
  %vm4630 = vweird.f32 %v4608
  %vm4631 = vweird.f32 %v4624
  %vm4632 = vmor %vm4630, %vm4631
  %v4633 = vsel %vm4632, %v4624, %v4629
  %v4634 = vrsqrt.pop %v4609
  %v4635 = vmul.f32 %v4634, %v4609
  %v4636 = vmul.f32 %v4635, %v4634
  %v4637 = vmul.f32 0.5, %v4636
  %v4638 = vsub.f32 1.5, %v4637
  %v4639 = vmul.f32 %v4634, %v4638
  %vm4640 = vweird.f32 %v4609
  %vm4641 = vweird.f32 %v4634
  %vm4642 = vmor %vm4640, %vm4641
  %v4643 = vsel %vm4642, %v4634, %v4639
  %v4644 = vrsqrt.pop %v4610
  %v4645 = vmul.f32 %v4644, %v4610
  %v4646 = vmul.f32 %v4645, %v4644
  %v4647 = vmul.f32 0.5, %v4646
  %v4648 = vsub.f32 1.5, %v4647
  %v4649 = vmul.f32 %v4644, %v4648
  %vm4650 = vweird.f32 %v4610
  %vm4651 = vweird.f32 %v4644
  %vm4652 = vmor %vm4650, %vm4651
  %v4653 = vsel %vm4652, %v4644, %v4649
  %v4654 = vrsqrt.pop %v4611
  %v4655 = vmul.f32 %v4654, %v4611
  %v4656 = vmul.f32 %v4655, %v4654
  %v4657 = vmul.f32 0.5, %v4656
  %v4658 = vsub.f32 1.5, %v4657
  %v4659 = vmul.f32 %v4654, %v4658
  %vm4660 = vweird.f32 %v4611
  %vm4661 = vweird.f32 %v4654
  %vm4662 = vmor %vm4660, %vm4661
  %v4663 = vsel %vm4662, %v4654, %v4659
  %v4664 = vrsqrt.pop %v4612
  %v4665 = vmul.f32 %v4664, %v4612
  %v4666 = vmul.f32 %v4665, %v4664
  %v4667 = vmul.f32 0.5, %v4666
  %v4668 = vsub.f32 1.5, %v4667
  %v4669 = vmul.f32 %v4664, %v4668
  %vm4670 = vweird.f32 %v4612
  %vm4671 = vweird.f32 %v4664
  %vm4672 = vmor %vm4670, %vm4671
  %v4673 = vsel %vm4672, %v4664, %v4669
  %v4674 = vrsqrt.pop %v4613
  %v4675 = vmul.f32 %v4674, %v4613
  %v4676 = vmul.f32 %v4675, %v4674
  %v4677 = vmul.f32 0.5, %v4676
  %v4678 = vsub.f32 1.5, %v4677
  %v4679 = vmul.f32 %v4674, %v4678
  %vm4680 = vweird.f32 %v4613
  %vm4681 = vweird.f32 %v4674
  %vm4682 = vmor %vm4680, %vm4681
  %v4683 = vsel %vm4682, %v4674, %v4679
  %v4684 = vrsqrt.pop %v4614
  %v4685 = vmul.f32 %v4684, %v4614
  %v4686 = vmul.f32 %v4685, %v4684
  %v4687 = vmul.f32 0.5, %v4686
  %v4688 = vsub.f32 1.5, %v4687
  %v4689 = vmul.f32 %v4684, %v4688
  %vm4690 = vweird.f32 %v4614
  %vm4691 = vweird.f32 %v4684
  %vm4692 = vmor %vm4690, %vm4691
  %v4693 = vsel %vm4692, %v4684, %v4689
  %v4694 = vrsqrt.pop %v4615
  %v4695 = vmul.f32 %v4694, %v4615
  %v4696 = vmul.f32 %v4695, %v4694
  %v4697 = vmul.f32 0.5, %v4696
  %v4698 = vsub.f32 1.5, %v4697
  %v4699 = vmul.f32 %v4694, %v4698
  %vm4700 = vweird.f32 %v4615
  %vm4701 = vweird.f32 %v4694
  %vm4702 = vmor %vm4700, %vm4701
  %v4703 = vsel %vm4702, %v4694, %v4699
  %v4704 = vrsqrt.pop %v4616
  %v4705 = vmul.f32 %v4704, %v4616
  %v4706 = vmul.f32 %v4705, %v4704
  %v4707 = vmul.f32 0.5, %v4706
  %v4708 = vsub.f32 1.5, %v4707
  %v4709 = vmul.f32 %v4704, %v4708
  %vm4710 = vweird.f32 %v4616
  %vm4711 = vweird.f32 %v4704
  %vm4712 = vmor %vm4710, %vm4711
  %v4713 = vsel %vm4712, %v4704, %v4709
  %v4714 = vrsqrt.pop %v4617
  %v4715 = vmul.f32 %v4714, %v4617
  %v4716 = vmul.f32 %v4715, %v4714
  %v4717 = vmul.f32 0.5, %v4716
  %v4718 = vsub.f32 1.5, %v4717
  %v4719 = vmul.f32 %v4714, %v4718
  %vm4720 = vweird.f32 %v4617
  %vm4721 = vweird.f32 %v4714
  %vm4722 = vmor %vm4720, %vm4721
  %v4723 = vsel %vm4722, %v4714, %v4719
  %v4724 = vrsqrt.pop %v4618
  %v4725 = vmul.f32 %v4724, %v4618
  %v4726 = vmul.f32 %v4725, %v4724
  %v4727 = vmul.f32 0.5, %v4726
  %v4728 = vsub.f32 1.5, %v4727
  %v4729 = vmul.f32 %v4724, %v4728
  %vm4730 = vweird.f32 %v4618
  %vm4731 = vweird.f32 %v4724
  %vm4732 = vmor %vm4730, %vm4731
  %v4733 = vsel %vm4732, %v4724, %v4729
  %v4734 = vrsqrt.pop %v4619
  %v4735 = vmul.f32 %v4734, %v4619
  %v4736 = vmul.f32 %v4735, %v4734
  %v4737 = vmul.f32 0.5, %v4736
  %v4738 = vsub.f32 1.5, %v4737
  %v4739 = vmul.f32 %v4734, %v4738
  %vm4740 = vweird.f32 %v4619
  %vm4741 = vweird.f32 %v4734
  %vm4742 = vmor %vm4740, %vm4741
  %v4743 = vsel %vm4742, %v4734, %v4739
  %v4744 = vrsqrt.pop %v4620
  %v4745 = vmul.f32 %v4744, %v4620
  %v4746 = vmul.f32 %v4745, %v4744
  %v4747 = vmul.f32 0.5, %v4746
  %v4748 = vsub.f32 1.5, %v4747
  %v4749 = vmul.f32 %v4744, %v4748
  %vm4750 = vweird.f32 %v4620
  %vm4751 = vweird.f32 %v4744
  %vm4752 = vmor %vm4750, %vm4751
  %v4753 = vsel %vm4752, %v4744, %v4749
  %v4754 = vrsqrt.pop %v4621
  %v4755 = vmul.f32 %v4754, %v4621
  %v4756 = vmul.f32 %v4755, %v4754
  %v4757 = vmul.f32 0.5, %v4756
  %v4758 = vsub.f32 1.5, %v4757
  %v4759 = vmul.f32 %v4754, %v4758
  %vm4760 = vweird.f32 %v4621
  %vm4761 = vweird.f32 %v4754
  %vm4762 = vmor %vm4760, %vm4761
  %v4763 = vsel %vm4762, %v4754, %v4759
  %v4764 = vrsqrt.pop %v4622
  %v4765 = vmul.f32 %v4764, %v4622
  %v4766 = vmul.f32 %v4765, %v4764
  %v4767 = vmul.f32 0.5, %v4766
  %v4768 = vsub.f32 1.5, %v4767
  %v4769 = vmul.f32 %v4764, %v4768
  %vm4770 = vweird.f32 %v4622
  %vm4771 = vweird.f32 %v4764
  %vm4772 = vmor %vm4770, %vm4771
  %v4773 = vsel %vm4772, %v4764, %v4769
  %v4774 = vrsqrt.pop %v4623
  %v4775 = vmul.f32 %v4774, %v4623
  %v4776 = vmul.f32 %v4775, %v4774
  %v4777 = vmul.f32 0.5, %v4776
  %v4778 = vsub.f32 1.5, %v4777
  %v4779 = vmul.f32 %v4774, %v4778
  %vm4780 = vweird.f32 %v4623
  %vm4781 = vweird.f32 %v4774
  %vm4782 = vmor %vm4780, %vm4781
  %v4783 = vsel %vm4782, %v4774, %v4779
  %v4784 = vmul.f32 %v4512, %v4633
  %v4785 = vmul.f32 %v4513, %v4643
  %v4786 = vmul.f32 %v4514, %v4653
  %v4787 = vmul.f32 %v4515, %v4663
  %v4788 = vmul.f32 %v4516, %v4673
  %v4789 = vmul.f32 %v4517, %v4683
  %v4790 = vmul.f32 %v4518, %v4693
  %v4791 = vmul.f32 %v4519, %v4703
  %v4792 = vmul.f32 %v4520, %v4713
  %v4793 = vmul.f32 %v4521, %v4723
  %v4794 = vmul.f32 %v4522, %v4733
  %v4795 = vmul.f32 %v4523, %v4743
  %v4796 = vmul.f32 %v4524, %v4753
  %v4797 = vmul.f32 %v4525, %v4763
  %v4798 = vmul.f32 %v4526, %v4773
  %v4799 = vmul.f32 %v4527, %v4783
  %v4800 = vperm.slane %v65, 7
  %v4801 = vmul.f32 %v4784, %v4800
  %v4802 = vmul.f32 %v4785, %v4800
  %v4803 = vmul.f32 %v4786, %v4800
  %v4804 = vmul.f32 %v4787, %v4800
  %v4805 = vmul.f32 %v4788, %v4800
  %v4806 = vmul.f32 %v4789, %v4800
  %v4807 = vmul.f32 %v4790, %v4800
  %v4808 = vmul.f32 %v4791, %v4800
  %v4809 = vmul.f32 %v4792, %v4800
  %v4810 = vmul.f32 %v4793, %v4800
  %v4811 = vmul.f32 %v4794, %v4800
  %v4812 = vmul.f32 %v4795, %v4800
  %v4813 = vmul.f32 %v4796, %v4800
  %v4814 = vmul.f32 %v4797, %v4800
  %v4815 = vmul.f32 %v4798, %v4800
  %v4816 = vmul.f32 %v4799, %v4800
  %v4817 = vperm.slane %v66, 0
  %v4818 = vadd.f32 %v4801, %v4817
  %v4819 = vadd.f32 %v4802, %v4817
  %v4820 = vadd.f32 %v4803, %v4817
  %v4821 = vadd.f32 %v4804, %v4817
  %v4822 = vadd.f32 %v4805, %v4817
  %v4823 = vadd.f32 %v4806, %v4817
  %v4824 = vadd.f32 %v4807, %v4817
  %v4825 = vadd.f32 %v4808, %v4817
  %v4826 = vadd.f32 %v4809, %v4817
  %v4827 = vadd.f32 %v4810, %v4817
  %v4828 = vadd.f32 %v4811, %v4817
  %v4829 = vadd.f32 %v4812, %v4817
  %v4830 = vadd.f32 %v4813, %v4817
  %v4831 = vadd.f32 %v4814, %v4817
  %v4832 = vadd.f32 %v4815, %v4817
  %v4833 = vadd.f32 %v4816, %v4817
  %4834 = vst.msk [vmem:[%s4] sm:$0xff] %vm84, %v4818
  %4835 = vst.msk [vmem:[%s4 + $0x8] sm:$0xff] %vm84, %v4819
  %4836 = vst.msk [vmem:[%s4 + $0x10] sm:$0xff] %vm84, %v4820
  %4837 = vst.msk [vmem:[%s4 + $0x18] sm:$0xff] %vm84, %v4821
  %4838 = vst.msk [vmem:[%s4 + $0x20] sm:$0xff] %vm84, %v4822
  %4839 = vst.msk [vmem:[%s4 + $0x28] sm:$0xff] %vm84, %v4823
  %4840 = vst.msk [vmem:[%s4 + $0x30] sm:$0xff] %vm84, %v4824
  %4841 = vst.msk [vmem:[%s4 + $0x38] sm:$0xff] %vm84, %v4825
  %4842 = vst.msk [vmem:[%s4 + $0x40] sm:$0xff] %vm84, %v4826
  %4843 = vst.msk [vmem:[%s4 + $0x48] sm:$0xff] %vm84, %v4827
  %4844 = vst.msk [vmem:[%s4 + $0x50] sm:$0xff] %vm84, %v4828
  %4845 = vst.msk [vmem:[%s4 + $0x58] sm:$0xff] %vm84, %v4829
  %4846 = vst.msk [vmem:[%s4 + $0x60] sm:$0xff] %vm84, %v4830
  %4847 = vst.msk [vmem:[%s4 + $0x68] sm:$0xff] %vm84, %v4831
  %4848 = vst.msk [vmem:[%s4 + $0x70] sm:$0xff] %vm84, %v4832
  %4849 = vst.msk [vmem:[%s4 + $0x78] sm:$0xff] %vm84, %v4833
  // Predicated region
  $region18: #{tpu_custom_call.1} parent=0 // pred_check
    _
  $region19: #{tpu_custom_call.1} parent=0 // pred_check_branch
    %4851 = sbr.rel (0) target = $region21
  $region20: #{tpu_custom_call.1} parent=0 // pred_region
    _
  $region21: #{tpu_custom_call.1} parent=0 // pred_fallthru
    _
  // Predicated region
  $region22: #{tpu_custom_call.1} parent=0 // pred_check
    _
  $region23: #{tpu_custom_call.1} parent=0 // pred_check_branch
    %4853 = sbr.rel (0) target = $region25
  $region24: #{tpu_custom_call.1} parent=0 // pred_region
    _
  $region25: #{tpu_custom_call.1} parent=0 // pred_fallthru
    _

</llo_original>
